<compile_context>
chip_gen: v5e
topology: v5e:2x2
jax: 0.10.0
libtpu: 0.0.40
codegen_flags: <defaults>
</compile_context>

<pallas_src>
import functools

import jax
import jax.numpy as jnp
from jax import lax
from jax.experimental import pallas as pl
from jax.experimental.pallas import tpu as pltpu

_BN_EPS = 1e-5
_NUM_SA_LAYERS = 4


def _sa_stack_kernel(x_ref, w1_ref, b1_ref, wqkv_ref, bqkv_ref, wt_ref, bt_ref,
                     out_ref, *, c4, tn, compute_dtype):
    """One batch element: relu(bn1(conv1(x))), then 4 SA layers, concat out."""
    C = w1_ref.shape[0]
    N = x_ref.shape[2]
    n_layers = wqkv_ref.shape[0]

    def mm(a, b):
        # MXU matmul; optionally bf16 inputs, always f32 accumulation.
        return jnp.dot(a.astype(compute_dtype), b.astype(compute_dtype),
                       preferred_element_type=jnp.float32)

    # Input embedding: relu(bn1(conv1(x))) with BN folded into w1/b1.
    h = jnp.maximum(mm(w1_ref[...], x_ref[0]) + b1_ref[...], 0.0)

    for l in range(n_layers):                       # static unroll (4 layers)
        # Fused q/k (shared weight, bias-free) + v (biased) projection.
        qkv = mm(wqkv_ref[l], h) + bqkv_ref[l]      # (C//4 + C, N)
        qk = qkv[:c4, :].astype(compute_dtype)      # (C//4, N)
        v = qkv[c4:, :].astype(compute_dtype)       # (C, N)

        # x_r = v @ softmax(qk^T qk, axis=-1), tiled over row blocks of the
        # (N, N) energy so the live set stays (tn, N).
        x_r = None
        for nb in range(N // tn):
            lo = nb * tn
            qk_blk = qk[:, lo:lo + tn]              # (C//4, tn)
            # Energy block: contract the channel dim (dim 0) of both operands
            # directly -- no explicit transpose is materialised.
            e = lax.dot_general(qk_blk, qk, (((0,), (0,)), ((), ())),
                                preferred_element_type=jnp.float32)  # (tn, N)
            p = jnp.exp(e - jnp.max(e, axis=-1, keepdims=True))
            # Divide-free row softmax: one reciprocal per row, then a scale.
            # (approx=True would move this onto the EUP, but after deferring
            # the normalisation it only touches tn values per block, so the
            # exact form is kept to preserve the tight numerical check.)
            inv = pl.reciprocal(jnp.sum(p, axis=-1, keepdims=True), approx=False)
            p = p * inv
            contrib = jnp.dot(v[:, lo:lo + tn], p.astype(compute_dtype),
                              preferred_element_type=jnp.float32)    # (C, N)
            x_r = contrib if x_r is None else x_r + contrib

        # relu(after_norm(trans_conv(x_r))) with BN folded into wt/bt, then
        # the residual connection.
        h = h + jnp.maximum(mm(wt_ref[l], x_r) + bt_ref[l], 0.0)
        out_ref[0, l * C:(l + 1) * C, :] = h


def _fold_bn(gamma, beta, mean, var):
    s = gamma / jnp.sqrt(var + _BN_EPS)
    return s, beta - mean * s


def self_attention_forward(x, params, *, use_bf16_mxu=False):
    """Pallas forward of Self_Attention: (B, C, N) -> (B, 4*C, N)."""
    w1, bn1, layers = params
    B, C, N = x.shape
    C4 = C // 4
    L = len(layers)
    assert C % 4 == 0, "channels must be divisible by 4"
    # Clean (8, 128) tiling expected (other sizes are legal but padded).
    assert C % 8 == 0 and N % 128 == 0, (C, N)

    w_dtype = jnp.bfloat16 if use_bf16_mxu else jnp.float32
    compute_dtype = jnp.bfloat16 if use_bf16_mxu else jnp.float32

    # Fold BN1 (eval mode) into the bias-free conv1.
    s1, sh1 = _fold_bn(*bn1)
    w1f = (w1 * s1[:, None]).astype(w_dtype)
    b1f = sh1[:, None].astype(jnp.float32)

    # Per SA layer: stack shared q/k weight with v weight; fold BN into trans.
    wqkv, bqkv, wtf, btf = [], [], [], []
    for (wqk, wv, bv, wt, bt, g, b, m, v) in layers:
        wqkv.append(jnp.concatenate([wqk, wv], axis=0))                 # (C4+C, C)
        bqkv.append(jnp.concatenate([jnp.zeros((C4,), jnp.float32), bv])[:, None])
        s, sh = _fold_bn(g, b, m, v)
        wtf.append(wt * s[:, None])
        btf.append((bt * s + sh)[:, None])
    wqkv = jnp.stack(wqkv).astype(w_dtype)          # (L, C4+C, C)
    bqkv = jnp.stack(bqkv).astype(jnp.float32)      # (L, C4+C, 1)
    wtf = jnp.stack(wtf).astype(w_dtype)            # (L, C, C)
    btf = jnp.stack(btf).astype(jnp.float32)        # (L, C, 1)

    # Row-block size for the (N, N) energy/softmax domain.
    tn = 512 if (N > 512 and N % 512 == 0) else N

    # Rough VMEM budget (weights + double-buffered I/O blocks + live values)
    # with headroom, capped at v7x's 64 MiB.
    w_bytes = sum(int(a.size) * a.dtype.itemsize
                  for a in (w1f, b1f, wqkv, bqkv, wtf, btf))
    io_bytes = 4 * (C * N + 4 * C * N) * 2
    live_bytes = 4 * (3 * C * N + (C4 + C) * N + 2 * tn * N)
    vmem_limit = int(min(64 * 2 ** 20,
                         max(16 * 2 ** 20,
                             4 * (2 * w_bytes + io_bytes + live_bytes))))

    flops = B * (2 * C * C * N
                 + L * 2 * N * ((C4 + C) * C + C4 * N + C * N + C * C))
    cost = pl.CostEstimate(
        flops=int(flops),
        transcendentals=int(B * L * N * N),
        bytes_accessed=int(4 * (B * C * N + B * 4 * C * N) + w_bytes))

    kernel = functools.partial(_sa_stack_kernel, c4=C4, tn=tn,
                               compute_dtype=compute_dtype)

    return pl.pallas_call(
        kernel,
        out_shape=jax.ShapeDtypeStruct((B, 4 * C, N), jnp.float32),
        grid=(B,),
        in_specs=[
            pl.BlockSpec((1, C, N), lambda b: (b, 0, 0)),       # x
            pl.BlockSpec((C, C), lambda b: (0, 0)),             # conv1 (BN folded)
            pl.BlockSpec((C, 1), lambda b: (0, 0)),             # conv1 bias (from BN)
            pl.BlockSpec((L, C4 + C, C), lambda b: (0, 0, 0)),  # stacked q/k + v weights
            pl.BlockSpec((L, C4 + C, 1), lambda b: (0, 0, 0)),  # stacked q/k + v biases
            pl.BlockSpec((L, C, C), lambda b: (0, 0, 0)),       # trans weights (BN folded)
            pl.BlockSpec((L, C, 1), lambda b: (0, 0, 0)),       # trans biases (BN folded)
        ],
        out_specs=pl.BlockSpec((1, 4 * C, N), lambda b: (b, 0, 0)),
        compiler_params=pltpu.CompilerParams(
            dimension_semantics=("parallel",),
            vmem_limit_bytes=vmem_limit),
        cost_estimate=cost,
    )(x, w1f, b1f, wqkv, bqkv, wtf, btf)


def reference(x, params):
    """Pure-JAX reference mirroring the PyTorch forward (eval-mode BN)."""
    w1, (g1, b1, m1, v1), layers = params
    s1 = g1 / jnp.sqrt(v1 + _BN_EPS)
    h = jnp.einsum('oc,bcn->bon', w1, x)
    h = jnp.maximum(h * s1[None, :, None] + (b1 - m1 * s1)[None, :, None], 0.0)
    outs = []
    for (wqk, wv, bv, wt, bt, g, b, m, v) in layers:
        qk = jnp.einsum('oc,bcn->bon', wqk, h)                    # q and k (shared weight)
        xv = jnp.einsum('oc,bcn->bon', wv, h) + bv[None, :, None]
        energy = jnp.einsum('bci,bcj->bij', qk, qk)               # (B, N, N)
        # NOTE: PyTorch's `energy / n**0.5` is overwritten, so no scaling.
        attn = jax.nn.softmax(energy, axis=-1)
        x_r = jnp.einsum('bcn,bnm->bcm', xv, attn)
        t = jnp.einsum('oc,bcn->bon', wt, x_r) + bt[None, :, None]
        s = g / jnp.sqrt(v + _BN_EPS)
        t = t * s[None, :, None] + (b - m * s)[None, :, None]
        h = h + jnp.maximum(t, 0.0)
        outs.append(h)
    return jnp.concatenate(outs, axis=1)


def make_params(key, C):
    C4 = C // 4

    def bn_params(k):
        k1, k2, k3, k4 = jax.random.split(k, 4)
        gamma = 1.0 + 0.1 * jax.random.normal(k1, (C,), jnp.float32)
        beta = 0.1 * jax.random.normal(k2, (C,), jnp.float32)
        mean = 0.1 * jax.random.normal(k3, (C,), jnp.float32)
        var = 1.0 + 0.1 * jnp.abs(jax.random.normal(k4, (C,), jnp.float32))
        return (gamma, beta, mean, var)

    keys = jax.random.split(key, 2 + _NUM_SA_LAYERS)
    w1 = 0.2 * jax.random.normal(keys[0], (C, C), jnp.float32)
    bn1 = bn_params(keys[1])
    layers = []
    for i in range(_NUM_SA_LAYERS):
        ks = jax.random.split(keys[2 + i], 6)
        wqk = 0.2 * jax.random.normal(ks[0], (C4, C), jnp.float32)
        wv = 0.2 * jax.random.normal(ks[1], (C, C), jnp.float32)
        bv = 0.1 * jax.random.normal(ks[2], (C,), jnp.float32)
        wt = 0.2 * jax.random.normal(ks[3], (C, C), jnp.float32)
        bt = 0.1 * jax.random.normal(ks[4], (C,), jnp.float32)
        g, b, m, v = bn_params(ks[5])
        layers.append((wqk, wv, bv, wt, bt, g, b, m, v))
    return (w1, bn1, layers)


if __name__ == "__main__":
    B, C, N = 2, 32, 128                      # batch, channels, num points
    key = jax.random.PRNGKey(0)
    kx, kp = jax.random.split(key)
    x = jax.random.normal(kx, (B, C, N), jnp.float32)
    params = make_params(kp, C)

    out = jax.block_until_ready(self_attention_forward(x, params))
    ref = reference(x, params)
    assert out.shape == (B, 4 * C, N)
    assert jnp.allclose(out, ref, atol=1e-3, rtol=1e-3), \
        float(jnp.max(jnp.abs(out - ref)))

    # bf16 MXU path (recommended on v6e/v7x): check it compiles, runs, finite.
    out_bf16 = jax.block_until_ready(
        self_attention_forward(x, params, use_bf16_mxu=True))
    assert out_bf16.shape == (B, 4 * C, N)
    assert bool(jnp.all(jnp.isfinite(out_bf16)))

    print("KERNEL_OK")
</pallas_src>

<mosaic_0001>
module attributes {stable_mosaic.version = 11 : i64} {
  func.func @_sa_stack_kernel(%arg0: i32, %arg1: memref<1x32x128xf32, #tpu.memory_space<vmem>>, %arg2: memref<32x32xf32, #tpu.memory_space<vmem>>, %arg3: memref<32x1xf32, #tpu.memory_space<vmem>>, %arg4: memref<4x40x32xf32, #tpu.memory_space<vmem>>, %arg5: memref<4x40x1xf32, #tpu.memory_space<vmem>>, %arg6: memref<4x32x32xf32, #tpu.memory_space<vmem>>, %arg7: memref<4x32x1xf32, #tpu.memory_space<vmem>>, %arg8: memref<1x128x128xf32, #tpu.memory_space<vmem>>) attributes {dimension_semantics = [#tpu.dimension_semantics<parallel>], iteration_bounds = array<i64: 2>, scalar_prefetch = 0 : i64, scratch_operands = 0 : i64, tpu.core_type = #tpu.core_type<tc>, window_params = [{transform_indices = @transform_0, window_bounds = array<i64: 1, 32, 128>}, {pipeline_mode = #tpu.pipeline_mode<synchronous>, transform_indices = @transform_1, window_bounds = array<i64: 32, 32>}, {pipeline_mode = #tpu.pipeline_mode<synchronous>, transform_indices = @transform_2, window_bounds = array<i64: 32, 1>}, {pipeline_mode = #tpu.pipeline_mode<synchronous>, transform_indices = @transform_3, window_bounds = array<i64: 4, 40, 32>}, {pipeline_mode = #tpu.pipeline_mode<synchronous>, transform_indices = @transform_4, window_bounds = array<i64: 4, 40, 1>}, {pipeline_mode = #tpu.pipeline_mode<synchronous>, transform_indices = @transform_5, window_bounds = array<i64: 4, 32, 32>}, {pipeline_mode = #tpu.pipeline_mode<synchronous>, transform_indices = @transform_6, window_bounds = array<i64: 4, 32, 1>}, {transform_indices = @transform_7, window_bounds = array<i64: 1, 128, 128>}]} {
    %c0 = arith.constant 0 : index
    %c0_0 = arith.constant 0 : index
    %0 = vector.load %arg2[%c0, %c0_0] : memref<32x32xf32, #tpu.memory_space<vmem>>, vector<32x32xf32>
    %c0_1 = arith.constant 0 : index
    %c0_2 = arith.constant 0 : index
    %c0_3 = arith.constant 0 : index
    %1 = vector.load %arg1[%c0_1, %c0_2, %c0_3] : memref<1x32x128xf32, #tpu.memory_space<vmem>>, vector<1x32x128xf32>
    %2 = vector.shape_cast %1 : vector<1x32x128xf32> to vector<32x128xf32>
    %cst = arith.constant dense<0.000000e+00> : vector<32x128xf32>
    %3 = tpu.matmul %0, %2, %cst {dimension_numbers = #tpu.dot_dimension_numbers<[1], [0], [0], [1], [0, 0, 1, 1], [], []>} : vector<32x32xf32>, vector<32x128xf32>, vector<32x128xf32> -> vector<32x128xf32>
    %c0_4 = arith.constant 0 : index
    %c0_5 = arith.constant 0 : index
    %4 = vector.load %arg3[%c0_4, %c0_5] : memref<32x1xf32, #tpu.memory_space<vmem>>, vector<32x1xf32>
    %5 = vector.broadcast %4 : vector<32x1xf32> to vector<32x128xf32>
    %6 = arith.addf %3, %5 : vector<32x128xf32>
    %cst_6 = arith.constant 0.000000e+00 : f32
    %7 = vector.broadcast %cst_6 : f32 to vector<32x128xf32>
    %8 = arith.maximumf %6, %7 : vector<32x128xf32>
    %c0_7 = arith.constant 0 : index
    %c0_8 = arith.constant 0 : index
    %c0_9 = arith.constant 0 : index
    %9 = vector.load %arg4[%c0_7, %c0_8, %c0_9] : memref<4x40x32xf32, #tpu.memory_space<vmem>>, vector<1x40x32xf32>
    %10 = vector.shape_cast %9 : vector<1x40x32xf32> to vector<40x32xf32>
    %cst_10 = arith.constant dense<0.000000e+00> : vector<40x128xf32>
    %11 = tpu.matmul %10, %8, %cst_10 {dimension_numbers = #tpu.dot_dimension_numbers<[1], [0], [0], [1], [0, 0, 1, 1], [], []>} : vector<40x32xf32>, vector<32x128xf32>, vector<40x128xf32> -> vector<40x128xf32>
    %c0_11 = arith.constant 0 : index
    %c0_12 = arith.constant 0 : index
    %c0_13 = arith.constant 0 : index
    %12 = vector.load %arg5[%c0_11, %c0_12, %c0_13] : memref<4x40x1xf32, #tpu.memory_space<vmem>>, vector<1x40x1xf32>
    %13 = vector.shape_cast %12 : vector<1x40x1xf32> to vector<40x1xf32>
    %14 = vector.broadcast %13 : vector<40x1xf32> to vector<40x128xf32>
    %15 = arith.addf %11, %14 : vector<40x128xf32>
    %16 = vector.extract_strided_slice %15 {offsets = [0, 0], sizes = [8, 128], strides = [1, 1]} : vector<40x128xf32> to vector<8x128xf32>
    %17 = vector.extract_strided_slice %15 {offsets = [8, 0], sizes = [32, 128], strides = [1, 1]} : vector<40x128xf32> to vector<32x128xf32>
    %cst_14 = arith.constant dense<0.000000e+00> : vector<128x128xf32>
    %18 = tpu.matmul %16, %16, %cst_14 {dimension_numbers = #tpu.dot_dimension_numbers<[0], [0], [1], [1], [0, 1, 1, 1], [], []>} : vector<8x128xf32>, vector<8x128xf32>, vector<128x128xf32> -> vector<128x128xf32>
    %cst_15 = arith.constant dense<0xFF800000> : vector<128xf32>
    %19 = vector.multi_reduction <maximumf>, %18, %cst_15 [1] : vector<128x128xf32> to vector<128xf32>
    %20 = vector.shape_cast %19 : vector<128xf32> to vector<128x1xf32>
    %21 = vector.broadcast %20 : vector<128x1xf32> to vector<128x128xf32>
    %22 = arith.subf %18, %21 : vector<128x128xf32>
    %23 = math.exp %22 : vector<128x128xf32>
    %cst_16 = arith.constant dense<0.000000e+00> : vector<128xf32>
    %24 = vector.multi_reduction <add>, %23, %cst_16 [1] : vector<128x128xf32> to vector<128xf32>
    %25 = vector.shape_cast %24 : vector<128xf32> to vector<128x1xf32>
    %26 = tpu.reciprocal %25 : vector<128x1xf32> -> vector<128x1xf32>
    %27 = vector.broadcast %26 : vector<128x1xf32> to vector<128x128xf32>
    %28 = arith.mulf %23, %27 : vector<128x128xf32>
    %cst_17 = arith.constant dense<0.000000e+00> : vector<32x128xf32>
    %29 = tpu.matmul %17, %28, %cst_17 {dimension_numbers = #tpu.dot_dimension_numbers<[1], [0], [0], [1], [0, 0, 1, 1], [], []>} : vector<32x128xf32>, vector<128x128xf32>, vector<32x128xf32> -> vector<32x128xf32>
    %c0_18 = arith.constant 0 : index
    %c0_19 = arith.constant 0 : index
    %c0_20 = arith.constant 0 : index
    %30 = vector.load %arg6[%c0_18, %c0_19, %c0_20] : memref<4x32x32xf32, #tpu.memory_space<vmem>>, vector<1x32x32xf32>
    %31 = vector.shape_cast %30 : vector<1x32x32xf32> to vector<32x32xf32>
    %cst_21 = arith.constant dense<0.000000e+00> : vector<32x128xf32>
    %32 = tpu.matmul %31, %29, %cst_21 {dimension_numbers = #tpu.dot_dimension_numbers<[1], [0], [0], [1], [0, 0, 1, 1], [], []>} : vector<32x32xf32>, vector<32x128xf32>, vector<32x128xf32> -> vector<32x128xf32>
    %c0_22 = arith.constant 0 : index
    %c0_23 = arith.constant 0 : index
    %c0_24 = arith.constant 0 : index
    %33 = vector.load %arg7[%c0_22, %c0_23, %c0_24] : memref<4x32x1xf32, #tpu.memory_space<vmem>>, vector<1x32x1xf32>
    %34 = vector.shape_cast %33 : vector<1x32x1xf32> to vector<32x1xf32>
    %35 = vector.broadcast %34 : vector<32x1xf32> to vector<32x128xf32>
    %36 = arith.addf %32, %35 : vector<32x128xf32>
    %cst_25 = arith.constant 0.000000e+00 : f32
    %37 = vector.broadcast %cst_25 : f32 to vector<32x128xf32>
    %38 = arith.maximumf %36, %37 : vector<32x128xf32>
    %39 = arith.addf %8, %38 : vector<32x128xf32>
    %c0_26 = arith.constant 0 : index
    %c0_27 = arith.constant 0 : index
    %c0_28 = arith.constant 0 : index
    %40 = vector.load %arg8[%c0_26, %c0_27, %c0_28] : memref<1x128x128xf32, #tpu.memory_space<vmem>>, vector<1x32x128xf32>
    %41 = vector.shape_cast %40 : vector<1x32x128xf32> to vector<32x128xf32>
    %42 = vector.shape_cast %39 : vector<32x128xf32> to vector<1x32x128xf32>
    tpu.vector_store %arg8[%c0_26, %c0_27, %c0_28], %42 {strides = array<i32>} : memref<1x128x128xf32, #tpu.memory_space<vmem>>, vector<1x32x128xf32>,
    %c1 = arith.constant 1 : index
    %c0_29 = arith.constant 0 : index
    %c0_30 = arith.constant 0 : index
    %43 = vector.load %arg4[%c1, %c0_29, %c0_30] : memref<4x40x32xf32, #tpu.memory_space<vmem>>, vector<1x40x32xf32>
    %44 = vector.shape_cast %43 : vector<1x40x32xf32> to vector<40x32xf32>
    %cst_31 = arith.constant dense<0.000000e+00> : vector<40x128xf32>
    %45 = tpu.matmul %44, %39, %cst_31 {dimension_numbers = #tpu.dot_dimension_numbers<[1], [0], [0], [1], [0, 0, 1, 1], [], []>} : vector<40x32xf32>, vector<32x128xf32>, vector<40x128xf32> -> vector<40x128xf32>
    %c1_32 = arith.constant 1 : index
    %c0_33 = arith.constant 0 : index
    %c0_34 = arith.constant 0 : index
    %46 = vector.load %arg5[%c1_32, %c0_33, %c0_34] : memref<4x40x1xf32, #tpu.memory_space<vmem>>, vector<1x40x1xf32>
    %47 = vector.shape_cast %46 : vector<1x40x1xf32> to vector<40x1xf32>
    %48 = vector.broadcast %47 : vector<40x1xf32> to vector<40x128xf32>
    %49 = arith.addf %45, %48 : vector<40x128xf32>
    %50 = vector.extract_strided_slice %49 {offsets = [0, 0], sizes = [8, 128], strides = [1, 1]} : vector<40x128xf32> to vector<8x128xf32>
    %51 = vector.extract_strided_slice %49 {offsets = [8, 0], sizes = [32, 128], strides = [1, 1]} : vector<40x128xf32> to vector<32x128xf32>
    %cst_35 = arith.constant dense<0.000000e+00> : vector<128x128xf32>
    %52 = tpu.matmul %50, %50, %cst_35 {dimension_numbers = #tpu.dot_dimension_numbers<[0], [0], [1], [1], [0, 1, 1, 1], [], []>} : vector<8x128xf32>, vector<8x128xf32>, vector<128x128xf32> -> vector<128x128xf32>
    %cst_36 = arith.constant dense<0xFF800000> : vector<128xf32>
    %53 = vector.multi_reduction <maximumf>, %52, %cst_36 [1] : vector<128x128xf32> to vector<128xf32>
    %54 = vector.shape_cast %53 : vector<128xf32> to vector<128x1xf32>
    %55 = vector.broadcast %54 : vector<128x1xf32> to vector<128x128xf32>
    %56 = arith.subf %52, %55 : vector<128x128xf32>
    %57 = math.exp %56 : vector<128x128xf32>
    %cst_37 = arith.constant dense<0.000000e+00> : vector<128xf32>
    %58 = vector.multi_reduction <add>, %57, %cst_37 [1] : vector<128x128xf32> to vector<128xf32>
    %59 = vector.shape_cast %58 : vector<128xf32> to vector<128x1xf32>
    %60 = tpu.reciprocal %59 : vector<128x1xf32> -> vector<128x1xf32>
    %61 = vector.broadcast %60 : vector<128x1xf32> to vector<128x128xf32>
    %62 = arith.mulf %57, %61 : vector<128x128xf32>
    %cst_38 = arith.constant dense<0.000000e+00> : vector<32x128xf32>
    %63 = tpu.matmul %51, %62, %cst_38 {dimension_numbers = #tpu.dot_dimension_numbers<[1], [0], [0], [1], [0, 0, 1, 1], [], []>} : vector<32x128xf32>, vector<128x128xf32>, vector<32x128xf32> -> vector<32x128xf32>
    %c1_39 = arith.constant 1 : index
    %c0_40 = arith.constant 0 : index
    %c0_41 = arith.constant 0 : index
    %64 = vector.load %arg6[%c1_39, %c0_40, %c0_41] : memref<4x32x32xf32, #tpu.memory_space<vmem>>, vector<1x32x32xf32>
    %65 = vector.shape_cast %64 : vector<1x32x32xf32> to vector<32x32xf32>
    %cst_42 = arith.constant dense<0.000000e+00> : vector<32x128xf32>
    %66 = tpu.matmul %65, %63, %cst_42 {dimension_numbers = #tpu.dot_dimension_numbers<[1], [0], [0], [1], [0, 0, 1, 1], [], []>} : vector<32x32xf32>, vector<32x128xf32>, vector<32x128xf32> -> vector<32x128xf32>
    %c1_43 = arith.constant 1 : index
    %c0_44 = arith.constant 0 : index
    %c0_45 = arith.constant 0 : index
    %67 = vector.load %arg7[%c1_43, %c0_44, %c0_45] : memref<4x32x1xf32, #tpu.memory_space<vmem>>, vector<1x32x1xf32>
    %68 = vector.shape_cast %67 : vector<1x32x1xf32> to vector<32x1xf32>
    %69 = vector.broadcast %68 : vector<32x1xf32> to vector<32x128xf32>
    %70 = arith.addf %66, %69 : vector<32x128xf32>
    %cst_46 = arith.constant 0.000000e+00 : f32
    %71 = vector.broadcast %cst_46 : f32 to vector<32x128xf32>
    %72 = arith.maximumf %70, %71 : vector<32x128xf32>
    %73 = arith.addf %39, %72 : vector<32x128xf32>
    %c0_47 = arith.constant 0 : index
    %c32 = arith.constant 32 : index
    %c0_48 = arith.constant 0 : index
    %74 = vector.load %arg8[%c0_47, %c32, %c0_48] : memref<1x128x128xf32, #tpu.memory_space<vmem>>, vector<1x32x128xf32>
    %75 = vector.shape_cast %74 : vector<1x32x128xf32> to vector<32x128xf32>
    %76 = vector.shape_cast %73 : vector<32x128xf32> to vector<1x32x128xf32>
    tpu.vector_store %arg8[%c0_47, %c32, %c0_48], %76 {strides = array<i32>} : memref<1x128x128xf32, #tpu.memory_space<vmem>>, vector<1x32x128xf32>,
    %c2 = arith.constant 2 : index
    %c0_49 = arith.constant 0 : index
    %c0_50 = arith.constant 0 : index
    %77 = vector.load %arg4[%c2, %c0_49, %c0_50] : memref<4x40x32xf32, #tpu.memory_space<vmem>>, vector<1x40x32xf32>
    %78 = vector.shape_cast %77 : vector<1x40x32xf32> to vector<40x32xf32>
    %cst_51 = arith.constant dense<0.000000e+00> : vector<40x128xf32>
    %79 = tpu.matmul %78, %73, %cst_51 {dimension_numbers = #tpu.dot_dimension_numbers<[1], [0], [0], [1], [0, 0, 1, 1], [], []>} : vector<40x32xf32>, vector<32x128xf32>, vector<40x128xf32> -> vector<40x128xf32>
    %c2_52 = arith.constant 2 : index
    %c0_53 = arith.constant 0 : index
    %c0_54 = arith.constant 0 : index
    %80 = vector.load %arg5[%c2_52, %c0_53, %c0_54] : memref<4x40x1xf32, #tpu.memory_space<vmem>>, vector<1x40x1xf32>
    %81 = vector.shape_cast %80 : vector<1x40x1xf32> to vector<40x1xf32>
    %82 = vector.broadcast %81 : vector<40x1xf32> to vector<40x128xf32>
    %83 = arith.addf %79, %82 : vector<40x128xf32>
    %84 = vector.extract_strided_slice %83 {offsets = [0, 0], sizes = [8, 128], strides = [1, 1]} : vector<40x128xf32> to vector<8x128xf32>
    %85 = vector.extract_strided_slice %83 {offsets = [8, 0], sizes = [32, 128], strides = [1, 1]} : vector<40x128xf32> to vector<32x128xf32>
    %cst_55 = arith.constant dense<0.000000e+00> : vector<128x128xf32>
    %86 = tpu.matmul %84, %84, %cst_55 {dimension_numbers = #tpu.dot_dimension_numbers<[0], [0], [1], [1], [0, 1, 1, 1], [], []>} : vector<8x128xf32>, vector<8x128xf32>, vector<128x128xf32> -> vector<128x128xf32>
    %cst_56 = arith.constant dense<0xFF800000> : vector<128xf32>
    %87 = vector.multi_reduction <maximumf>, %86, %cst_56 [1] : vector<128x128xf32> to vector<128xf32>
    %88 = vector.shape_cast %87 : vector<128xf32> to vector<128x1xf32>
    %89 = vector.broadcast %88 : vector<128x1xf32> to vector<128x128xf32>
    %90 = arith.subf %86, %89 : vector<128x128xf32>
    %91 = math.exp %90 : vector<128x128xf32>
    %cst_57 = arith.constant dense<0.000000e+00> : vector<128xf32>
    %92 = vector.multi_reduction <add>, %91, %cst_57 [1] : vector<128x128xf32> to vector<128xf32>
    %93 = vector.shape_cast %92 : vector<128xf32> to vector<128x1xf32>
    %94 = tpu.reciprocal %93 : vector<128x1xf32> -> vector<128x1xf32>
    %95 = vector.broadcast %94 : vector<128x1xf32> to vector<128x128xf32>
    %96 = arith.mulf %91, %95 : vector<128x128xf32>
    %cst_58 = arith.constant dense<0.000000e+00> : vector<32x128xf32>
    %97 = tpu.matmul %85, %96, %cst_58 {dimension_numbers = #tpu.dot_dimension_numbers<[1], [0], [0], [1], [0, 0, 1, 1], [], []>} : vector<32x128xf32>, vector<128x128xf32>, vector<32x128xf32> -> vector<32x128xf32>
    %c2_59 = arith.constant 2 : index
    %c0_60 = arith.constant 0 : index
    %c0_61 = arith.constant 0 : index
    %98 = vector.load %arg6[%c2_59, %c0_60, %c0_61] : memref<4x32x32xf32, #tpu.memory_space<vmem>>, vector<1x32x32xf32>
    %99 = vector.shape_cast %98 : vector<1x32x32xf32> to vector<32x32xf32>
    %cst_62 = arith.constant dense<0.000000e+00> : vector<32x128xf32>
    %100 = tpu.matmul %99, %97, %cst_62 {dimension_numbers = #tpu.dot_dimension_numbers<[1], [0], [0], [1], [0, 0, 1, 1], [], []>} : vector<32x32xf32>, vector<32x128xf32>, vector<32x128xf32> -> vector<32x128xf32>
    %c2_63 = arith.constant 2 : index
    %c0_64 = arith.constant 0 : index
    %c0_65 = arith.constant 0 : index
    %101 = vector.load %arg7[%c2_63, %c0_64, %c0_65] : memref<4x32x1xf32, #tpu.memory_space<vmem>>, vector<1x32x1xf32>
    %102 = vector.shape_cast %101 : vector<1x32x1xf32> to vector<32x1xf32>
    %103 = vector.broadcast %102 : vector<32x1xf32> to vector<32x128xf32>
    %104 = arith.addf %100, %103 : vector<32x128xf32>
    %cst_66 = arith.constant 0.000000e+00 : f32
    %105 = vector.broadcast %cst_66 : f32 to vector<32x128xf32>
    %106 = arith.maximumf %104, %105 : vector<32x128xf32>
    %107 = arith.addf %73, %106 : vector<32x128xf32>
    %c0_67 = arith.constant 0 : index
    %c64 = arith.constant 64 : index
    %c0_68 = arith.constant 0 : index
    %108 = vector.load %arg8[%c0_67, %c64, %c0_68] : memref<1x128x128xf32, #tpu.memory_space<vmem>>, vector<1x32x128xf32>
    %109 = vector.shape_cast %108 : vector<1x32x128xf32> to vector<32x128xf32>
    %110 = vector.shape_cast %107 : vector<32x128xf32> to vector<1x32x128xf32>
    tpu.vector_store %arg8[%c0_67, %c64, %c0_68], %110 {strides = array<i32>} : memref<1x128x128xf32, #tpu.memory_space<vmem>>, vector<1x32x128xf32>,
    %c3 = arith.constant 3 : index
    %c0_69 = arith.constant 0 : index
    %c0_70 = arith.constant 0 : index
    %111 = vector.load %arg4[%c3, %c0_69, %c0_70] : memref<4x40x32xf32, #tpu.memory_space<vmem>>, vector<1x40x32xf32>
    %112 = vector.shape_cast %111 : vector<1x40x32xf32> to vector<40x32xf32>
    %cst_71 = arith.constant dense<0.000000e+00> : vector<40x128xf32>
    %113 = tpu.matmul %112, %107, %cst_71 {dimension_numbers = #tpu.dot_dimension_numbers<[1], [0], [0], [1], [0, 0, 1, 1], [], []>} : vector<40x32xf32>, vector<32x128xf32>, vector<40x128xf32> -> vector<40x128xf32>
    %c3_72 = arith.constant 3 : index
    %c0_73 = arith.constant 0 : index
    %c0_74 = arith.constant 0 : index
    %114 = vector.load %arg5[%c3_72, %c0_73, %c0_74] : memref<4x40x1xf32, #tpu.memory_space<vmem>>, vector<1x40x1xf32>
    %115 = vector.shape_cast %114 : vector<1x40x1xf32> to vector<40x1xf32>
    %116 = vector.broadcast %115 : vector<40x1xf32> to vector<40x128xf32>
    %117 = arith.addf %113, %116 : vector<40x128xf32>
    %118 = vector.extract_strided_slice %117 {offsets = [0, 0], sizes = [8, 128], strides = [1, 1]} : vector<40x128xf32> to vector<8x128xf32>
    %119 = vector.extract_strided_slice %117 {offsets = [8, 0], sizes = [32, 128], strides = [1, 1]} : vector<40x128xf32> to vector<32x128xf32>
    %cst_75 = arith.constant dense<0.000000e+00> : vector<128x128xf32>
    %120 = tpu.matmul %118, %118, %cst_75 {dimension_numbers = #tpu.dot_dimension_numbers<[0], [0], [1], [1], [0, 1, 1, 1], [], []>} : vector<8x128xf32>, vector<8x128xf32>, vector<128x128xf32> -> vector<128x128xf32>
    %cst_76 = arith.constant dense<0xFF800000> : vector<128xf32>
    %121 = vector.multi_reduction <maximumf>, %120, %cst_76 [1] : vector<128x128xf32> to vector<128xf32>
    %122 = vector.shape_cast %121 : vector<128xf32> to vector<128x1xf32>
    %123 = vector.broadcast %122 : vector<128x1xf32> to vector<128x128xf32>
    %124 = arith.subf %120, %123 : vector<128x128xf32>
    %125 = math.exp %124 : vector<128x128xf32>
    %cst_77 = arith.constant dense<0.000000e+00> : vector<128xf32>
    %126 = vector.multi_reduction <add>, %125, %cst_77 [1] : vector<128x128xf32> to vector<128xf32>
    %127 = vector.shape_cast %126 : vector<128xf32> to vector<128x1xf32>
    %128 = tpu.reciprocal %127 : vector<128x1xf32> -> vector<128x1xf32>
    %129 = vector.broadcast %128 : vector<128x1xf32> to vector<128x128xf32>
    %130 = arith.mulf %125, %129 : vector<128x128xf32>
    %cst_78 = arith.constant dense<0.000000e+00> : vector<32x128xf32>
    %131 = tpu.matmul %119, %130, %cst_78 {dimension_numbers = #tpu.dot_dimension_numbers<[1], [0], [0], [1], [0, 0, 1, 1], [], []>} : vector<32x128xf32>, vector<128x128xf32>, vector<32x128xf32> -> vector<32x128xf32>
    %c3_79 = arith.constant 3 : index
    %c0_80 = arith.constant 0 : index
    %c0_81 = arith.constant 0 : index
    %132 = vector.load %arg6[%c3_79, %c0_80, %c0_81] : memref<4x32x32xf32, #tpu.memory_space<vmem>>, vector<1x32x32xf32>
    %133 = vector.shape_cast %132 : vector<1x32x32xf32> to vector<32x32xf32>
    %cst_82 = arith.constant dense<0.000000e+00> : vector<32x128xf32>
    %134 = tpu.matmul %133, %131, %cst_82 {dimension_numbers = #tpu.dot_dimension_numbers<[1], [0], [0], [1], [0, 0, 1, 1], [], []>} : vector<32x32xf32>, vector<32x128xf32>, vector<32x128xf32> -> vector<32x128xf32>
    %c3_83 = arith.constant 3 : index
    %c0_84 = arith.constant 0 : index
    %c0_85 = arith.constant 0 : index
    %135 = vector.load %arg7[%c3_83, %c0_84, %c0_85] : memref<4x32x1xf32, #tpu.memory_space<vmem>>, vector<1x32x1xf32>
    %136 = vector.shape_cast %135 : vector<1x32x1xf32> to vector<32x1xf32>
    %137 = vector.broadcast %136 : vector<32x1xf32> to vector<32x128xf32>
    %138 = arith.addf %134, %137 : vector<32x128xf32>
    %cst_86 = arith.constant 0.000000e+00 : f32
    %139 = vector.broadcast %cst_86 : f32 to vector<32x128xf32>
    %140 = arith.maximumf %138, %139 : vector<32x128xf32>
    %141 = arith.addf %107, %140 : vector<32x128xf32>
    %c0_87 = arith.constant 0 : index
    %c96 = arith.constant 96 : index
    %c0_88 = arith.constant 0 : index
    %142 = vector.load %arg8[%c0_87, %c96, %c0_88] : memref<1x128x128xf32, #tpu.memory_space<vmem>>, vector<1x32x128xf32>
    %143 = vector.shape_cast %142 : vector<1x32x128xf32> to vector<32x128xf32>
    %144 = vector.shape_cast %141 : vector<32x128xf32> to vector<1x32x128xf32>
    tpu.vector_store %arg8[%c0_87, %c96, %c0_88], %144 {strides = array<i32>} : memref<1x128x128xf32, #tpu.memory_space<vmem>>, vector<1x32x128xf32>,
    return
  }
  func.func @transform_0(%arg0: i32) -> (i32, i32, i32) {
    %c0_i32 = arith.constant 0 : i32
    %c0_i32_0 = arith.constant 0 : i32
    %c0_i32_1 = arith.constant 0 : i32
    return %arg0, %c0_i32, %c0_i32_0 : i32, i32, i32
  }
  func.func @transform_1(%arg0: i32) -> (i32, i32) {
    %c0_i32 = arith.constant 0 : i32
    %c0_i32_0 = arith.constant 0 : i32
    %c0_i32_1 = arith.constant 0 : i32
    return %c0_i32, %c0_i32_0 : i32, i32
  }
  func.func @transform_2(%arg0: i32) -> (i32, i32) {
    %c0_i32 = arith.constant 0 : i32
    %c0_i32_0 = arith.constant 0 : i32
    %c0_i32_1 = arith.constant 0 : i32
    return %c0_i32, %c0_i32_0 : i32, i32
  }
  func.func @transform_3(%arg0: i32) -> (i32, i32, i32) {
    %c0_i32 = arith.constant 0 : i32
    %c0_i32_0 = arith.constant 0 : i32
    %c0_i32_1 = arith.constant 0 : i32
    %c0_i32_2 = arith.constant 0 : i32
    return %c0_i32, %c0_i32_0, %c0_i32_1 : i32, i32, i32
  }
  func.func @transform_4(%arg0: i32) -> (i32, i32, i32) {
    %c0_i32 = arith.constant 0 : i32
    %c0_i32_0 = arith.constant 0 : i32
    %c0_i32_1 = arith.constant 0 : i32
    %c0_i32_2 = arith.constant 0 : i32
    return %c0_i32, %c0_i32_0, %c0_i32_1 : i32, i32, i32
  }
  func.func @transform_5(%arg0: i32) -> (i32, i32, i32) {
    %c0_i32 = arith.constant 0 : i32
    %c0_i32_0 = arith.constant 0 : i32
    %c0_i32_1 = arith.constant 0 : i32
    %c0_i32_2 = arith.constant 0 : i32
    return %c0_i32, %c0_i32_0, %c0_i32_1 : i32, i32, i32
  }
  func.func @transform_6(%arg0: i32) -> (i32, i32, i32) {
    %c0_i32 = arith.constant 0 : i32
    %c0_i32_0 = arith.constant 0 : i32
    %c0_i32_1 = arith.constant 0 : i32
    %c0_i32_2 = arith.constant 0 : i32
    return %c0_i32, %c0_i32_0, %c0_i32_1 : i32, i32, i32
  }
  func.func @transform_7(%arg0: i32) -> (i32, i32, i32) {
    %c0_i32 = arith.constant 0 : i32
    %c0_i32_0 = arith.constant 0 : i32
    %c0_i32_1 = arith.constant 0 : i32
    return %arg0, %c0_i32, %c0_i32_0 : i32, i32, i32
  }
}

</mosaic_0001>

<llo_original>
// kernel: tpu_custom_call.1
$region0: #{tpu_custom_call.1}
  #allocation0 [shape = 'u32[]', space=smem, size = 0x4, offset = 0x4, fixed_abs, tag = 'smem constant byte address 0x4 - core index']
  #allocation1 [shape = 'u32[72,128]{1,0:T(1,128)}', space=vmem, size = 0x9000, scoped, tag = 'internal scratch']
  %s0 = inlined_call_operand.vmem [shape: f32[2,32,128], index: 0, kind: input, shape index: {}]
  %s1 = inlined_call_operand.vmem [shape: f32[32,32], index: 1, kind: input, shape index: {}]
  %s2 = inlined_call_operand.vmem [shape: f32[32,1], index: 2, kind: input, shape index: {}]
  %s3 = inlined_call_operand.vmem [shape: f32[4,40,32], index: 3, kind: input, shape index: {}]
  %s4 = inlined_call_operand.vmem [shape: f32[4,40,1], index: 4, kind: input, shape index: {}]
  %s5 = inlined_call_operand.vmem [shape: f32[4,32,32], index: 5, kind: input, shape index: {}]
  %s6 = inlined_call_operand.vmem [shape: f32[4,32,1], index: 6, kind: input, shape index: {}]
  %s7 = inlined_call_operand.hbm [shape: f32[2,128,128], index: 7, kind: output, shape index: {}]
  %s8 = sld [smem:[#allocation0]]
  $region61: #{tpu_custom_call.1} parent=0
    _
  %s10 = ssub.s32 1, %s8
  %s11 = scalar_select 0, %s10, %s8
  $region1: #{tpu_custom_call.1} parent=0
    #allocation2 [shape = 'u8[131072]{0}', space=vmem, size = 0x20000, scoped, tag = 'output window, operand 0']
    #allocation3 [shape = 's32[2]{0}', space=sflag, size = 0x8, scoped, tag = 'scoped memory for tpu_custom_call.1']
    %12 = vsyncpa [#allocation3], 0
    %s13 = scalar_lea.sflag [#allocation3], 1
    %14 = vsyncpa %s13, 0
    loop: start=0, step=1, limit=4
    $region2: #{tpu_custom_call.1} parent=1 // loop_pre_header
      _
    $region3: #{tpu_custom_call.1} parent=1 // loop_header
      %s16 = sphi 0, %s20
      %p17 = scmp.ge.s32.totalorder %s16, 4
      %s26 = sphi 0, %s28
      %s29 = sphi 0, %s26
      %s30 = sphi 0, %s29
      %s46 = sphi 0, %s30
      %s50 = sphi 0, %s50
      %s52 = sphi 0, %s50
      %s53 = sphi 0, %s52
      %s67 = sphi 0, %s53
      %s71 = sphi 0, %s71
      %s73 = sphi 0, %s71
      %s74 = sphi 0, %s73
      %s88 = sphi 0, %s74
      %s92 = sphi 0, %s92
      %s94 = sphi 0, %s92
      %s95 = sphi 0, %s94
      %s109 = sphi 0, %s95
      %s113 = sphi 0, %s113
      %s115 = sphi 0, %s113
      %s116 = sphi 0, %s115
      %s130 = sphi 0, %s116
      %s134 = sphi 0, %s134
      %s136 = sphi 0, %s134
      %s137 = sphi 0, %s136
      %s151 = sphi 0, %s137
      %s155 = sphi 0, %s155
      %s157 = sphi 0, %s155
      %s158 = sphi 0, %s157
      %s172 = sphi 0, %s158
      %s178 = sphi 0, %s180
      %s181 = sphi 0, %s178
      %s182 = sphi 0, %s181
      %s198 = sphi 0, %s182
    $region4: #{tpu_custom_call.1} parent=1 // loop_header_branch
      %19 = sbr.rel (%p17) target = $region8
    $region5: #{tpu_custom_call.1} parent=1 // loop_body
      %s21 = ssub.s32 %s16, 1
      %s22 = ssub.s32 %s16, 2
      %s23 = sadd.s32 %s16, 1
      %s24 = ssub.s32 %s16, %s23
      %p25 = scmp.eq.s32.totalorder %s24, 0
      %s27 = sadd.s32 %s26, 1
      %s28 = scalar_select %p25, %s26, %s27
      %p31 = pneg %p25
      %p32 = scmp.eq.s32.totalorder %s16, 1
      %p33 = por %p31, %p32
      %p34 = scmp.ne.s32.totalorder %s26, %s29
      %p35 = scmp.eq.s32.totalorder %s16, 0
      %p36 = por %p34, %p35
      %p37 = scmp.ne.s32.totalorder %s26, %s29
      %p38 = scmp.eq.s32.totalorder %s21, 1
      %p39 = por %p37, %p38
      %p40 = scmp.ne.s32.totalorder %s29, %s30
      %p41 = scmp.eq.s32.totalorder %s21, 0
      %p42 = por %p40, %p41
      %p43 = scmp.ne.s32.totalorder %s29, %s30
      %p44 = scmp.eq.s32.totalorder %s22, 1
      %p45 = por %p43, %p44
      %p47 = scmp.ne.s32.totalorder %s30, %s46
      %p48 = scmp.eq.s32.totalorder %s22, 0
      %p49 = por %p47, %p48
      %s51 = sadd.s32 %s50, 1
      %p54 = scmp.eq.s32.totalorder %s16, 1
      %p55 = scmp.ne.s32.totalorder %s50, %s52
      %p56 = scmp.eq.s32.totalorder %s16, 0
      %p57 = por %p55, %p56
      %p58 = scmp.ne.s32.totalorder %s50, %s52
      %p59 = scmp.eq.s32.totalorder %s21, 1
      %p60 = por %p58, %p59
      %p61 = scmp.ne.s32.totalorder %s52, %s53
      %p62 = scmp.eq.s32.totalorder %s21, 0
      %p63 = por %p61, %p62
      %p64 = scmp.ne.s32.totalorder %s52, %s53
      %p65 = scmp.eq.s32.totalorder %s22, 1
      %p66 = por %p64, %p65
      %p68 = scmp.ne.s32.totalorder %s53, %s67
      %p69 = scmp.eq.s32.totalorder %s22, 0
      %p70 = por %p68, %p69
      %s72 = sadd.s32 %s71, 1
      %p75 = scmp.eq.s32.totalorder %s16, 1
      %p76 = scmp.ne.s32.totalorder %s71, %s73
      %p77 = scmp.eq.s32.totalorder %s16, 0
      %p78 = por %p76, %p77
      %p79 = scmp.ne.s32.totalorder %s71, %s73
      %p80 = scmp.eq.s32.totalorder %s21, 1
      %p81 = por %p79, %p80
      %p82 = scmp.ne.s32.totalorder %s73, %s74
      %p83 = scmp.eq.s32.totalorder %s21, 0
      %p84 = por %p82, %p83
      %p85 = scmp.ne.s32.totalorder %s73, %s74
      %p86 = scmp.eq.s32.totalorder %s22, 1
      %p87 = por %p85, %p86
      %p89 = scmp.ne.s32.totalorder %s74, %s88
      %p90 = scmp.eq.s32.totalorder %s22, 0
      %p91 = por %p89, %p90
      %s93 = sadd.s32 %s92, 1
      %p96 = scmp.eq.s32.totalorder %s16, 1
      %p97 = scmp.ne.s32.totalorder %s92, %s94
      %p98 = scmp.eq.s32.totalorder %s16, 0
      %p99 = por %p97, %p98
      %p100 = scmp.ne.s32.totalorder %s92, %s94
      %p101 = scmp.eq.s32.totalorder %s21, 1
      %p102 = por %p100, %p101
      %p103 = scmp.ne.s32.totalorder %s94, %s95
      %p104 = scmp.eq.s32.totalorder %s21, 0
      %p105 = por %p103, %p104
      %p106 = scmp.ne.s32.totalorder %s94, %s95
      %p107 = scmp.eq.s32.totalorder %s22, 1
      %p108 = por %p106, %p107
      %p110 = scmp.ne.s32.totalorder %s95, %s109
      %p111 = scmp.eq.s32.totalorder %s22, 0
      %p112 = por %p110, %p111
      %s114 = sadd.s32 %s113, 1
      %p117 = scmp.eq.s32.totalorder %s16, 1
      %p118 = scmp.ne.s32.totalorder %s113, %s115
      %p119 = scmp.eq.s32.totalorder %s16, 0
      %p120 = por %p118, %p119
      %p121 = scmp.ne.s32.totalorder %s113, %s115
      %p122 = scmp.eq.s32.totalorder %s21, 1
      %p123 = por %p121, %p122
      %p124 = scmp.ne.s32.totalorder %s115, %s116
      %p125 = scmp.eq.s32.totalorder %s21, 0
      %p126 = por %p124, %p125
      %p127 = scmp.ne.s32.totalorder %s115, %s116
      %p128 = scmp.eq.s32.totalorder %s22, 1
      %p129 = por %p127, %p128
      %p131 = scmp.ne.s32.totalorder %s116, %s130
      %p132 = scmp.eq.s32.totalorder %s22, 0
      %p133 = por %p131, %p132
      %s135 = sadd.s32 %s134, 1
      %p138 = scmp.eq.s32.totalorder %s16, 1
      %p139 = scmp.ne.s32.totalorder %s134, %s136
      %p140 = scmp.eq.s32.totalorder %s16, 0
      %p141 = por %p139, %p140
      %p142 = scmp.ne.s32.totalorder %s134, %s136
      %p143 = scmp.eq.s32.totalorder %s21, 1
      %p144 = por %p142, %p143
      %p145 = scmp.ne.s32.totalorder %s136, %s137
      %p146 = scmp.eq.s32.totalorder %s21, 0
      %p147 = por %p145, %p146
      %p148 = scmp.ne.s32.totalorder %s136, %s137
      %p149 = scmp.eq.s32.totalorder %s22, 1
      %p150 = por %p148, %p149
      %p152 = scmp.ne.s32.totalorder %s137, %s151
      %p153 = scmp.eq.s32.totalorder %s22, 0
      %p154 = por %p152, %p153
      %s156 = sadd.s32 %s155, 1
      %p159 = scmp.eq.s32.totalorder %s16, 1
      %p160 = scmp.ne.s32.totalorder %s155, %s157
      %p161 = scmp.eq.s32.totalorder %s16, 0
      %p162 = por %p160, %p161
      %p163 = scmp.ne.s32.totalorder %s155, %s157
      %p164 = scmp.eq.s32.totalorder %s21, 1
      %p165 = por %p163, %p164
      %p166 = scmp.ne.s32.totalorder %s157, %s158
      %p167 = scmp.eq.s32.totalorder %s21, 0
      %p168 = por %p166, %p167
      %p169 = scmp.ne.s32.totalorder %s157, %s158
      %p170 = scmp.eq.s32.totalorder %s22, 1
      %p171 = por %p169, %p170
      %p173 = scmp.ne.s32.totalorder %s158, %s172
      %p174 = scmp.eq.s32.totalorder %s22, 0
      %p175 = por %p173, %p174
      %s176 = ssub.s32 %s16, %s23
      %p177 = scmp.eq.s32.totalorder %s176, 0
      %s179 = sadd.s32 %s178, 1
      %s180 = scalar_select %p177, %s178, %s179
      %p183 = pneg %p177
      %p184 = scmp.eq.s32.totalorder %s16, 1
      %p185 = por %p183, %p184
      %p186 = scmp.ne.s32.totalorder %s178, %s181
      %p187 = scmp.eq.s32.totalorder %s16, 0
      %p188 = por %p186, %p187
      %p189 = scmp.ne.s32.totalorder %s178, %s181
      %p190 = scmp.eq.s32.totalorder %s21, 1
      %p191 = por %p189, %p190
      %p192 = scmp.ne.s32.totalorder %s181, %s182
      %p193 = scmp.eq.s32.totalorder %s21, 0
      %p194 = por %p192, %p193
      %p195 = scmp.ne.s32.totalorder %s181, %s182
      %p196 = scmp.eq.s32.totalorder %s22, 1
      %p197 = por %p195, %p196
      %p199 = scmp.ne.s32.totalorder %s182, %s198
      %p200 = scmp.eq.s32.totalorder %s22, 0
      %p201 = por %p199, %p200
      %p202 = scmp.le.s32.totalorder 1, %s16
      %p203 = scmp.lt.s32.totalorder %s16, 3
      %p204 = pnand %p202, %p203
      %p205 = pneg %p204
      // Predicated region
      $region9: #{tpu_custom_call.1} parent=5 // pred_check
        _
      $region10: #{tpu_custom_call.1} parent=5 // pred_check_branch
        %207 = sbr.rel (%p204) target = $region12
      $region11: #{tpu_custom_call.1} parent=5 // pred_region
        %s208 = ssub.s32 %s16, 1
        // Predicated region
        $region13: #{tpu_custom_call.1} parent=11 // pred_check
          %p209 = pneg %p63
        $region14: #{tpu_custom_call.1} parent=11 // pred_check_branch
          %211 = sbr.rel (%p209) target = $region16
        $region15: #{tpu_custom_call.1} parent=11 // pred_region
          _
        $region16: #{tpu_custom_call.1} parent=11 // pred_fallthru
          _
        // Predicated region
        $region17: #{tpu_custom_call.1} parent=11 // pred_check
          %p212 = pneg %p84
        $region18: #{tpu_custom_call.1} parent=11 // pred_check_branch
          %214 = sbr.rel (%p212) target = $region20
        $region19: #{tpu_custom_call.1} parent=11 // pred_region
          _
        $region20: #{tpu_custom_call.1} parent=11 // pred_fallthru
          _
        // Predicated region
        $region21: #{tpu_custom_call.1} parent=11 // pred_check
          %p215 = pneg %p105
        $region22: #{tpu_custom_call.1} parent=11 // pred_check_branch
          %217 = sbr.rel (%p215) target = $region24
        $region23: #{tpu_custom_call.1} parent=11 // pred_region
          _
        $region24: #{tpu_custom_call.1} parent=11 // pred_fallthru
          _
        // Predicated region
        $region25: #{tpu_custom_call.1} parent=11 // pred_check
          %p218 = pneg %p126
        $region26: #{tpu_custom_call.1} parent=11 // pred_check_branch
          %220 = sbr.rel (%p218) target = $region28
        $region27: #{tpu_custom_call.1} parent=11 // pred_region
          _
        $region28: #{tpu_custom_call.1} parent=11 // pred_fallthru
          _
        // Predicated region
        $region29: #{tpu_custom_call.1} parent=11 // pred_check
          %p221 = pneg %p147
        $region30: #{tpu_custom_call.1} parent=11 // pred_check_branch
          %223 = sbr.rel (%p221) target = $region32
        $region31: #{tpu_custom_call.1} parent=11 // pred_region
          _
        $region32: #{tpu_custom_call.1} parent=11 // pred_fallthru
          _
        // Predicated region
        $region33: #{tpu_custom_call.1} parent=11 // pred_check
          %p224 = pneg %p168
        $region34: #{tpu_custom_call.1} parent=11 // pred_check_branch
          %226 = sbr.rel (%p224) target = $region36
        $region35: #{tpu_custom_call.1} parent=11 // pred_region
          _
        $region36: #{tpu_custom_call.1} parent=11 // pred_fallthru
          _
      $region12: #{tpu_custom_call.1} parent=5 // pred_fallthru
        _
      %p227 = scmp.lt.s32.totalorder %s16, 2
      // Predicated region
      $region37: #{tpu_custom_call.1} parent=5 // pred_check
        %p228 = pneg %p227
      $region38: #{tpu_custom_call.1} parent=5 // pred_check_branch
        %230 = sbr.rel (%p228) target = $region40
      $region39: #{tpu_custom_call.1} parent=5 // pred_region
        // Predicated region
        $region41: #{tpu_custom_call.1} parent=39 // pred_check
          %p231 = pneg %p36
        $region42: #{tpu_custom_call.1} parent=39 // pred_check_branch
          %233 = sbr.rel (%p231) target = $region44
        $region43: #{tpu_custom_call.1} parent=39 // pred_region
          %p234 = scmp.lt.s32.totalorder %s16, 1
          %s235 = scalar_select %p234, %s16, 1
          %s236 = smul.addr %s235, 4
          %s237 = smul.addr %s236, 8
          %s238 = scalar_lea.vmem %s0, %s237
        $region44: #{tpu_custom_call.1} parent=39 // pred_fallthru
          _
      $region40: #{tpu_custom_call.1} parent=5 // pred_fallthru
        _
      %p239 = scmp.le.s32.totalorder 1, %s16
      %p240 = scmp.lt.s32.totalorder %s16, 3
      %p241 = pnand %p239, %p240
      %p242 = pneg %p241
      // Predicated region
      $region45: #{tpu_custom_call.1} parent=5 // pred_check
        _
      $region46: #{tpu_custom_call.1} parent=5 // pred_check_branch
        %244 = sbr.rel (%p241) target = $region48
      $region47: #{tpu_custom_call.1} parent=5 // pred_region
        %s245 = ssub.s32 %s16, 1
        %p246 = scmp.lt.s32.totalorder %s21, 1
        %s247 = scalar_select %p246, %s21, 1
        %s248 = smul.addr %s247, 4
        %s249 = smul.addr %s248, 8
        %s250 = scalar_lea.vmem %s0, %s249
        %p251 = pneg %p42
        %p252 = pneg %p39
        %p253 = pneg %p63
        %p254 = pneg %p60
        %p255 = pneg %p84
        %p256 = pneg %p81
        %p257 = pneg %p105
        %p258 = pneg %p102
        %p259 = pneg %p126
        %p260 = pneg %p123
        %p261 = pneg %p147
        %p262 = pneg %p144
        %p263 = pneg %p168
        %p264 = pneg %p165
        %p265 = pneg %p194
        %p266 = pneg %p191
        %s267 = sand.u32 %s181, 1
        %s268 = scalar_lea.sflag [#allocation3], %s267
        %s269 = sand.u32 %s181, 1
        %s270 = smul.addr %s269, 128
        %s271 = scalar_lea.vmem [#allocation2], %s270
        %p272 = scmp.lt.s32.totalorder %s21, 1
        %s273 = scalar_select %p272, %s21, 1
        %s274 = smul.addr %s273, 4
        %s275 = smul.addr %s274, 8
        %s276 = scalar_lea.vmem %s0, %s275
        %v277 = vld [vmem:[%s1] sm:$0xff]
        %v278 = vld [vmem:[%s1 + $0x8] sm:$0xff]
        %v279 = vld [vmem:[%s1 + $0x10] sm:$0xff]
        %v280 = vld [vmem:[%s1 + $0x18] sm:$0xff]
        %v281 = vld [vmem:[%s276] sm:$0xff]
        %v282 = vld [vmem:[%s276 + $0x8] sm:$0xff]
        %v283 = vld [vmem:[%s276 + $0x10] sm:$0xff]
        %v284 = vld [vmem:[%s276 + $0x18] sm:$0xff]
        %v285 = vld [vmem:[%s2] sm:$0xff]
        %v286 = vld [vmem:[%s2 + $0x8] sm:$0xff]
        %v287 = vld [vmem:[%s2 + $0x10] sm:$0xff]
        %v288 = vld [vmem:[%s2 + $0x18] sm:$0xff]
        %290 = vset.pattern.permute.xlu0 0
        %291 = vperm.xlu0 %290, %v285
        %v292 = vpop.permute.xlu0 %291
        %295 = vset.pattern.permute.xlu0 0
        %296 = vperm.xlu0 %295, %v286
        %v297 = vpop.permute.xlu0 %296
        %300 = vset.pattern.permute.xlu0 0
        %301 = vperm.xlu0 %300, %v287
        %v302 = vpop.permute.xlu0 %301
        %305 = vset.pattern.permute.xlu0 0
        %306 = vperm.xlu0 %305, %v288
        %v307 = vpop.permute.xlu0 %306
        %vm309 = vcmask 261120
        %v311 = vsel %vm309, %v277, 0
        %v314 = vsel %vm309, %v278, 0
        %v317 = vsel %vm309, %v279, 0
        %v320 = vsel %vm309, %v280, 0
        %322 = vmatpush.msra.mxu0 0.0
        %323 = vmatpush.msra.mxu0 0.0
        %324 = vmatpush.msra.mxu0 0.0
        %325 = vmatpush.msra.mxu0 0.0
        %326 = vmatpush.msra.mxu0 0.0
        %327 = vmatpush.msra.mxu0 0.0
        %328 = vmatpush.msra.mxu0 0.0
        %329 = vmatpush.msra.mxu0 0.0
        %330 = vmatpush.msra.mxu0 0.0
        %331 = vmatpush.msra.mxu0 0.0
        %332 = vmatpush.msra.mxu0 0.0
        %333 = vmatpush.msra.mxu0 0.0
        %334 = vmatpush.msra.mxu0 %v284
        %335 = vmatpush.msra.mxu0 %v283
        %336 = vmatpush.msra.mxu0 %v282
        %337 = vmatpush.msra.mxu0 %v281
        %338 = vmatmul.f32.gmra.mxu0 %v311
        %v339 = vpop.f32.mrf.mxu0
        %v340 = vadd.f32 %v292, %v339
        %341 = vmatmul.f32.gmra.mxu0 %v314
        %v342 = vpop.f32.mrf.mxu0
        %v343 = vadd.f32 %v297, %v342
        %344 = vmatmul.f32.gmra.mxu0 %v317
        %v345 = vpop.f32.mrf.mxu0
        %v346 = vadd.f32 %v302, %v345
        %347 = vmatmul.f32.gmra.mxu0 %v320
        %v348 = vpop.f32.mrf.mxu0
        %v349 = vadd.f32 %v307, %v348
        %350 = vdwg.mxu0
        %v351 = vmax.f32 %v340, 0.0
        %v352 = vmax.f32 %v343, 0.0
        %v353 = vmax.f32 %v346, 0.0
        %v354 = vmax.f32 %v349, 0.0
        %v355 = vld [vmem:[%s3] sm:$0xff]
        %v356 = vld [vmem:[%s3 + $0x8] sm:$0xff]
        %v357 = vld [vmem:[%s3 + $0x10] sm:$0xff]
        %v358 = vld [vmem:[%s3 + $0x18] sm:$0xff]
        %v359 = vld [vmem:[%s3 + $0x20] sm:$0xff]
        %v360 = vld [vmem:[%s4] sm:$0xff]
        %v361 = vld [vmem:[%s4 + $0x8] sm:$0xff]
        %v362 = vld [vmem:[%s4 + $0x10] sm:$0xff]
        %v363 = vld [vmem:[%s4 + $0x18] sm:$0xff]
        %v364 = vld [vmem:[%s4 + $0x20] sm:$0xff]
        %366 = vset.pattern.permute.xlu0 0
        %367 = vperm.xlu0 %366, %v360
        %v368 = vpop.permute.xlu0 %367
        %371 = vset.pattern.permute.xlu0 0
        %372 = vperm.xlu0 %371, %v361
        %v373 = vpop.permute.xlu0 %372
        %376 = vset.pattern.permute.xlu0 0
        %377 = vperm.xlu0 %376, %v362
        %v378 = vpop.permute.xlu0 %377
        %381 = vset.pattern.permute.xlu0 0
        %382 = vperm.xlu0 %381, %v363
        %v383 = vpop.permute.xlu0 %382
        %386 = vset.pattern.permute.xlu0 0
        %387 = vperm.xlu0 %386, %v364
        %v388 = vpop.permute.xlu0 %387
        %v391 = vsel %vm309, %v355, 0
        %v394 = vsel %vm309, %v356, 0
        %v397 = vsel %vm309, %v357, 0
        %v400 = vsel %vm309, %v358, 0
        %v403 = vsel %vm309, %v359, 0
        %405 = vmatpush.msra.mxu0 0.0
        %406 = vmatpush.msra.mxu0 0.0
        %407 = vmatpush.msra.mxu0 0.0
        %408 = vmatpush.msra.mxu0 0.0
        %409 = vmatpush.msra.mxu0 0.0
        %410 = vmatpush.msra.mxu0 0.0
        %411 = vmatpush.msra.mxu0 0.0
        %412 = vmatpush.msra.mxu0 0.0
        %413 = vmatpush.msra.mxu0 0.0
        %414 = vmatpush.msra.mxu0 0.0
        %415 = vmatpush.msra.mxu0 0.0
        %416 = vmatpush.msra.mxu0 0.0
        %417 = vmatpush.msra.mxu0 %v354
        %418 = vmatpush.msra.mxu0 %v353
        %419 = vmatpush.msra.mxu0 %v352
        %420 = vmatpush.msra.mxu0 %v351
        %421 = vmatmul.f32.gmra.mxu0 %v391
        %v422 = vpop.f32.mrf.mxu0
        %v423 = vadd.f32 %v368, %v422
        %424 = vmatmul.f32.gmra.mxu0 %v394
        %v425 = vpop.f32.mrf.mxu0
        %v426 = vadd.f32 %v373, %v425
        %427 = vmatmul.f32.gmra.mxu0 %v397
        %v428 = vpop.f32.mrf.mxu0
        %v429 = vadd.f32 %v378, %v428
        %430 = vmatmul.f32.gmra.mxu0 %v400
        %v431 = vpop.f32.mrf.mxu0
        %v432 = vadd.f32 %v383, %v431
        %433 = vmatmul.f32.gmra.mxu0 %v403
        %v434 = vpop.f32.mrf.mxu0
        %v435 = vadd.f32 %v388, %v434
        %436 = vdwg.mxu0
        %437 = vxpose.xlu0.b32.start [1/16] %v423, 128
        %438 = vxpose.xlu0.b32.cont [2/16] 0.0, 128
        %439 = vxpose.xlu0.b32.cont [3/16] 0.0, 128
        %440 = vxpose.xlu0.b32.cont [4/16] 0.0, 128
        %441 = vxpose.xlu0.b32.cont [5/16] 0.0, 128
        %442 = vxpose.xlu0.b32.cont [6/16] 0.0, 128
        %443 = vxpose.xlu0.b32.cont [7/16] 0.0, 128
        %444 = vxpose.xlu0.b32.cont [8/16] 0.0, 128
        %445 = vxpose.xlu0.b32.cont [9/16] 0.0, 128
        %446 = vxpose.xlu0.b32.cont [10/16] 0.0, 128
        %447 = vxpose.xlu0.b32.cont [11/16] 0.0, 128
        %448 = vxpose.xlu0.b32.cont [12/16] 0.0, 128
        %449 = vxpose.xlu0.b32.cont [13/16] 0.0, 128
        %450 = vxpose.xlu0.b32.cont [14/16] 0.0, 128
        %451 = vxpose.xlu0.b32.cont [15/16] 0.0, 128
        %452 = vxpose.xlu0.b32.end [16/16] 0.0, 128
        %v453 = vpop.trf.xlu0
        %v454 = vpop.trf.xlu0
        %v455 = vpop.trf.xlu0
        %v456 = vpop.trf.xlu0
        %v457 = vpop.trf.xlu0
        %v458 = vpop.trf.xlu0
        %v459 = vpop.trf.xlu0
        %v460 = vpop.trf.xlu0
        %v461 = vpop.trf.xlu0
        %v462 = vpop.trf.xlu0
        %v463 = vpop.trf.xlu0
        %v464 = vpop.trf.xlu0
        %v465 = vpop.trf.xlu0
        %v466 = vpop.trf.xlu0
        %v467 = vpop.trf.xlu0
        %v468 = vpop.trf.xlu0
        %vm469 = vcmask 64512
        %v471 = vsel %vm469, %v453, 0
        %v474 = vsel %vm469, %v454, 0
        %v477 = vsel %vm469, %v455, 0
        %v480 = vsel %vm469, %v456, 0
        %v483 = vsel %vm469, %v457, 0
        %v486 = vsel %vm469, %v458, 0
        %v489 = vsel %vm469, %v459, 0
        %v492 = vsel %vm469, %v460, 0
        %v495 = vsel %vm469, %v461, 0
        %v498 = vsel %vm469, %v462, 0
        %v501 = vsel %vm469, %v463, 0
        %v504 = vsel %vm469, %v464, 0
        %v507 = vsel %vm469, %v465, 0
        %v510 = vsel %vm469, %v466, 0
        %v513 = vsel %vm469, %v467, 0
        %v516 = vsel %vm469, %v468, 0
        %518 = vmatpush.msra.mxu0 0.0
        %519 = vmatpush.msra.mxu0 0.0
        %520 = vmatpush.msra.mxu0 0.0
        %521 = vmatpush.msra.mxu0 0.0
        %522 = vmatpush.msra.mxu0 0.0
        %523 = vmatpush.msra.mxu0 0.0
        %524 = vmatpush.msra.mxu0 0.0
        %525 = vmatpush.msra.mxu0 0.0
        %526 = vmatpush.msra.mxu0 0.0
        %527 = vmatpush.msra.mxu0 0.0
        %528 = vmatpush.msra.mxu0 0.0
        %529 = vmatpush.msra.mxu0 0.0
        %530 = vmatpush.msra.mxu0 0.0
        %531 = vmatpush.msra.mxu0 0.0
        %532 = vmatpush.msra.mxu0 0.0
        %533 = vmatpush.msra.mxu0 %v423
        %534 = vmatmul.f32.gmra.mxu0 %v471
        %v535 = vpop.f32.mrf.mxu0
        %v536 = vadd.f32 0.0, %v535
        %537 = vmatmul.f32.gmra.mxu0 %v474
        %v538 = vpop.f32.mrf.mxu0
        %v539 = vadd.f32 0.0, %v538
        %540 = vmatmul.f32.gmra.mxu0 %v477
        %v541 = vpop.f32.mrf.mxu0
        %v542 = vadd.f32 0.0, %v541
        %543 = vmatmul.f32.gmra.mxu0 %v480
        %v544 = vpop.f32.mrf.mxu0
        %v545 = vadd.f32 0.0, %v544
        %546 = vmatmul.f32.gmra.mxu0 %v483
        %v547 = vpop.f32.mrf.mxu0
        %v548 = vadd.f32 0.0, %v547
        %549 = vmatmul.f32.gmra.mxu0 %v486
        %v550 = vpop.f32.mrf.mxu0
        %v551 = vadd.f32 0.0, %v550
        %552 = vmatmul.f32.gmra.mxu0 %v489
        %v553 = vpop.f32.mrf.mxu0
        %v554 = vadd.f32 0.0, %v553
        %555 = vmatmul.f32.gmra.mxu0 %v492
        %v556 = vpop.f32.mrf.mxu0
        %v557 = vadd.f32 0.0, %v556
        %558 = vmatmul.f32.gmra.mxu0 %v495
        %v559 = vpop.f32.mrf.mxu0
        %v560 = vadd.f32 0.0, %v559
        %561 = vmatmul.f32.gmra.mxu0 %v498
        %v562 = vpop.f32.mrf.mxu0
        %v563 = vadd.f32 0.0, %v562
        %564 = vmatmul.f32.gmra.mxu0 %v501
        %v565 = vpop.f32.mrf.mxu0
        %v566 = vadd.f32 0.0, %v565
        %567 = vmatmul.f32.gmra.mxu0 %v504
        %v568 = vpop.f32.mrf.mxu0
        %v569 = vadd.f32 0.0, %v568
        %570 = vmatmul.f32.gmra.mxu0 %v507
        %v571 = vpop.f32.mrf.mxu0
        %v572 = vadd.f32 0.0, %v571
        %573 = vmatmul.f32.gmra.mxu0 %v510
        %v574 = vpop.f32.mrf.mxu0
        %v575 = vadd.f32 0.0, %v574
        %576 = vmatmul.f32.gmra.mxu0 %v513
        %v577 = vpop.f32.mrf.mxu0
        %v578 = vadd.f32 0.0, %v577
        %579 = vmatmul.f32.gmra.mxu0 %v516
        %v580 = vpop.f32.mrf.mxu0
        %v581 = vadd.f32 0.0, %v580
        %582 = vdwg.mxu0
        %583 = vmax.xlane.f32.xlu0 %v536
        %v584 = vpop.xlane.xlu0 %583
        %585 = vmax.xlane.f32.xlu0 %v539
        %v586 = vpop.xlane.xlu0 %585
        %587 = vmax.xlane.f32.xlu0 %v542
        %v588 = vpop.xlane.xlu0 %587
        %589 = vmax.xlane.f32.xlu0 %v545
        %v590 = vpop.xlane.xlu0 %589
        %591 = vmax.xlane.f32.xlu0 %v548
        %v592 = vpop.xlane.xlu0 %591
        %593 = vmax.xlane.f32.xlu0 %v551
        %v594 = vpop.xlane.xlu0 %593
        %595 = vmax.xlane.f32.xlu0 %v554
        %v596 = vpop.xlane.xlu0 %595
        %597 = vmax.xlane.f32.xlu0 %v557
        %v598 = vpop.xlane.xlu0 %597
        %599 = vmax.xlane.f32.xlu0 %v560
        %v600 = vpop.xlane.xlu0 %599
        %601 = vmax.xlane.f32.xlu0 %v563
        %v602 = vpop.xlane.xlu0 %601
        %603 = vmax.xlane.f32.xlu0 %v566
        %v604 = vpop.xlane.xlu0 %603
        %605 = vmax.xlane.f32.xlu0 %v569
        %v606 = vpop.xlane.xlu0 %605
        %607 = vmax.xlane.f32.xlu0 %v572
        %v608 = vpop.xlane.xlu0 %607
        %609 = vmax.xlane.f32.xlu0 %v575
        %v610 = vpop.xlane.xlu0 %609
        %611 = vmax.xlane.f32.xlu0 %v578
        %v612 = vpop.xlane.xlu0 %611
        %613 = vmax.xlane.f32.xlu0 %v581
        %v614 = vpop.xlane.xlu0 %613
        %v615 = vsub.f32 %v536, %v584
        %v616 = vsub.f32 %v539, %v586
        %v617 = vsub.f32 %v542, %v588
        %v618 = vsub.f32 %v545, %v590
        %v619 = vsub.f32 %v548, %v592
        %v620 = vsub.f32 %v551, %v594
        %v621 = vsub.f32 %v554, %v596
        %v622 = vsub.f32 %v557, %v598
        %v623 = vsub.f32 %v560, %v600
        %v624 = vsub.f32 %v563, %v602
        %v625 = vsub.f32 %v566, %v604
        %v626 = vsub.f32 %v569, %v606
        %v627 = vsub.f32 %v572, %v608
        %v628 = vsub.f32 %v575, %v610
        %v629 = vsub.f32 %v578, %v612
        %v630 = vsub.f32 %v581, %v614
        %v631 = vmul.f32 %v615, 1.442695
        %v632 = vpow.pop %v631
        %v633 = vmul.f32 %v616, 1.442695
        %v634 = vpow.pop %v633
        %v635 = vmul.f32 %v617, 1.442695
        %v636 = vpow.pop %v635
        %v637 = vmul.f32 %v618, 1.442695
        %v638 = vpow.pop %v637
        %v639 = vmul.f32 %v619, 1.442695
        %v640 = vpow.pop %v639
        %v641 = vmul.f32 %v620, 1.442695
        %v642 = vpow.pop %v641
        %v643 = vmul.f32 %v621, 1.442695
        %v644 = vpow.pop %v643
        %v645 = vmul.f32 %v622, 1.442695
        %v646 = vpow.pop %v645
        %v647 = vmul.f32 %v623, 1.442695
        %v648 = vpow.pop %v647
        %v649 = vmul.f32 %v624, 1.442695
        %v650 = vpow.pop %v649
        %v651 = vmul.f32 %v625, 1.442695
        %v652 = vpow.pop %v651
        %v653 = vmul.f32 %v626, 1.442695
        %v654 = vpow.pop %v653
        %v655 = vmul.f32 %v627, 1.442695
        %v656 = vpow.pop %v655
        %v657 = vmul.f32 %v628, 1.442695
        %v658 = vpow.pop %v657
        %v659 = vmul.f32 %v629, 1.442695
        %v660 = vpow.pop %v659
        %v661 = vmul.f32 %v630, 1.442695
        %v662 = vpow.pop %v661
        %663 = vadd.xlane.f32.xlu0 %v632
        %v664 = vpop.xlane.xlu0 %663
        %665 = vadd.xlane.f32.xlu0 %v634
        %v666 = vpop.xlane.xlu0 %665
        %667 = vadd.xlane.f32.xlu0 %v636
        %v668 = vpop.xlane.xlu0 %667
        %669 = vadd.xlane.f32.xlu0 %v638
        %v670 = vpop.xlane.xlu0 %669
        %671 = vadd.xlane.f32.xlu0 %v640
        %v672 = vpop.xlane.xlu0 %671
        %673 = vadd.xlane.f32.xlu0 %v642
        %v674 = vpop.xlane.xlu0 %673
        %675 = vadd.xlane.f32.xlu0 %v644
        %v676 = vpop.xlane.xlu0 %675
        %677 = vadd.xlane.f32.xlu0 %v646
        %v678 = vpop.xlane.xlu0 %677
        %679 = vadd.xlane.f32.xlu0 %v648
        %v680 = vpop.xlane.xlu0 %679
        %681 = vadd.xlane.f32.xlu0 %v650
        %v682 = vpop.xlane.xlu0 %681
        %683 = vadd.xlane.f32.xlu0 %v652
        %v684 = vpop.xlane.xlu0 %683
        %685 = vadd.xlane.f32.xlu0 %v654
        %v686 = vpop.xlane.xlu0 %685
        %687 = vadd.xlane.f32.xlu0 %v656
        %v688 = vpop.xlane.xlu0 %687
        %689 = vadd.xlane.f32.xlu0 %v658
        %v690 = vpop.xlane.xlu0 %689
        %691 = vadd.xlane.f32.xlu0 %v660
        %v692 = vpop.xlane.xlu0 %691
        %693 = vadd.xlane.f32.xlu0 %v662
        %v694 = vpop.xlane.xlu0 %693
        %v695 = vrcp.pop %v664
        %v696 = vmul.f32 %v664, %v695
        %v697 = vsub.f32 1.0, %v696
        %v698 = vmul.f32 %v695, %v697
        %v699 = vadd.f32 %v695, %v698
        %vm700 = vweird.f32 %v664
        %vm701 = vweird.f32 %v695
        %vm702 = vmor %vm700, %vm701
        %v703 = vsel %vm702, %v695, %v699
        %v704 = vand.u32 2147483647, %v664
        %vm705 = vcmp.eq.f32.partialorder %v704, 8.507059e+37
        %v706 = vand.u32 %v664, 2147483648
        %v707 = vor.u32 1.1754944e-38, %v706
        %v708 = vsel %vm705, %v707, %v703
        %v709 = vrcp.pop %v666
        %v710 = vmul.f32 %v666, %v709
        %v711 = vsub.f32 1.0, %v710
        %v712 = vmul.f32 %v709, %v711
        %v713 = vadd.f32 %v709, %v712
        %vm714 = vweird.f32 %v666
        %vm715 = vweird.f32 %v709
        %vm716 = vmor %vm714, %vm715
        %v717 = vsel %vm716, %v709, %v713
        %v718 = vand.u32 2147483647, %v666
        %vm719 = vcmp.eq.f32.partialorder %v718, 8.507059e+37
        %v720 = vand.u32 %v666, 2147483648
        %v721 = vor.u32 1.1754944e-38, %v720
        %v722 = vsel %vm719, %v721, %v717
        %v723 = vrcp.pop %v668
        %v724 = vmul.f32 %v668, %v723
        %v725 = vsub.f32 1.0, %v724
        %v726 = vmul.f32 %v723, %v725
        %v727 = vadd.f32 %v723, %v726
        %vm728 = vweird.f32 %v668
        %vm729 = vweird.f32 %v723
        %vm730 = vmor %vm728, %vm729
        %v731 = vsel %vm730, %v723, %v727
        %v732 = vand.u32 2147483647, %v668
        %vm733 = vcmp.eq.f32.partialorder %v732, 8.507059e+37
        %v734 = vand.u32 %v668, 2147483648
        %v735 = vor.u32 1.1754944e-38, %v734
        %v736 = vsel %vm733, %v735, %v731
        %v737 = vrcp.pop %v670
        %v738 = vmul.f32 %v670, %v737
        %v739 = vsub.f32 1.0, %v738
        %v740 = vmul.f32 %v737, %v739
        %v741 = vadd.f32 %v737, %v740
        %vm742 = vweird.f32 %v670
        %vm743 = vweird.f32 %v737
        %vm744 = vmor %vm742, %vm743
        %v745 = vsel %vm744, %v737, %v741
        %v746 = vand.u32 2147483647, %v670
        %vm747 = vcmp.eq.f32.partialorder %v746, 8.507059e+37
        %v748 = vand.u32 %v670, 2147483648
        %v749 = vor.u32 1.1754944e-38, %v748
        %v750 = vsel %vm747, %v749, %v745
        %v751 = vrcp.pop %v672
        %v752 = vmul.f32 %v672, %v751
        %v753 = vsub.f32 1.0, %v752
        %v754 = vmul.f32 %v751, %v753
        %v755 = vadd.f32 %v751, %v754
        %vm756 = vweird.f32 %v672
        %vm757 = vweird.f32 %v751
        %vm758 = vmor %vm756, %vm757
        %v759 = vsel %vm758, %v751, %v755
        %v760 = vand.u32 2147483647, %v672
        %vm761 = vcmp.eq.f32.partialorder %v760, 8.507059e+37
        %v762 = vand.u32 %v672, 2147483648
        %v763 = vor.u32 1.1754944e-38, %v762
        %v764 = vsel %vm761, %v763, %v759
        %v765 = vrcp.pop %v674
        %v766 = vmul.f32 %v674, %v765
        %v767 = vsub.f32 1.0, %v766
        %v768 = vmul.f32 %v765, %v767
        %v769 = vadd.f32 %v765, %v768
        %vm770 = vweird.f32 %v674
        %vm771 = vweird.f32 %v765
        %vm772 = vmor %vm770, %vm771
        %v773 = vsel %vm772, %v765, %v769
        %v774 = vand.u32 2147483647, %v674
        %vm775 = vcmp.eq.f32.partialorder %v774, 8.507059e+37
        %v776 = vand.u32 %v674, 2147483648
        %v777 = vor.u32 1.1754944e-38, %v776
        %v778 = vsel %vm775, %v777, %v773
        %v779 = vrcp.pop %v676
        %v780 = vmul.f32 %v676, %v779
        %v781 = vsub.f32 1.0, %v780
        %v782 = vmul.f32 %v779, %v781
        %v783 = vadd.f32 %v779, %v782
        %vm784 = vweird.f32 %v676
        %vm785 = vweird.f32 %v779
        %vm786 = vmor %vm784, %vm785
        %v787 = vsel %vm786, %v779, %v783
        %v788 = vand.u32 2147483647, %v676
        %vm789 = vcmp.eq.f32.partialorder %v788, 8.507059e+37
        %v790 = vand.u32 %v676, 2147483648
        %v791 = vor.u32 1.1754944e-38, %v790
        %v792 = vsel %vm789, %v791, %v787
        %v793 = vrcp.pop %v678
        %v794 = vmul.f32 %v678, %v793
        %v795 = vsub.f32 1.0, %v794
        %v796 = vmul.f32 %v793, %v795
        %v797 = vadd.f32 %v793, %v796
        %vm798 = vweird.f32 %v678
        %vm799 = vweird.f32 %v793
        %vm800 = vmor %vm798, %vm799
        %v801 = vsel %vm800, %v793, %v797
        %v802 = vand.u32 2147483647, %v678
        %vm803 = vcmp.eq.f32.partialorder %v802, 8.507059e+37
        %v804 = vand.u32 %v678, 2147483648
        %v805 = vor.u32 1.1754944e-38, %v804
        %v806 = vsel %vm803, %v805, %v801
        %v807 = vrcp.pop %v680
        %v808 = vmul.f32 %v680, %v807
        %v809 = vsub.f32 1.0, %v808
        %v810 = vmul.f32 %v807, %v809
        %v811 = vadd.f32 %v807, %v810
        %vm812 = vweird.f32 %v680
        %vm813 = vweird.f32 %v807
        %vm814 = vmor %vm812, %vm813
        %v815 = vsel %vm814, %v807, %v811
        %v816 = vand.u32 2147483647, %v680
        %vm817 = vcmp.eq.f32.partialorder %v816, 8.507059e+37
        %v818 = vand.u32 %v680, 2147483648
        %v819 = vor.u32 1.1754944e-38, %v818
        %v820 = vsel %vm817, %v819, %v815
        %v821 = vrcp.pop %v682
        %v822 = vmul.f32 %v682, %v821
        %v823 = vsub.f32 1.0, %v822
        %v824 = vmul.f32 %v821, %v823
        %v825 = vadd.f32 %v821, %v824
        %vm826 = vweird.f32 %v682
        %vm827 = vweird.f32 %v821
        %vm828 = vmor %vm826, %vm827
        %v829 = vsel %vm828, %v821, %v825
        %v830 = vand.u32 2147483647, %v682
        %vm831 = vcmp.eq.f32.partialorder %v830, 8.507059e+37
        %v832 = vand.u32 %v682, 2147483648
        %v833 = vor.u32 1.1754944e-38, %v832
        %v834 = vsel %vm831, %v833, %v829
        %v835 = vrcp.pop %v684
        %v836 = vmul.f32 %v684, %v835
        %v837 = vsub.f32 1.0, %v836
        %v838 = vmul.f32 %v835, %v837
        %v839 = vadd.f32 %v835, %v838
        %vm840 = vweird.f32 %v684
        %vm841 = vweird.f32 %v835
        %vm842 = vmor %vm840, %vm841
        %v843 = vsel %vm842, %v835, %v839
        %v844 = vand.u32 2147483647, %v684
        %vm845 = vcmp.eq.f32.partialorder %v844, 8.507059e+37
        %v846 = vand.u32 %v684, 2147483648
        %v847 = vor.u32 1.1754944e-38, %v846
        %v848 = vsel %vm845, %v847, %v843
        %v849 = vrcp.pop %v686
        %v850 = vmul.f32 %v686, %v849
        %v851 = vsub.f32 1.0, %v850
        %v852 = vmul.f32 %v849, %v851
        %v853 = vadd.f32 %v849, %v852
        %vm854 = vweird.f32 %v686
        %vm855 = vweird.f32 %v849
        %vm856 = vmor %vm854, %vm855
        %v857 = vsel %vm856, %v849, %v853
        %v858 = vand.u32 2147483647, %v686
        %vm859 = vcmp.eq.f32.partialorder %v858, 8.507059e+37
        %v860 = vand.u32 %v686, 2147483648
        %v861 = vor.u32 1.1754944e-38, %v860
        %v862 = vsel %vm859, %v861, %v857
        %v863 = vrcp.pop %v688
        %v864 = vmul.f32 %v688, %v863
        %v865 = vsub.f32 1.0, %v864
        %v866 = vmul.f32 %v863, %v865
        %v867 = vadd.f32 %v863, %v866
        %vm868 = vweird.f32 %v688
        %vm869 = vweird.f32 %v863
        %vm870 = vmor %vm868, %vm869
        %v871 = vsel %vm870, %v863, %v867
        %v872 = vand.u32 2147483647, %v688
        %vm873 = vcmp.eq.f32.partialorder %v872, 8.507059e+37
        %v874 = vand.u32 %v688, 2147483648
        %v875 = vor.u32 1.1754944e-38, %v874
        %v876 = vsel %vm873, %v875, %v871
        %v877 = vrcp.pop %v690
        %v878 = vmul.f32 %v690, %v877
        %v879 = vsub.f32 1.0, %v878
        %v880 = vmul.f32 %v877, %v879
        %v881 = vadd.f32 %v877, %v880
        %vm882 = vweird.f32 %v690
        %vm883 = vweird.f32 %v877
        %vm884 = vmor %vm882, %vm883
        %v885 = vsel %vm884, %v877, %v881
        %v886 = vand.u32 2147483647, %v690
        %vm887 = vcmp.eq.f32.partialorder %v886, 8.507059e+37
        %v888 = vand.u32 %v690, 2147483648
        %v889 = vor.u32 1.1754944e-38, %v888
        %v890 = vsel %vm887, %v889, %v885
        %v891 = vrcp.pop %v692
        %v892 = vmul.f32 %v692, %v891
        %v893 = vsub.f32 1.0, %v892
        %v894 = vmul.f32 %v891, %v893
        %v895 = vadd.f32 %v891, %v894
        %vm896 = vweird.f32 %v692
        %vm897 = vweird.f32 %v891
        %vm898 = vmor %vm896, %vm897
        %v899 = vsel %vm898, %v891, %v895
        %v900 = vand.u32 2147483647, %v692
        %vm901 = vcmp.eq.f32.partialorder %v900, 8.507059e+37
        %v902 = vand.u32 %v692, 2147483648
        %v903 = vor.u32 1.1754944e-38, %v902
        %v904 = vsel %vm901, %v903, %v899
        %v905 = vrcp.pop %v694
        %v906 = vmul.f32 %v694, %v905
        %v907 = vsub.f32 1.0, %v906
        %v908 = vmul.f32 %v905, %v907
        %v909 = vadd.f32 %v905, %v908
        %vm910 = vweird.f32 %v694
        %vm911 = vweird.f32 %v905
        %vm912 = vmor %vm910, %vm911
        %v913 = vsel %vm912, %v905, %v909
        %v914 = vand.u32 2147483647, %v694
        %vm915 = vcmp.eq.f32.partialorder %v914, 8.507059e+37
        %v916 = vand.u32 %v694, 2147483648
        %v917 = vor.u32 1.1754944e-38, %v916
        %v918 = vsel %vm915, %v917, %v913
        %v919 = vmul.f32 %v632, %v708
        %v920 = vmul.f32 %v634, %v722
        %v921 = vmul.f32 %v636, %v736
        %v922 = vmul.f32 %v638, %v750
        %v923 = vmul.f32 %v640, %v764
        %v924 = vmul.f32 %v642, %v778
        %v925 = vmul.f32 %v644, %v792
        %v926 = vmul.f32 %v646, %v806
        %v927 = vmul.f32 %v648, %v820
        %v928 = vmul.f32 %v650, %v834
        %v929 = vmul.f32 %v652, %v848
        %v930 = vmul.f32 %v654, %v862
        %v931 = vmul.f32 %v656, %v876
        %v932 = vmul.f32 %v658, %v890
        %v933 = vmul.f32 %v660, %v904
        %v934 = vmul.f32 %v662, %v918
        %935 = vmatpush.msra.mxu0 %v934
        %936 = vmatpush.msra.mxu0 %v933
        %937 = vmatpush.msra.mxu0 %v932
        %938 = vmatpush.msra.mxu0 %v931
        %939 = vmatpush.msra.mxu0 %v930
        %940 = vmatpush.msra.mxu0 %v929
        %941 = vmatpush.msra.mxu0 %v928
        %942 = vmatpush.msra.mxu0 %v927
        %943 = vmatpush.msra.mxu0 %v926
        %944 = vmatpush.msra.mxu0 %v925
        %945 = vmatpush.msra.mxu0 %v924
        %946 = vmatpush.msra.mxu0 %v923
        %947 = vmatpush.msra.mxu0 %v922
        %948 = vmatpush.msra.mxu0 %v921
        %949 = vmatpush.msra.mxu0 %v920
        %950 = vmatpush.msra.mxu0 %v919
        %951 = vmatmul.f32.gmra.mxu0 %v426
        %v952 = vpop.f32.mrf.mxu0
        %v953 = vadd.f32 0.0, %v952
        %954 = vmatmul.f32.gmra.mxu0 %v429
        %v955 = vpop.f32.mrf.mxu0
        %v956 = vadd.f32 0.0, %v955
        %957 = vmatmul.f32.gmra.mxu0 %v432
        %v958 = vpop.f32.mrf.mxu0
        %v959 = vadd.f32 0.0, %v958
        %960 = vmatmul.f32.gmra.mxu0 %v435
        %v961 = vpop.f32.mrf.mxu0
        %v962 = vadd.f32 0.0, %v961
        %963 = vdwg.mxu0
        %v964 = vld [vmem:[%s5] sm:$0xff]
        %v965 = vld [vmem:[%s5 + $0x8] sm:$0xff]
        %v966 = vld [vmem:[%s5 + $0x10] sm:$0xff]
        %v967 = vld [vmem:[%s5 + $0x18] sm:$0xff]
        %v968 = vld [vmem:[%s6] sm:$0xff]
        %v969 = vld [vmem:[%s6 + $0x8] sm:$0xff]
        %v970 = vld [vmem:[%s6 + $0x10] sm:$0xff]
        %v971 = vld [vmem:[%s6 + $0x18] sm:$0xff]
        %973 = vset.pattern.permute.xlu0 0
        %974 = vperm.xlu0 %973, %v968
        %v975 = vpop.permute.xlu0 %974
        %978 = vset.pattern.permute.xlu0 0
        %979 = vperm.xlu0 %978, %v969
        %v980 = vpop.permute.xlu0 %979
        %983 = vset.pattern.permute.xlu0 0
        %984 = vperm.xlu0 %983, %v970
        %v985 = vpop.permute.xlu0 %984
        %988 = vset.pattern.permute.xlu0 0
        %989 = vperm.xlu0 %988, %v971
        %v990 = vpop.permute.xlu0 %989
        %v993 = vsel %vm309, %v964, 0
        %v996 = vsel %vm309, %v965, 0
        %v999 = vsel %vm309, %v966, 0
        %v1002 = vsel %vm309, %v967, 0
        %1004 = vmatpush.msra.mxu0 0.0
        %1005 = vmatpush.msra.mxu0 0.0
        %1006 = vmatpush.msra.mxu0 0.0
        %1007 = vmatpush.msra.mxu0 0.0
        %1008 = vmatpush.msra.mxu0 0.0
        %1009 = vmatpush.msra.mxu0 0.0
        %1010 = vmatpush.msra.mxu0 0.0
        %1011 = vmatpush.msra.mxu0 0.0
        %1012 = vmatpush.msra.mxu0 0.0
        %1013 = vmatpush.msra.mxu0 0.0
        %1014 = vmatpush.msra.mxu0 0.0
        %1015 = vmatpush.msra.mxu0 0.0
        %1016 = vmatpush.msra.mxu0 %v962
        %1017 = vmatpush.msra.mxu0 %v959
        %1018 = vmatpush.msra.mxu0 %v956
        %1019 = vmatpush.msra.mxu0 %v953
        %1020 = vmatmul.f32.gmra.mxu0 %v993
        %v1021 = vpop.f32.mrf.mxu0
        %v1022 = vadd.f32 %v975, %v1021
        %1023 = vmatmul.f32.gmra.mxu0 %v996
        %v1024 = vpop.f32.mrf.mxu0
        %v1025 = vadd.f32 %v980, %v1024
        %1026 = vmatmul.f32.gmra.mxu0 %v999
        %v1027 = vpop.f32.mrf.mxu0
        %v1028 = vadd.f32 %v985, %v1027
        %1029 = vmatmul.f32.gmra.mxu0 %v1002
        %v1030 = vpop.f32.mrf.mxu0
        %v1031 = vadd.f32 %v990, %v1030
        %1032 = vdwg.mxu0
        %v1033 = vmax.f32 %v1022, 0.0
        %v1034 = vmax.f32 %v1025, 0.0
        %v1035 = vmax.f32 %v1028, 0.0
        %v1036 = vmax.f32 %v1031, 0.0
        %v1037 = vadd.f32 %v351, %v1033
        %v1038 = vadd.f32 %v352, %v1034
        %v1039 = vadd.f32 %v353, %v1035
        %v1040 = vadd.f32 %v354, %v1036
        %1041 = vst [vmem:[%s271] sm:$0xff] %v1037
        %1042 = vst [vmem:[%s271 + $0x8] sm:$0xff] %v1038
        %1043 = vst [vmem:[%s271 + $0x10] sm:$0xff] %v1039
        %1044 = vst [vmem:[%s271 + $0x18] sm:$0xff] %v1040
        %s1045 = scalar_lea.vmem %s3, 40
        %v1046 = vld [vmem:[%s1045] sm:$0xff]
        %v1047 = vld [vmem:[%s1045 + $0x8] sm:$0xff]
        %v1048 = vld [vmem:[%s1045 + $0x10] sm:$0xff]
        %v1049 = vld [vmem:[%s1045 + $0x18] sm:$0xff]
        %v1050 = vld [vmem:[%s1045 + $0x20] sm:$0xff]
        %s1051 = scalar_lea.vmem %s4, 40
        %v1052 = vld [vmem:[%s1051] sm:$0xff]
        %v1053 = vld [vmem:[%s1051 + $0x8] sm:$0xff]
        %v1054 = vld [vmem:[%s1051 + $0x10] sm:$0xff]
        %v1055 = vld [vmem:[%s1051 + $0x18] sm:$0xff]
        %v1056 = vld [vmem:[%s1051 + $0x20] sm:$0xff]
        %1058 = vset.pattern.permute.xlu0 0
        %1059 = vperm.xlu0 %1058, %v1052
        %v1060 = vpop.permute.xlu0 %1059
        %1063 = vset.pattern.permute.xlu0 0
        %1064 = vperm.xlu0 %1063, %v1053
        %v1065 = vpop.permute.xlu0 %1064
        %1068 = vset.pattern.permute.xlu0 0
        %1069 = vperm.xlu0 %1068, %v1054
        %v1070 = vpop.permute.xlu0 %1069
        %1073 = vset.pattern.permute.xlu0 0
        %1074 = vperm.xlu0 %1073, %v1055
        %v1075 = vpop.permute.xlu0 %1074
        %1078 = vset.pattern.permute.xlu0 0
        %1079 = vperm.xlu0 %1078, %v1056
        %v1080 = vpop.permute.xlu0 %1079
        %v1083 = vsel %vm309, %v1046, 0
        %v1086 = vsel %vm309, %v1047, 0
        %v1089 = vsel %vm309, %v1048, 0
        %v1092 = vsel %vm309, %v1049, 0
        %v1095 = vsel %vm309, %v1050, 0
        %1097 = vmatpush.msra.mxu0 0.0
        %1098 = vmatpush.msra.mxu0 0.0
        %1099 = vmatpush.msra.mxu0 0.0
        %1100 = vmatpush.msra.mxu0 0.0
        %1101 = vmatpush.msra.mxu0 0.0
        %1102 = vmatpush.msra.mxu0 0.0
        %1103 = vmatpush.msra.mxu0 0.0
        %1104 = vmatpush.msra.mxu0 0.0
        %1105 = vmatpush.msra.mxu0 0.0
        %1106 = vmatpush.msra.mxu0 0.0
        %1107 = vmatpush.msra.mxu0 0.0
        %1108 = vmatpush.msra.mxu0 0.0
        %1109 = vmatpush.msra.mxu0 %v1040
        %1110 = vmatpush.msra.mxu0 %v1039
        %1111 = vmatpush.msra.mxu0 %v1038
        %1112 = vmatpush.msra.mxu0 %v1037
        %1113 = vmatmul.f32.gmra.mxu0 %v1083
        %v1114 = vpop.f32.mrf.mxu0
        %v1115 = vadd.f32 %v1060, %v1114
        %1116 = vmatmul.f32.gmra.mxu0 %v1086
        %v1117 = vpop.f32.mrf.mxu0
        %v1118 = vadd.f32 %v1065, %v1117
        %1119 = vmatmul.f32.gmra.mxu0 %v1089
        %v1120 = vpop.f32.mrf.mxu0
        %v1121 = vadd.f32 %v1070, %v1120
        %1122 = vmatmul.f32.gmra.mxu0 %v1092
        %v1123 = vpop.f32.mrf.mxu0
        %v1124 = vadd.f32 %v1075, %v1123
        %1125 = vmatmul.f32.gmra.mxu0 %v1095
        %v1126 = vpop.f32.mrf.mxu0
        %v1127 = vadd.f32 %v1080, %v1126
        %1128 = vdwg.mxu0
        %1129 = vxpose.xlu0.b32.start [1/16] %v1115, 128
        %1130 = vxpose.xlu0.b32.cont [2/16] 0.0, 128
        %1131 = vxpose.xlu0.b32.cont [3/16] 0.0, 128
        %1132 = vxpose.xlu0.b32.cont [4/16] 0.0, 128
        %1133 = vxpose.xlu0.b32.cont [5/16] 0.0, 128
        %1134 = vxpose.xlu0.b32.cont [6/16] 0.0, 128
        %1135 = vxpose.xlu0.b32.cont [7/16] 0.0, 128
        %1136 = vxpose.xlu0.b32.cont [8/16] 0.0, 128
        %1137 = vxpose.xlu0.b32.cont [9/16] 0.0, 128
        %1138 = vxpose.xlu0.b32.cont [10/16] 0.0, 128
        %1139 = vxpose.xlu0.b32.cont [11/16] 0.0, 128
        %1140 = vxpose.xlu0.b32.cont [12/16] 0.0, 128
        %1141 = vxpose.xlu0.b32.cont [13/16] 0.0, 128
        %1142 = vxpose.xlu0.b32.cont [14/16] 0.0, 128
        %1143 = vxpose.xlu0.b32.cont [15/16] 0.0, 128
        %1144 = vxpose.xlu0.b32.end [16/16] 0.0, 128
        %v1145 = vpop.trf.xlu0
        %v1146 = vpop.trf.xlu0
        %v1147 = vpop.trf.xlu0
        %v1148 = vpop.trf.xlu0
        %v1149 = vpop.trf.xlu0
        %v1150 = vpop.trf.xlu0
        %v1151 = vpop.trf.xlu0
        %v1152 = vpop.trf.xlu0
        %v1153 = vpop.trf.xlu0
        %v1154 = vpop.trf.xlu0
        %v1155 = vpop.trf.xlu0
        %v1156 = vpop.trf.xlu0
        %v1157 = vpop.trf.xlu0
        %v1158 = vpop.trf.xlu0
        %v1159 = vpop.trf.xlu0
        %v1160 = vpop.trf.xlu0
        %v1162 = vsel %vm469, %v1145, 0
        %v1165 = vsel %vm469, %v1146, 0
        %v1168 = vsel %vm469, %v1147, 0
        %v1171 = vsel %vm469, %v1148, 0
        %v1174 = vsel %vm469, %v1149, 0
        %v1177 = vsel %vm469, %v1150, 0
        %v1180 = vsel %vm469, %v1151, 0
        %v1183 = vsel %vm469, %v1152, 0
        %v1186 = vsel %vm469, %v1153, 0
        %v1189 = vsel %vm469, %v1154, 0
        %v1192 = vsel %vm469, %v1155, 0
        %v1195 = vsel %vm469, %v1156, 0
        %v1198 = vsel %vm469, %v1157, 0
        %v1201 = vsel %vm469, %v1158, 0
        %v1204 = vsel %vm469, %v1159, 0
        %v1207 = vsel %vm469, %v1160, 0
        %1209 = vmatpush.msra.mxu0 0.0
        %1210 = vmatpush.msra.mxu0 0.0
        %1211 = vmatpush.msra.mxu0 0.0
        %1212 = vmatpush.msra.mxu0 0.0
        %1213 = vmatpush.msra.mxu0 0.0
        %1214 = vmatpush.msra.mxu0 0.0
        %1215 = vmatpush.msra.mxu0 0.0
        %1216 = vmatpush.msra.mxu0 0.0
        %1217 = vmatpush.msra.mxu0 0.0
        %1218 = vmatpush.msra.mxu0 0.0
        %1219 = vmatpush.msra.mxu0 0.0
        %1220 = vmatpush.msra.mxu0 0.0
        %1221 = vmatpush.msra.mxu0 0.0
        %1222 = vmatpush.msra.mxu0 0.0
        %1223 = vmatpush.msra.mxu0 0.0
        %1224 = vmatpush.msra.mxu0 %v1115
        %1225 = vmatmul.f32.gmra.mxu0 %v1162
        %v1226 = vpop.f32.mrf.mxu0
        %v1227 = vadd.f32 0.0, %v1226
        %1228 = vmatmul.f32.gmra.mxu0 %v1165
        %v1229 = vpop.f32.mrf.mxu0
        %v1230 = vadd.f32 0.0, %v1229
        %1231 = vmatmul.f32.gmra.mxu0 %v1168
        %v1232 = vpop.f32.mrf.mxu0
        %v1233 = vadd.f32 0.0, %v1232
        %1234 = vmatmul.f32.gmra.mxu0 %v1171
        %v1235 = vpop.f32.mrf.mxu0
        %v1236 = vadd.f32 0.0, %v1235
        %1237 = vmatmul.f32.gmra.mxu0 %v1174
        %v1238 = vpop.f32.mrf.mxu0
        %v1239 = vadd.f32 0.0, %v1238
        %1240 = vmatmul.f32.gmra.mxu0 %v1177
        %v1241 = vpop.f32.mrf.mxu0
        %v1242 = vadd.f32 0.0, %v1241
        %1243 = vmatmul.f32.gmra.mxu0 %v1180
        %v1244 = vpop.f32.mrf.mxu0
        %v1245 = vadd.f32 0.0, %v1244
        %1246 = vmatmul.f32.gmra.mxu0 %v1183
        %v1247 = vpop.f32.mrf.mxu0
        %v1248 = vadd.f32 0.0, %v1247
        %1249 = vmatmul.f32.gmra.mxu0 %v1186
        %v1250 = vpop.f32.mrf.mxu0
        %v1251 = vadd.f32 0.0, %v1250
        %1252 = vmatmul.f32.gmra.mxu0 %v1189
        %v1253 = vpop.f32.mrf.mxu0
        %v1254 = vadd.f32 0.0, %v1253
        %1255 = vmatmul.f32.gmra.mxu0 %v1192
        %v1256 = vpop.f32.mrf.mxu0
        %v1257 = vadd.f32 0.0, %v1256
        %1258 = vmatmul.f32.gmra.mxu0 %v1195
        %v1259 = vpop.f32.mrf.mxu0
        %v1260 = vadd.f32 0.0, %v1259
        %1261 = vmatmul.f32.gmra.mxu0 %v1198
        %v1262 = vpop.f32.mrf.mxu0
        %v1263 = vadd.f32 0.0, %v1262
        %1264 = vmatmul.f32.gmra.mxu0 %v1201
        %v1265 = vpop.f32.mrf.mxu0
        %v1266 = vadd.f32 0.0, %v1265
        %1267 = vmatmul.f32.gmra.mxu0 %v1204
        %v1268 = vpop.f32.mrf.mxu0
        %v1269 = vadd.f32 0.0, %v1268
        %1270 = vmatmul.f32.gmra.mxu0 %v1207
        %v1271 = vpop.f32.mrf.mxu0
        %v1272 = vadd.f32 0.0, %v1271
        %1273 = vdwg.mxu0
        %1274 = vmax.xlane.f32.xlu0 %v1227
        %v1275 = vpop.xlane.xlu0 %1274
        %1276 = vmax.xlane.f32.xlu0 %v1230
        %v1277 = vpop.xlane.xlu0 %1276
        %1278 = vmax.xlane.f32.xlu0 %v1233
        %v1279 = vpop.xlane.xlu0 %1278
        %1280 = vmax.xlane.f32.xlu0 %v1236
        %v1281 = vpop.xlane.xlu0 %1280
        %1282 = vmax.xlane.f32.xlu0 %v1239
        %v1283 = vpop.xlane.xlu0 %1282
        %1284 = vmax.xlane.f32.xlu0 %v1242
        %v1285 = vpop.xlane.xlu0 %1284
        %1286 = vmax.xlane.f32.xlu0 %v1245
        %v1287 = vpop.xlane.xlu0 %1286
        %1288 = vmax.xlane.f32.xlu0 %v1248
        %v1289 = vpop.xlane.xlu0 %1288
        %1290 = vmax.xlane.f32.xlu0 %v1251
        %v1291 = vpop.xlane.xlu0 %1290
        %1292 = vmax.xlane.f32.xlu0 %v1254
        %v1293 = vpop.xlane.xlu0 %1292
        %1294 = vmax.xlane.f32.xlu0 %v1257
        %v1295 = vpop.xlane.xlu0 %1294
        %1296 = vmax.xlane.f32.xlu0 %v1260
        %v1297 = vpop.xlane.xlu0 %1296
        %1298 = vmax.xlane.f32.xlu0 %v1263
        %v1299 = vpop.xlane.xlu0 %1298
        %1300 = vmax.xlane.f32.xlu0 %v1266
        %v1301 = vpop.xlane.xlu0 %1300
        %1302 = vmax.xlane.f32.xlu0 %v1269
        %v1303 = vpop.xlane.xlu0 %1302
        %1304 = vmax.xlane.f32.xlu0 %v1272
        %v1305 = vpop.xlane.xlu0 %1304
        %v1306 = vsub.f32 %v1227, %v1275
        %v1307 = vsub.f32 %v1230, %v1277
        %v1308 = vsub.f32 %v1233, %v1279
        %v1309 = vsub.f32 %v1236, %v1281
        %v1310 = vsub.f32 %v1239, %v1283
        %v1311 = vsub.f32 %v1242, %v1285
        %v1312 = vsub.f32 %v1245, %v1287
        %v1313 = vsub.f32 %v1248, %v1289
        %v1314 = vsub.f32 %v1251, %v1291
        %v1315 = vsub.f32 %v1254, %v1293
        %v1316 = vsub.f32 %v1257, %v1295
        %v1317 = vsub.f32 %v1260, %v1297
        %v1318 = vsub.f32 %v1263, %v1299
        %v1319 = vsub.f32 %v1266, %v1301
        %v1320 = vsub.f32 %v1269, %v1303
        %v1321 = vsub.f32 %v1272, %v1305
        %v1322 = vmul.f32 %v1306, 1.442695
        %v1323 = vpow.pop %v1322
        %v1324 = vmul.f32 %v1307, 1.442695
        %v1325 = vpow.pop %v1324
        %v1326 = vmul.f32 %v1308, 1.442695
        %v1327 = vpow.pop %v1326
        %v1328 = vmul.f32 %v1309, 1.442695
        %v1329 = vpow.pop %v1328
        %v1330 = vmul.f32 %v1310, 1.442695
        %v1331 = vpow.pop %v1330
        %v1332 = vmul.f32 %v1311, 1.442695
        %v1333 = vpow.pop %v1332
        %v1334 = vmul.f32 %v1312, 1.442695
        %v1335 = vpow.pop %v1334
        %v1336 = vmul.f32 %v1313, 1.442695
        %v1337 = vpow.pop %v1336
        %v1338 = vmul.f32 %v1314, 1.442695
        %v1339 = vpow.pop %v1338
        %v1340 = vmul.f32 %v1315, 1.442695
        %v1341 = vpow.pop %v1340
        %v1342 = vmul.f32 %v1316, 1.442695
        %v1343 = vpow.pop %v1342
        %v1344 = vmul.f32 %v1317, 1.442695
        %v1345 = vpow.pop %v1344
        %v1346 = vmul.f32 %v1318, 1.442695
        %v1347 = vpow.pop %v1346
        %v1348 = vmul.f32 %v1319, 1.442695
        %v1349 = vpow.pop %v1348
        %v1350 = vmul.f32 %v1320, 1.442695
        %v1351 = vpow.pop %v1350
        %v1352 = vmul.f32 %v1321, 1.442695
        %v1353 = vpow.pop %v1352
        %1354 = vadd.xlane.f32.xlu0 %v1323
        %v1355 = vpop.xlane.xlu0 %1354
        %1356 = vadd.xlane.f32.xlu0 %v1325
        %v1357 = vpop.xlane.xlu0 %1356
        %1358 = vadd.xlane.f32.xlu0 %v1327
        %v1359 = vpop.xlane.xlu0 %1358
        %1360 = vadd.xlane.f32.xlu0 %v1329
        %v1361 = vpop.xlane.xlu0 %1360
        %1362 = vadd.xlane.f32.xlu0 %v1331
        %v1363 = vpop.xlane.xlu0 %1362
        %1364 = vadd.xlane.f32.xlu0 %v1333
        %v1365 = vpop.xlane.xlu0 %1364
        %1366 = vadd.xlane.f32.xlu0 %v1335
        %v1367 = vpop.xlane.xlu0 %1366
        %1368 = vadd.xlane.f32.xlu0 %v1337
        %v1369 = vpop.xlane.xlu0 %1368
        %1370 = vadd.xlane.f32.xlu0 %v1339
        %v1371 = vpop.xlane.xlu0 %1370
        %1372 = vadd.xlane.f32.xlu0 %v1341
        %v1373 = vpop.xlane.xlu0 %1372
        %1374 = vadd.xlane.f32.xlu0 %v1343
        %v1375 = vpop.xlane.xlu0 %1374
        %1376 = vadd.xlane.f32.xlu0 %v1345
        %v1377 = vpop.xlane.xlu0 %1376
        %1378 = vadd.xlane.f32.xlu0 %v1347
        %v1379 = vpop.xlane.xlu0 %1378
        %1380 = vadd.xlane.f32.xlu0 %v1349
        %v1381 = vpop.xlane.xlu0 %1380
        %1382 = vadd.xlane.f32.xlu0 %v1351
        %v1383 = vpop.xlane.xlu0 %1382
        %1384 = vadd.xlane.f32.xlu0 %v1353
        %v1385 = vpop.xlane.xlu0 %1384
        %v1386 = vrcp.pop %v1355
        %v1387 = vmul.f32 %v1355, %v1386
        %v1388 = vsub.f32 1.0, %v1387
        %v1389 = vmul.f32 %v1386, %v1388
        %v1390 = vadd.f32 %v1386, %v1389
        %vm1391 = vweird.f32 %v1355
        %vm1392 = vweird.f32 %v1386
        %vm1393 = vmor %vm1391, %vm1392
        %v1394 = vsel %vm1393, %v1386, %v1390
        %v1395 = vand.u32 2147483647, %v1355
        %vm1396 = vcmp.eq.f32.partialorder %v1395, 8.507059e+37
        %v1397 = vand.u32 %v1355, 2147483648
        %v1398 = vor.u32 1.1754944e-38, %v1397
        %v1399 = vsel %vm1396, %v1398, %v1394
        %v1400 = vrcp.pop %v1357
        %v1401 = vmul.f32 %v1357, %v1400
        %v1402 = vsub.f32 1.0, %v1401
        %v1403 = vmul.f32 %v1400, %v1402
        %v1404 = vadd.f32 %v1400, %v1403
        %vm1405 = vweird.f32 %v1357
        %vm1406 = vweird.f32 %v1400
        %vm1407 = vmor %vm1405, %vm1406
        %v1408 = vsel %vm1407, %v1400, %v1404
        %v1409 = vand.u32 2147483647, %v1357
        %vm1410 = vcmp.eq.f32.partialorder %v1409, 8.507059e+37
        %v1411 = vand.u32 %v1357, 2147483648
        %v1412 = vor.u32 1.1754944e-38, %v1411
        %v1413 = vsel %vm1410, %v1412, %v1408
        %v1414 = vrcp.pop %v1359
        %v1415 = vmul.f32 %v1359, %v1414
        %v1416 = vsub.f32 1.0, %v1415
        %v1417 = vmul.f32 %v1414, %v1416
        %v1418 = vadd.f32 %v1414, %v1417
        %vm1419 = vweird.f32 %v1359
        %vm1420 = vweird.f32 %v1414
        %vm1421 = vmor %vm1419, %vm1420
        %v1422 = vsel %vm1421, %v1414, %v1418
        %v1423 = vand.u32 2147483647, %v1359
        %vm1424 = vcmp.eq.f32.partialorder %v1423, 8.507059e+37
        %v1425 = vand.u32 %v1359, 2147483648
        %v1426 = vor.u32 1.1754944e-38, %v1425
        %v1427 = vsel %vm1424, %v1426, %v1422
        %v1428 = vrcp.pop %v1361
        %v1429 = vmul.f32 %v1361, %v1428
        %v1430 = vsub.f32 1.0, %v1429
        %v1431 = vmul.f32 %v1428, %v1430
        %v1432 = vadd.f32 %v1428, %v1431
        %vm1433 = vweird.f32 %v1361
        %vm1434 = vweird.f32 %v1428
        %vm1435 = vmor %vm1433, %vm1434
        %v1436 = vsel %vm1435, %v1428, %v1432
        %v1437 = vand.u32 2147483647, %v1361
        %vm1438 = vcmp.eq.f32.partialorder %v1437, 8.507059e+37
        %v1439 = vand.u32 %v1361, 2147483648
        %v1440 = vor.u32 1.1754944e-38, %v1439
        %v1441 = vsel %vm1438, %v1440, %v1436
        %v1442 = vrcp.pop %v1363
        %v1443 = vmul.f32 %v1363, %v1442
        %v1444 = vsub.f32 1.0, %v1443
        %v1445 = vmul.f32 %v1442, %v1444
        %v1446 = vadd.f32 %v1442, %v1445
        %vm1447 = vweird.f32 %v1363
        %vm1448 = vweird.f32 %v1442
        %vm1449 = vmor %vm1447, %vm1448
        %v1450 = vsel %vm1449, %v1442, %v1446
        %v1451 = vand.u32 2147483647, %v1363
        %vm1452 = vcmp.eq.f32.partialorder %v1451, 8.507059e+37
        %v1453 = vand.u32 %v1363, 2147483648
        %v1454 = vor.u32 1.1754944e-38, %v1453
        %v1455 = vsel %vm1452, %v1454, %v1450
        %v1456 = vrcp.pop %v1365
        %v1457 = vmul.f32 %v1365, %v1456
        %v1458 = vsub.f32 1.0, %v1457
        %v1459 = vmul.f32 %v1456, %v1458
        %v1460 = vadd.f32 %v1456, %v1459
        %vm1461 = vweird.f32 %v1365
        %vm1462 = vweird.f32 %v1456
        %vm1463 = vmor %vm1461, %vm1462
        %v1464 = vsel %vm1463, %v1456, %v1460
        %v1465 = vand.u32 2147483647, %v1365
        %vm1466 = vcmp.eq.f32.partialorder %v1465, 8.507059e+37
        %v1467 = vand.u32 %v1365, 2147483648
        %v1468 = vor.u32 1.1754944e-38, %v1467
        %v1469 = vsel %vm1466, %v1468, %v1464
        %v1470 = vrcp.pop %v1367
        %v1471 = vmul.f32 %v1367, %v1470
        %v1472 = vsub.f32 1.0, %v1471
        %v1473 = vmul.f32 %v1470, %v1472
        %v1474 = vadd.f32 %v1470, %v1473
        %vm1475 = vweird.f32 %v1367
        %vm1476 = vweird.f32 %v1470
        %vm1477 = vmor %vm1475, %vm1476
        %v1478 = vsel %vm1477, %v1470, %v1474
        %v1479 = vand.u32 2147483647, %v1367
        %vm1480 = vcmp.eq.f32.partialorder %v1479, 8.507059e+37
        %v1481 = vand.u32 %v1367, 2147483648
        %v1482 = vor.u32 1.1754944e-38, %v1481
        %v1483 = vsel %vm1480, %v1482, %v1478
        %v1484 = vrcp.pop %v1369
        %v1485 = vmul.f32 %v1369, %v1484
        %v1486 = vsub.f32 1.0, %v1485
        %v1487 = vmul.f32 %v1484, %v1486
        %v1488 = vadd.f32 %v1484, %v1487
        %vm1489 = vweird.f32 %v1369
        %vm1490 = vweird.f32 %v1484
        %vm1491 = vmor %vm1489, %vm1490
        %v1492 = vsel %vm1491, %v1484, %v1488
        %v1493 = vand.u32 2147483647, %v1369
        %vm1494 = vcmp.eq.f32.partialorder %v1493, 8.507059e+37
        %v1495 = vand.u32 %v1369, 2147483648
        %v1496 = vor.u32 1.1754944e-38, %v1495
        %v1497 = vsel %vm1494, %v1496, %v1492
        %v1498 = vrcp.pop %v1371
        %v1499 = vmul.f32 %v1371, %v1498
        %v1500 = vsub.f32 1.0, %v1499
        %v1501 = vmul.f32 %v1498, %v1500
        %v1502 = vadd.f32 %v1498, %v1501
        %vm1503 = vweird.f32 %v1371
        %vm1504 = vweird.f32 %v1498
        %vm1505 = vmor %vm1503, %vm1504
        %v1506 = vsel %vm1505, %v1498, %v1502
        %v1507 = vand.u32 2147483647, %v1371
        %vm1508 = vcmp.eq.f32.partialorder %v1507, 8.507059e+37
        %v1509 = vand.u32 %v1371, 2147483648
        %v1510 = vor.u32 1.1754944e-38, %v1509
        %v1511 = vsel %vm1508, %v1510, %v1506
        %v1512 = vrcp.pop %v1373
        %v1513 = vmul.f32 %v1373, %v1512
        %v1514 = vsub.f32 1.0, %v1513
        %v1515 = vmul.f32 %v1512, %v1514
        %v1516 = vadd.f32 %v1512, %v1515
        %vm1517 = vweird.f32 %v1373
        %vm1518 = vweird.f32 %v1512
        %vm1519 = vmor %vm1517, %vm1518
        %v1520 = vsel %vm1519, %v1512, %v1516
        %v1521 = vand.u32 2147483647, %v1373
        %vm1522 = vcmp.eq.f32.partialorder %v1521, 8.507059e+37
        %v1523 = vand.u32 %v1373, 2147483648
        %v1524 = vor.u32 1.1754944e-38, %v1523
        %v1525 = vsel %vm1522, %v1524, %v1520
        %v1526 = vrcp.pop %v1375
        %v1527 = vmul.f32 %v1375, %v1526
        %v1528 = vsub.f32 1.0, %v1527
        %v1529 = vmul.f32 %v1526, %v1528
        %v1530 = vadd.f32 %v1526, %v1529
        %vm1531 = vweird.f32 %v1375
        %vm1532 = vweird.f32 %v1526
        %vm1533 = vmor %vm1531, %vm1532
        %v1534 = vsel %vm1533, %v1526, %v1530
        %v1535 = vand.u32 2147483647, %v1375
        %vm1536 = vcmp.eq.f32.partialorder %v1535, 8.507059e+37
        %v1537 = vand.u32 %v1375, 2147483648
        %v1538 = vor.u32 1.1754944e-38, %v1537
        %v1539 = vsel %vm1536, %v1538, %v1534
        %v1540 = vrcp.pop %v1377
        %v1541 = vmul.f32 %v1377, %v1540
        %v1542 = vsub.f32 1.0, %v1541
        %v1543 = vmul.f32 %v1540, %v1542
        %v1544 = vadd.f32 %v1540, %v1543
        %vm1545 = vweird.f32 %v1377
        %vm1546 = vweird.f32 %v1540
        %vm1547 = vmor %vm1545, %vm1546
        %v1548 = vsel %vm1547, %v1540, %v1544
        %v1549 = vand.u32 2147483647, %v1377
        %vm1550 = vcmp.eq.f32.partialorder %v1549, 8.507059e+37
        %v1551 = vand.u32 %v1377, 2147483648
        %v1552 = vor.u32 1.1754944e-38, %v1551
        %v1553 = vsel %vm1550, %v1552, %v1548
        %v1554 = vrcp.pop %v1379
        %v1555 = vmul.f32 %v1379, %v1554
        %v1556 = vsub.f32 1.0, %v1555
        %v1557 = vmul.f32 %v1554, %v1556
        %v1558 = vadd.f32 %v1554, %v1557
        %vm1559 = vweird.f32 %v1379
        %vm1560 = vweird.f32 %v1554
        %vm1561 = vmor %vm1559, %vm1560
        %v1562 = vsel %vm1561, %v1554, %v1558
        %v1563 = vand.u32 2147483647, %v1379
        %vm1564 = vcmp.eq.f32.partialorder %v1563, 8.507059e+37
        %v1565 = vand.u32 %v1379, 2147483648
        %v1566 = vor.u32 1.1754944e-38, %v1565
        %v1567 = vsel %vm1564, %v1566, %v1562
        %v1568 = vrcp.pop %v1381
        %v1569 = vmul.f32 %v1381, %v1568
        %v1570 = vsub.f32 1.0, %v1569
        %v1571 = vmul.f32 %v1568, %v1570
        %v1572 = vadd.f32 %v1568, %v1571
        %vm1573 = vweird.f32 %v1381
        %vm1574 = vweird.f32 %v1568
        %vm1575 = vmor %vm1573, %vm1574
        %v1576 = vsel %vm1575, %v1568, %v1572
        %v1577 = vand.u32 2147483647, %v1381
        %vm1578 = vcmp.eq.f32.partialorder %v1577, 8.507059e+37
        %v1579 = vand.u32 %v1381, 2147483648
        %v1580 = vor.u32 1.1754944e-38, %v1579
        %v1581 = vsel %vm1578, %v1580, %v1576
        %v1582 = vrcp.pop %v1383
        %v1583 = vmul.f32 %v1383, %v1582
        %v1584 = vsub.f32 1.0, %v1583
        %v1585 = vmul.f32 %v1582, %v1584
        %v1586 = vadd.f32 %v1582, %v1585
        %vm1587 = vweird.f32 %v1383
        %vm1588 = vweird.f32 %v1582
        %vm1589 = vmor %vm1587, %vm1588
        %v1590 = vsel %vm1589, %v1582, %v1586
        %v1591 = vand.u32 2147483647, %v1383
        %vm1592 = vcmp.eq.f32.partialorder %v1591, 8.507059e+37
        %v1593 = vand.u32 %v1383, 2147483648
        %v1594 = vor.u32 1.1754944e-38, %v1593
        %v1595 = vsel %vm1592, %v1594, %v1590
        %v1596 = vrcp.pop %v1385
        %v1597 = vmul.f32 %v1385, %v1596
        %v1598 = vsub.f32 1.0, %v1597
        %v1599 = vmul.f32 %v1596, %v1598
        %v1600 = vadd.f32 %v1596, %v1599
        %vm1601 = vweird.f32 %v1385
        %vm1602 = vweird.f32 %v1596
        %vm1603 = vmor %vm1601, %vm1602
        %v1604 = vsel %vm1603, %v1596, %v1600
        %v1605 = vand.u32 2147483647, %v1385
        %vm1606 = vcmp.eq.f32.partialorder %v1605, 8.507059e+37
        %v1607 = vand.u32 %v1385, 2147483648
        %v1608 = vor.u32 1.1754944e-38, %v1607
        %v1609 = vsel %vm1606, %v1608, %v1604
        %v1610 = vmul.f32 %v1323, %v1399
        %v1611 = vmul.f32 %v1325, %v1413
        %v1612 = vmul.f32 %v1327, %v1427
        %v1613 = vmul.f32 %v1329, %v1441
        %v1614 = vmul.f32 %v1331, %v1455
        %v1615 = vmul.f32 %v1333, %v1469
        %v1616 = vmul.f32 %v1335, %v1483
        %v1617 = vmul.f32 %v1337, %v1497
        %v1618 = vmul.f32 %v1339, %v1511
        %v1619 = vmul.f32 %v1341, %v1525
        %v1620 = vmul.f32 %v1343, %v1539
        %v1621 = vmul.f32 %v1345, %v1553
        %v1622 = vmul.f32 %v1347, %v1567
        %v1623 = vmul.f32 %v1349, %v1581
        %v1624 = vmul.f32 %v1351, %v1595
        %v1625 = vmul.f32 %v1353, %v1609
        %1626 = vmatpush.msra.mxu0 %v1625
        %1627 = vmatpush.msra.mxu0 %v1624
        %1628 = vmatpush.msra.mxu0 %v1623
        %1629 = vmatpush.msra.mxu0 %v1622
        %1630 = vmatpush.msra.mxu0 %v1621
        %1631 = vmatpush.msra.mxu0 %v1620
        %1632 = vmatpush.msra.mxu0 %v1619
        %1633 = vmatpush.msra.mxu0 %v1618
        %1634 = vmatpush.msra.mxu0 %v1617
        %1635 = vmatpush.msra.mxu0 %v1616
        %1636 = vmatpush.msra.mxu0 %v1615
        %1637 = vmatpush.msra.mxu0 %v1614
        %1638 = vmatpush.msra.mxu0 %v1613
        %1639 = vmatpush.msra.mxu0 %v1612
        %1640 = vmatpush.msra.mxu0 %v1611
        %1641 = vmatpush.msra.mxu0 %v1610
        %1642 = vmatmul.f32.gmra.mxu0 %v1118
        %v1643 = vpop.f32.mrf.mxu0
        %v1644 = vadd.f32 0.0, %v1643
        %1645 = vmatmul.f32.gmra.mxu0 %v1121
        %v1646 = vpop.f32.mrf.mxu0
        %v1647 = vadd.f32 0.0, %v1646
        %1648 = vmatmul.f32.gmra.mxu0 %v1124
        %v1649 = vpop.f32.mrf.mxu0
        %v1650 = vadd.f32 0.0, %v1649
        %1651 = vmatmul.f32.gmra.mxu0 %v1127
        %v1652 = vpop.f32.mrf.mxu0
        %v1653 = vadd.f32 0.0, %v1652
        %1654 = vdwg.mxu0
        %s1655 = scalar_lea.vmem %s5, 32
        %v1656 = vld [vmem:[%s1655] sm:$0xff]
        %v1657 = vld [vmem:[%s1655 + $0x8] sm:$0xff]
        %v1658 = vld [vmem:[%s1655 + $0x10] sm:$0xff]
        %v1659 = vld [vmem:[%s1655 + $0x18] sm:$0xff]
        %s1660 = scalar_lea.vmem %s6, 32
        %v1661 = vld [vmem:[%s1660] sm:$0xff]
        %v1662 = vld [vmem:[%s1660 + $0x8] sm:$0xff]
        %v1663 = vld [vmem:[%s1660 + $0x10] sm:$0xff]
        %v1664 = vld [vmem:[%s1660 + $0x18] sm:$0xff]
        %1666 = vset.pattern.permute.xlu0 0
        %1667 = vperm.xlu0 %1666, %v1661
        %v1668 = vpop.permute.xlu0 %1667
        %1671 = vset.pattern.permute.xlu0 0
        %1672 = vperm.xlu0 %1671, %v1662
        %v1673 = vpop.permute.xlu0 %1672
        %1676 = vset.pattern.permute.xlu0 0
        %1677 = vperm.xlu0 %1676, %v1663
        %v1678 = vpop.permute.xlu0 %1677
        %1681 = vset.pattern.permute.xlu0 0
        %1682 = vperm.xlu0 %1681, %v1664
        %v1683 = vpop.permute.xlu0 %1682
        %v1686 = vsel %vm309, %v1656, 0
        %v1689 = vsel %vm309, %v1657, 0
        %v1692 = vsel %vm309, %v1658, 0
        %v1695 = vsel %vm309, %v1659, 0
        %1697 = vmatpush.msra.mxu0 0.0
        %1698 = vmatpush.msra.mxu0 0.0
        %1699 = vmatpush.msra.mxu0 0.0
        %1700 = vmatpush.msra.mxu0 0.0
        %1701 = vmatpush.msra.mxu0 0.0
        %1702 = vmatpush.msra.mxu0 0.0
        %1703 = vmatpush.msra.mxu0 0.0
        %1704 = vmatpush.msra.mxu0 0.0
        %1705 = vmatpush.msra.mxu0 0.0
        %1706 = vmatpush.msra.mxu0 0.0
        %1707 = vmatpush.msra.mxu0 0.0
        %1708 = vmatpush.msra.mxu0 0.0
        %1709 = vmatpush.msra.mxu0 %v1653
        %1710 = vmatpush.msra.mxu0 %v1650
        %1711 = vmatpush.msra.mxu0 %v1647
        %1712 = vmatpush.msra.mxu0 %v1644
        %1713 = vmatmul.f32.gmra.mxu0 %v1686
        %v1714 = vpop.f32.mrf.mxu0
        %v1715 = vadd.f32 %v1668, %v1714
        %1716 = vmatmul.f32.gmra.mxu0 %v1689
        %v1717 = vpop.f32.mrf.mxu0
        %v1718 = vadd.f32 %v1673, %v1717
        %1719 = vmatmul.f32.gmra.mxu0 %v1692
        %v1720 = vpop.f32.mrf.mxu0
        %v1721 = vadd.f32 %v1678, %v1720
        %1722 = vmatmul.f32.gmra.mxu0 %v1695
        %v1723 = vpop.f32.mrf.mxu0
        %v1724 = vadd.f32 %v1683, %v1723
        %1725 = vdwg.mxu0
        %v1726 = vmax.f32 %v1715, 0.0
        %v1727 = vmax.f32 %v1718, 0.0
        %v1728 = vmax.f32 %v1721, 0.0
        %v1729 = vmax.f32 %v1724, 0.0
        %v1730 = vadd.f32 %v1037, %v1726
        %v1731 = vadd.f32 %v1038, %v1727
        %v1732 = vadd.f32 %v1039, %v1728
        %v1733 = vadd.f32 %v1040, %v1729
        %1734 = vst [vmem:[%s271 + $0x20] sm:$0xff] %v1730
        %1735 = vst [vmem:[%s271 + $0x28] sm:$0xff] %v1731
        %1736 = vst [vmem:[%s271 + $0x30] sm:$0xff] %v1732
        %1737 = vst [vmem:[%s271 + $0x38] sm:$0xff] %v1733
        %s1738 = scalar_lea.vmem %s3, 80
        %v1739 = vld [vmem:[%s1738] sm:$0xff]
        %v1740 = vld [vmem:[%s1738 + $0x8] sm:$0xff]
        %v1741 = vld [vmem:[%s1738 + $0x10] sm:$0xff]
        %v1742 = vld [vmem:[%s1738 + $0x18] sm:$0xff]
        %v1743 = vld [vmem:[%s1738 + $0x20] sm:$0xff]
        %s1744 = scalar_lea.vmem %s4, 80
        %v1745 = vld [vmem:[%s1744] sm:$0xff]
        %v1746 = vld [vmem:[%s1744 + $0x8] sm:$0xff]
        %v1747 = vld [vmem:[%s1744 + $0x10] sm:$0xff]
        %v1748 = vld [vmem:[%s1744 + $0x18] sm:$0xff]
        %v1749 = vld [vmem:[%s1744 + $0x20] sm:$0xff]
        %1751 = vset.pattern.permute.xlu0 0
        %1752 = vperm.xlu0 %1751, %v1745
        %v1753 = vpop.permute.xlu0 %1752
        %1756 = vset.pattern.permute.xlu0 0
        %1757 = vperm.xlu0 %1756, %v1746
        %v1758 = vpop.permute.xlu0 %1757
        %1761 = vset.pattern.permute.xlu0 0
        %1762 = vperm.xlu0 %1761, %v1747
        %v1763 = vpop.permute.xlu0 %1762
        %1766 = vset.pattern.permute.xlu0 0
        %1767 = vperm.xlu0 %1766, %v1748
        %v1768 = vpop.permute.xlu0 %1767
        %1771 = vset.pattern.permute.xlu0 0
        %1772 = vperm.xlu0 %1771, %v1749
        %v1773 = vpop.permute.xlu0 %1772
        %v1776 = vsel %vm309, %v1739, 0
        %v1779 = vsel %vm309, %v1740, 0
        %v1782 = vsel %vm309, %v1741, 0
        %v1785 = vsel %vm309, %v1742, 0
        %v1788 = vsel %vm309, %v1743, 0
        %1790 = vmatpush.msra.mxu0 0.0
        %1791 = vmatpush.msra.mxu0 0.0
        %1792 = vmatpush.msra.mxu0 0.0
        %1793 = vmatpush.msra.mxu0 0.0
        %1794 = vmatpush.msra.mxu0 0.0
        %1795 = vmatpush.msra.mxu0 0.0
        %1796 = vmatpush.msra.mxu0 0.0
        %1797 = vmatpush.msra.mxu0 0.0
        %1798 = vmatpush.msra.mxu0 0.0
        %1799 = vmatpush.msra.mxu0 0.0
        %1800 = vmatpush.msra.mxu0 0.0
        %1801 = vmatpush.msra.mxu0 0.0
        %1802 = vmatpush.msra.mxu0 %v1733
        %1803 = vmatpush.msra.mxu0 %v1732
        %1804 = vmatpush.msra.mxu0 %v1731
        %1805 = vmatpush.msra.mxu0 %v1730
        %1806 = vmatmul.f32.gmra.mxu0 %v1776
        %v1807 = vpop.f32.mrf.mxu0
        %v1808 = vadd.f32 %v1753, %v1807
        %1809 = vmatmul.f32.gmra.mxu0 %v1779
        %v1810 = vpop.f32.mrf.mxu0
        %v1811 = vadd.f32 %v1758, %v1810
        %1812 = vmatmul.f32.gmra.mxu0 %v1782
        %v1813 = vpop.f32.mrf.mxu0
        %v1814 = vadd.f32 %v1763, %v1813
        %1815 = vmatmul.f32.gmra.mxu0 %v1785
        %v1816 = vpop.f32.mrf.mxu0
        %v1817 = vadd.f32 %v1768, %v1816
        %1818 = vmatmul.f32.gmra.mxu0 %v1788
        %v1819 = vpop.f32.mrf.mxu0
        %v1820 = vadd.f32 %v1773, %v1819
        %1821 = vdwg.mxu0
        %1822 = vxpose.xlu0.b32.start [1/16] %v1808, 128
        %1823 = vxpose.xlu0.b32.cont [2/16] 0.0, 128
        %1824 = vxpose.xlu0.b32.cont [3/16] 0.0, 128
        %1825 = vxpose.xlu0.b32.cont [4/16] 0.0, 128
        %1826 = vxpose.xlu0.b32.cont [5/16] 0.0, 128
        %1827 = vxpose.xlu0.b32.cont [6/16] 0.0, 128
        %1828 = vxpose.xlu0.b32.cont [7/16] 0.0, 128
        %1829 = vxpose.xlu0.b32.cont [8/16] 0.0, 128
        %1830 = vxpose.xlu0.b32.cont [9/16] 0.0, 128
        %1831 = vxpose.xlu0.b32.cont [10/16] 0.0, 128
        %1832 = vxpose.xlu0.b32.cont [11/16] 0.0, 128
        %1833 = vxpose.xlu0.b32.cont [12/16] 0.0, 128
        %1834 = vxpose.xlu0.b32.cont [13/16] 0.0, 128
        %1835 = vxpose.xlu0.b32.cont [14/16] 0.0, 128
        %1836 = vxpose.xlu0.b32.cont [15/16] 0.0, 128
        %1837 = vxpose.xlu0.b32.end [16/16] 0.0, 128
        %v1838 = vpop.trf.xlu0
        %v1839 = vpop.trf.xlu0
        %v1840 = vpop.trf.xlu0
        %v1841 = vpop.trf.xlu0
        %v1842 = vpop.trf.xlu0
        %v1843 = vpop.trf.xlu0
        %v1844 = vpop.trf.xlu0
        %v1845 = vpop.trf.xlu0
        %v1846 = vpop.trf.xlu0
        %v1847 = vpop.trf.xlu0
        %v1848 = vpop.trf.xlu0
        %v1849 = vpop.trf.xlu0
        %v1850 = vpop.trf.xlu0
        %v1851 = vpop.trf.xlu0
        %v1852 = vpop.trf.xlu0
        %v1853 = vpop.trf.xlu0
        %v1855 = vsel %vm469, %v1838, 0
        %v1858 = vsel %vm469, %v1839, 0
        %v1861 = vsel %vm469, %v1840, 0
        %v1864 = vsel %vm469, %v1841, 0
        %v1867 = vsel %vm469, %v1842, 0
        %v1870 = vsel %vm469, %v1843, 0
        %v1873 = vsel %vm469, %v1844, 0
        %v1876 = vsel %vm469, %v1845, 0
        %v1879 = vsel %vm469, %v1846, 0
        %v1882 = vsel %vm469, %v1847, 0
        %v1885 = vsel %vm469, %v1848, 0
        %v1888 = vsel %vm469, %v1849, 0
        %v1891 = vsel %vm469, %v1850, 0
        %v1894 = vsel %vm469, %v1851, 0
        %v1897 = vsel %vm469, %v1852, 0
        %v1900 = vsel %vm469, %v1853, 0
        %1902 = vmatpush.msra.mxu0 0.0
        %1903 = vmatpush.msra.mxu0 0.0
        %1904 = vmatpush.msra.mxu0 0.0
        %1905 = vmatpush.msra.mxu0 0.0
        %1906 = vmatpush.msra.mxu0 0.0
        %1907 = vmatpush.msra.mxu0 0.0
        %1908 = vmatpush.msra.mxu0 0.0
        %1909 = vmatpush.msra.mxu0 0.0
        %1910 = vmatpush.msra.mxu0 0.0
        %1911 = vmatpush.msra.mxu0 0.0
        %1912 = vmatpush.msra.mxu0 0.0
        %1913 = vmatpush.msra.mxu0 0.0
        %1914 = vmatpush.msra.mxu0 0.0
        %1915 = vmatpush.msra.mxu0 0.0
        %1916 = vmatpush.msra.mxu0 0.0
        %1917 = vmatpush.msra.mxu0 %v1808
        %1918 = vmatmul.f32.gmra.mxu0 %v1855
        %v1919 = vpop.f32.mrf.mxu0
        %v1920 = vadd.f32 0.0, %v1919
        %1921 = vmatmul.f32.gmra.mxu0 %v1858
        %v1922 = vpop.f32.mrf.mxu0
        %v1923 = vadd.f32 0.0, %v1922
        %1924 = vmatmul.f32.gmra.mxu0 %v1861
        %v1925 = vpop.f32.mrf.mxu0
        %v1926 = vadd.f32 0.0, %v1925
        %1927 = vmatmul.f32.gmra.mxu0 %v1864
        %v1928 = vpop.f32.mrf.mxu0
        %v1929 = vadd.f32 0.0, %v1928
        %1930 = vmatmul.f32.gmra.mxu0 %v1867
        %v1931 = vpop.f32.mrf.mxu0
        %v1932 = vadd.f32 0.0, %v1931
        %1933 = vmatmul.f32.gmra.mxu0 %v1870
        %v1934 = vpop.f32.mrf.mxu0
        %v1935 = vadd.f32 0.0, %v1934
        %1936 = vmatmul.f32.gmra.mxu0 %v1873
        %v1937 = vpop.f32.mrf.mxu0
        %v1938 = vadd.f32 0.0, %v1937
        %1939 = vmatmul.f32.gmra.mxu0 %v1876
        %v1940 = vpop.f32.mrf.mxu0
        %v1941 = vadd.f32 0.0, %v1940
        %1942 = vmatmul.f32.gmra.mxu0 %v1879
        %v1943 = vpop.f32.mrf.mxu0
        %v1944 = vadd.f32 0.0, %v1943
        %1945 = vmatmul.f32.gmra.mxu0 %v1882
        %v1946 = vpop.f32.mrf.mxu0
        %v1947 = vadd.f32 0.0, %v1946
        %1948 = vmatmul.f32.gmra.mxu0 %v1885
        %v1949 = vpop.f32.mrf.mxu0
        %v1950 = vadd.f32 0.0, %v1949
        %1951 = vmatmul.f32.gmra.mxu0 %v1888
        %v1952 = vpop.f32.mrf.mxu0
        %v1953 = vadd.f32 0.0, %v1952
        %1954 = vmatmul.f32.gmra.mxu0 %v1891
        %v1955 = vpop.f32.mrf.mxu0
        %v1956 = vadd.f32 0.0, %v1955
        %1957 = vmatmul.f32.gmra.mxu0 %v1894
        %v1958 = vpop.f32.mrf.mxu0
        %v1959 = vadd.f32 0.0, %v1958
        %1960 = vmatmul.f32.gmra.mxu0 %v1897
        %v1961 = vpop.f32.mrf.mxu0
        %v1962 = vadd.f32 0.0, %v1961
        %1963 = vmatmul.f32.gmra.mxu0 %v1900
        %v1964 = vpop.f32.mrf.mxu0
        %v1965 = vadd.f32 0.0, %v1964
        %1966 = vdwg.mxu0
        %1967 = vmax.xlane.f32.xlu0 %v1920
        %v1968 = vpop.xlane.xlu0 %1967
        %1969 = vmax.xlane.f32.xlu0 %v1923
        %v1970 = vpop.xlane.xlu0 %1969
        %1971 = vmax.xlane.f32.xlu0 %v1926
        %v1972 = vpop.xlane.xlu0 %1971
        %1973 = vmax.xlane.f32.xlu0 %v1929
        %v1974 = vpop.xlane.xlu0 %1973
        %1975 = vmax.xlane.f32.xlu0 %v1932
        %v1976 = vpop.xlane.xlu0 %1975
        %1977 = vmax.xlane.f32.xlu0 %v1935
        %v1978 = vpop.xlane.xlu0 %1977
        %1979 = vmax.xlane.f32.xlu0 %v1938
        %v1980 = vpop.xlane.xlu0 %1979
        %1981 = vmax.xlane.f32.xlu0 %v1941
        %v1982 = vpop.xlane.xlu0 %1981
        %1983 = vmax.xlane.f32.xlu0 %v1944
        %v1984 = vpop.xlane.xlu0 %1983
        %1985 = vmax.xlane.f32.xlu0 %v1947
        %v1986 = vpop.xlane.xlu0 %1985
        %1987 = vmax.xlane.f32.xlu0 %v1950
        %v1988 = vpop.xlane.xlu0 %1987
        %1989 = vmax.xlane.f32.xlu0 %v1953
        %v1990 = vpop.xlane.xlu0 %1989
        %1991 = vmax.xlane.f32.xlu0 %v1956
        %v1992 = vpop.xlane.xlu0 %1991
        %1993 = vmax.xlane.f32.xlu0 %v1959
        %v1994 = vpop.xlane.xlu0 %1993
        %1995 = vmax.xlane.f32.xlu0 %v1962
        %v1996 = vpop.xlane.xlu0 %1995
        %1997 = vmax.xlane.f32.xlu0 %v1965
        %v1998 = vpop.xlane.xlu0 %1997
        %v1999 = vsub.f32 %v1920, %v1968
        %v2000 = vsub.f32 %v1923, %v1970
        %v2001 = vsub.f32 %v1926, %v1972
        %v2002 = vsub.f32 %v1929, %v1974
        %v2003 = vsub.f32 %v1932, %v1976
        %v2004 = vsub.f32 %v1935, %v1978
        %v2005 = vsub.f32 %v1938, %v1980
        %v2006 = vsub.f32 %v1941, %v1982
        %v2007 = vsub.f32 %v1944, %v1984
        %v2008 = vsub.f32 %v1947, %v1986
        %v2009 = vsub.f32 %v1950, %v1988
        %v2010 = vsub.f32 %v1953, %v1990
        %v2011 = vsub.f32 %v1956, %v1992
        %v2012 = vsub.f32 %v1959, %v1994
        %v2013 = vsub.f32 %v1962, %v1996
        %v2014 = vsub.f32 %v1965, %v1998
        %v2015 = vmul.f32 %v1999, 1.442695
        %v2016 = vpow.pop %v2015
        %v2017 = vmul.f32 %v2000, 1.442695
        %v2018 = vpow.pop %v2017
        %v2019 = vmul.f32 %v2001, 1.442695
        %v2020 = vpow.pop %v2019
        %v2021 = vmul.f32 %v2002, 1.442695
        %v2022 = vpow.pop %v2021
        %v2023 = vmul.f32 %v2003, 1.442695
        %v2024 = vpow.pop %v2023
        %v2025 = vmul.f32 %v2004, 1.442695
        %v2026 = vpow.pop %v2025
        %v2027 = vmul.f32 %v2005, 1.442695
        %v2028 = vpow.pop %v2027
        %v2029 = vmul.f32 %v2006, 1.442695
        %v2030 = vpow.pop %v2029
        %v2031 = vmul.f32 %v2007, 1.442695
        %v2032 = vpow.pop %v2031
        %v2033 = vmul.f32 %v2008, 1.442695
        %v2034 = vpow.pop %v2033
        %v2035 = vmul.f32 %v2009, 1.442695
        %v2036 = vpow.pop %v2035
        %v2037 = vmul.f32 %v2010, 1.442695
        %v2038 = vpow.pop %v2037
        %v2039 = vmul.f32 %v2011, 1.442695
        %v2040 = vpow.pop %v2039
        %v2041 = vmul.f32 %v2012, 1.442695
        %v2042 = vpow.pop %v2041
        %v2043 = vmul.f32 %v2013, 1.442695
        %v2044 = vpow.pop %v2043
        %v2045 = vmul.f32 %v2014, 1.442695
        %v2046 = vpow.pop %v2045
        %2047 = vadd.xlane.f32.xlu0 %v2016
        %v2048 = vpop.xlane.xlu0 %2047
        %2049 = vadd.xlane.f32.xlu0 %v2018
        %v2050 = vpop.xlane.xlu0 %2049
        %2051 = vadd.xlane.f32.xlu0 %v2020
        %v2052 = vpop.xlane.xlu0 %2051
        %2053 = vadd.xlane.f32.xlu0 %v2022
        %v2054 = vpop.xlane.xlu0 %2053
        %2055 = vadd.xlane.f32.xlu0 %v2024
        %v2056 = vpop.xlane.xlu0 %2055
        %2057 = vadd.xlane.f32.xlu0 %v2026
        %v2058 = vpop.xlane.xlu0 %2057
        %2059 = vadd.xlane.f32.xlu0 %v2028
        %v2060 = vpop.xlane.xlu0 %2059
        %2061 = vadd.xlane.f32.xlu0 %v2030
        %v2062 = vpop.xlane.xlu0 %2061
        %2063 = vadd.xlane.f32.xlu0 %v2032
        %v2064 = vpop.xlane.xlu0 %2063
        %2065 = vadd.xlane.f32.xlu0 %v2034
        %v2066 = vpop.xlane.xlu0 %2065
        %2067 = vadd.xlane.f32.xlu0 %v2036
        %v2068 = vpop.xlane.xlu0 %2067
        %2069 = vadd.xlane.f32.xlu0 %v2038
        %v2070 = vpop.xlane.xlu0 %2069
        %2071 = vadd.xlane.f32.xlu0 %v2040
        %v2072 = vpop.xlane.xlu0 %2071
        %2073 = vadd.xlane.f32.xlu0 %v2042
        %v2074 = vpop.xlane.xlu0 %2073
        %2075 = vadd.xlane.f32.xlu0 %v2044
        %v2076 = vpop.xlane.xlu0 %2075
        %2077 = vadd.xlane.f32.xlu0 %v2046
        %v2078 = vpop.xlane.xlu0 %2077
        %v2079 = vrcp.pop %v2048
        %v2080 = vmul.f32 %v2048, %v2079
        %v2081 = vsub.f32 1.0, %v2080
        %v2082 = vmul.f32 %v2079, %v2081
        %v2083 = vadd.f32 %v2079, %v2082
        %vm2084 = vweird.f32 %v2048
        %vm2085 = vweird.f32 %v2079
        %vm2086 = vmor %vm2084, %vm2085
        %v2087 = vsel %vm2086, %v2079, %v2083
        %v2088 = vand.u32 2147483647, %v2048
        %vm2089 = vcmp.eq.f32.partialorder %v2088, 8.507059e+37
        %v2090 = vand.u32 %v2048, 2147483648
        %v2091 = vor.u32 1.1754944e-38, %v2090
        %v2092 = vsel %vm2089, %v2091, %v2087
        %v2093 = vrcp.pop %v2050
        %v2094 = vmul.f32 %v2050, %v2093
        %v2095 = vsub.f32 1.0, %v2094
        %v2096 = vmul.f32 %v2093, %v2095
        %v2097 = vadd.f32 %v2093, %v2096
        %vm2098 = vweird.f32 %v2050
        %vm2099 = vweird.f32 %v2093
        %vm2100 = vmor %vm2098, %vm2099
        %v2101 = vsel %vm2100, %v2093, %v2097
        %v2102 = vand.u32 2147483647, %v2050
        %vm2103 = vcmp.eq.f32.partialorder %v2102, 8.507059e+37
        %v2104 = vand.u32 %v2050, 2147483648
        %v2105 = vor.u32 1.1754944e-38, %v2104
        %v2106 = vsel %vm2103, %v2105, %v2101
        %v2107 = vrcp.pop %v2052
        %v2108 = vmul.f32 %v2052, %v2107
        %v2109 = vsub.f32 1.0, %v2108
        %v2110 = vmul.f32 %v2107, %v2109
        %v2111 = vadd.f32 %v2107, %v2110
        %vm2112 = vweird.f32 %v2052
        %vm2113 = vweird.f32 %v2107
        %vm2114 = vmor %vm2112, %vm2113
        %v2115 = vsel %vm2114, %v2107, %v2111
        %v2116 = vand.u32 2147483647, %v2052
        %vm2117 = vcmp.eq.f32.partialorder %v2116, 8.507059e+37
        %v2118 = vand.u32 %v2052, 2147483648
        %v2119 = vor.u32 1.1754944e-38, %v2118
        %v2120 = vsel %vm2117, %v2119, %v2115
        %v2121 = vrcp.pop %v2054
        %v2122 = vmul.f32 %v2054, %v2121
        %v2123 = vsub.f32 1.0, %v2122
        %v2124 = vmul.f32 %v2121, %v2123
        %v2125 = vadd.f32 %v2121, %v2124
        %vm2126 = vweird.f32 %v2054
        %vm2127 = vweird.f32 %v2121
        %vm2128 = vmor %vm2126, %vm2127
        %v2129 = vsel %vm2128, %v2121, %v2125
        %v2130 = vand.u32 2147483647, %v2054
        %vm2131 = vcmp.eq.f32.partialorder %v2130, 8.507059e+37
        %v2132 = vand.u32 %v2054, 2147483648
        %v2133 = vor.u32 1.1754944e-38, %v2132
        %v2134 = vsel %vm2131, %v2133, %v2129
        %v2135 = vrcp.pop %v2056
        %v2136 = vmul.f32 %v2056, %v2135
        %v2137 = vsub.f32 1.0, %v2136
        %v2138 = vmul.f32 %v2135, %v2137
        %v2139 = vadd.f32 %v2135, %v2138
        %vm2140 = vweird.f32 %v2056
        %vm2141 = vweird.f32 %v2135
        %vm2142 = vmor %vm2140, %vm2141
        %v2143 = vsel %vm2142, %v2135, %v2139
        %v2144 = vand.u32 2147483647, %v2056
        %vm2145 = vcmp.eq.f32.partialorder %v2144, 8.507059e+37
        %v2146 = vand.u32 %v2056, 2147483648
        %v2147 = vor.u32 1.1754944e-38, %v2146
        %v2148 = vsel %vm2145, %v2147, %v2143
        %v2149 = vrcp.pop %v2058
        %v2150 = vmul.f32 %v2058, %v2149
        %v2151 = vsub.f32 1.0, %v2150
        %v2152 = vmul.f32 %v2149, %v2151
        %v2153 = vadd.f32 %v2149, %v2152
        %vm2154 = vweird.f32 %v2058
        %vm2155 = vweird.f32 %v2149
        %vm2156 = vmor %vm2154, %vm2155
        %v2157 = vsel %vm2156, %v2149, %v2153
        %v2158 = vand.u32 2147483647, %v2058
        %vm2159 = vcmp.eq.f32.partialorder %v2158, 8.507059e+37
        %v2160 = vand.u32 %v2058, 2147483648
        %v2161 = vor.u32 1.1754944e-38, %v2160
        %v2162 = vsel %vm2159, %v2161, %v2157
        %v2163 = vrcp.pop %v2060
        %v2164 = vmul.f32 %v2060, %v2163
        %v2165 = vsub.f32 1.0, %v2164
        %v2166 = vmul.f32 %v2163, %v2165
        %v2167 = vadd.f32 %v2163, %v2166
        %vm2168 = vweird.f32 %v2060
        %vm2169 = vweird.f32 %v2163
        %vm2170 = vmor %vm2168, %vm2169
        %v2171 = vsel %vm2170, %v2163, %v2167
        %v2172 = vand.u32 2147483647, %v2060
        %vm2173 = vcmp.eq.f32.partialorder %v2172, 8.507059e+37
        %v2174 = vand.u32 %v2060, 2147483648
        %v2175 = vor.u32 1.1754944e-38, %v2174
        %v2176 = vsel %vm2173, %v2175, %v2171
        %v2177 = vrcp.pop %v2062
        %v2178 = vmul.f32 %v2062, %v2177
        %v2179 = vsub.f32 1.0, %v2178
        %v2180 = vmul.f32 %v2177, %v2179
        %v2181 = vadd.f32 %v2177, %v2180
        %vm2182 = vweird.f32 %v2062
        %vm2183 = vweird.f32 %v2177
        %vm2184 = vmor %vm2182, %vm2183
        %v2185 = vsel %vm2184, %v2177, %v2181
        %v2186 = vand.u32 2147483647, %v2062
        %vm2187 = vcmp.eq.f32.partialorder %v2186, 8.507059e+37
        %v2188 = vand.u32 %v2062, 2147483648
        %v2189 = vor.u32 1.1754944e-38, %v2188
        %v2190 = vsel %vm2187, %v2189, %v2185
        %v2191 = vrcp.pop %v2064
        %v2192 = vmul.f32 %v2064, %v2191
        %v2193 = vsub.f32 1.0, %v2192
        %v2194 = vmul.f32 %v2191, %v2193
        %v2195 = vadd.f32 %v2191, %v2194
        %vm2196 = vweird.f32 %v2064
        %vm2197 = vweird.f32 %v2191
        %vm2198 = vmor %vm2196, %vm2197
        %v2199 = vsel %vm2198, %v2191, %v2195
        %v2200 = vand.u32 2147483647, %v2064
        %vm2201 = vcmp.eq.f32.partialorder %v2200, 8.507059e+37
        %v2202 = vand.u32 %v2064, 2147483648
        %v2203 = vor.u32 1.1754944e-38, %v2202
        %v2204 = vsel %vm2201, %v2203, %v2199
        %v2205 = vrcp.pop %v2066
        %v2206 = vmul.f32 %v2066, %v2205
        %v2207 = vsub.f32 1.0, %v2206
        %v2208 = vmul.f32 %v2205, %v2207
        %v2209 = vadd.f32 %v2205, %v2208
        %vm2210 = vweird.f32 %v2066
        %vm2211 = vweird.f32 %v2205
        %vm2212 = vmor %vm2210, %vm2211
        %v2213 = vsel %vm2212, %v2205, %v2209
        %v2214 = vand.u32 2147483647, %v2066
        %vm2215 = vcmp.eq.f32.partialorder %v2214, 8.507059e+37
        %v2216 = vand.u32 %v2066, 2147483648
        %v2217 = vor.u32 1.1754944e-38, %v2216
        %v2218 = vsel %vm2215, %v2217, %v2213
        %v2219 = vrcp.pop %v2068
        %v2220 = vmul.f32 %v2068, %v2219
        %v2221 = vsub.f32 1.0, %v2220
        %v2222 = vmul.f32 %v2219, %v2221
        %v2223 = vadd.f32 %v2219, %v2222
        %vm2224 = vweird.f32 %v2068
        %vm2225 = vweird.f32 %v2219
        %vm2226 = vmor %vm2224, %vm2225
        %v2227 = vsel %vm2226, %v2219, %v2223
        %v2228 = vand.u32 2147483647, %v2068
        %vm2229 = vcmp.eq.f32.partialorder %v2228, 8.507059e+37
        %v2230 = vand.u32 %v2068, 2147483648
        %v2231 = vor.u32 1.1754944e-38, %v2230
        %v2232 = vsel %vm2229, %v2231, %v2227
        %v2233 = vrcp.pop %v2070
        %v2234 = vmul.f32 %v2070, %v2233
        %v2235 = vsub.f32 1.0, %v2234
        %v2236 = vmul.f32 %v2233, %v2235
        %v2237 = vadd.f32 %v2233, %v2236
        %vm2238 = vweird.f32 %v2070
        %vm2239 = vweird.f32 %v2233
        %vm2240 = vmor %vm2238, %vm2239
        %v2241 = vsel %vm2240, %v2233, %v2237
        %v2242 = vand.u32 2147483647, %v2070
        %vm2243 = vcmp.eq.f32.partialorder %v2242, 8.507059e+37
        %v2244 = vand.u32 %v2070, 2147483648
        %v2245 = vor.u32 1.1754944e-38, %v2244
        %v2246 = vsel %vm2243, %v2245, %v2241
        %v2247 = vrcp.pop %v2072
        %v2248 = vmul.f32 %v2072, %v2247
        %v2249 = vsub.f32 1.0, %v2248
        %v2250 = vmul.f32 %v2247, %v2249
        %v2251 = vadd.f32 %v2247, %v2250
        %vm2252 = vweird.f32 %v2072
        %vm2253 = vweird.f32 %v2247
        %vm2254 = vmor %vm2252, %vm2253
        %v2255 = vsel %vm2254, %v2247, %v2251
        %v2256 = vand.u32 2147483647, %v2072
        %vm2257 = vcmp.eq.f32.partialorder %v2256, 8.507059e+37
        %v2258 = vand.u32 %v2072, 2147483648
        %v2259 = vor.u32 1.1754944e-38, %v2258
        %v2260 = vsel %vm2257, %v2259, %v2255
        %v2261 = vrcp.pop %v2074
        %v2262 = vmul.f32 %v2074, %v2261
        %v2263 = vsub.f32 1.0, %v2262
        %v2264 = vmul.f32 %v2261, %v2263
        %v2265 = vadd.f32 %v2261, %v2264
        %vm2266 = vweird.f32 %v2074
        %vm2267 = vweird.f32 %v2261
        %vm2268 = vmor %vm2266, %vm2267
        %v2269 = vsel %vm2268, %v2261, %v2265
        %v2270 = vand.u32 2147483647, %v2074
        %vm2271 = vcmp.eq.f32.partialorder %v2270, 8.507059e+37
        %v2272 = vand.u32 %v2074, 2147483648
        %v2273 = vor.u32 1.1754944e-38, %v2272
        %v2274 = vsel %vm2271, %v2273, %v2269
        %v2275 = vrcp.pop %v2076
        %v2276 = vmul.f32 %v2076, %v2275
        %v2277 = vsub.f32 1.0, %v2276
        %v2278 = vmul.f32 %v2275, %v2277
        %v2279 = vadd.f32 %v2275, %v2278
        %vm2280 = vweird.f32 %v2076
        %vm2281 = vweird.f32 %v2275
        %vm2282 = vmor %vm2280, %vm2281
        %v2283 = vsel %vm2282, %v2275, %v2279
        %v2284 = vand.u32 2147483647, %v2076
        %vm2285 = vcmp.eq.f32.partialorder %v2284, 8.507059e+37
        %v2286 = vand.u32 %v2076, 2147483648
        %v2287 = vor.u32 1.1754944e-38, %v2286
        %v2288 = vsel %vm2285, %v2287, %v2283
        %v2289 = vrcp.pop %v2078
        %v2290 = vmul.f32 %v2078, %v2289
        %v2291 = vsub.f32 1.0, %v2290
        %v2292 = vmul.f32 %v2289, %v2291
        %v2293 = vadd.f32 %v2289, %v2292
        %vm2294 = vweird.f32 %v2078
        %vm2295 = vweird.f32 %v2289
        %vm2296 = vmor %vm2294, %vm2295
        %v2297 = vsel %vm2296, %v2289, %v2293
        %v2298 = vand.u32 2147483647, %v2078
        %vm2299 = vcmp.eq.f32.partialorder %v2298, 8.507059e+37
        %v2300 = vand.u32 %v2078, 2147483648
        %v2301 = vor.u32 1.1754944e-38, %v2300
        %v2302 = vsel %vm2299, %v2301, %v2297
        %v2303 = vmul.f32 %v2016, %v2092
        %v2304 = vmul.f32 %v2018, %v2106
        %v2305 = vmul.f32 %v2020, %v2120
        %v2306 = vmul.f32 %v2022, %v2134
        %v2307 = vmul.f32 %v2024, %v2148
        %v2308 = vmul.f32 %v2026, %v2162
        %v2309 = vmul.f32 %v2028, %v2176
        %v2310 = vmul.f32 %v2030, %v2190
        %v2311 = vmul.f32 %v2032, %v2204
        %v2312 = vmul.f32 %v2034, %v2218
        %v2313 = vmul.f32 %v2036, %v2232
        %v2314 = vmul.f32 %v2038, %v2246
        %v2315 = vmul.f32 %v2040, %v2260
        %v2316 = vmul.f32 %v2042, %v2274
        %v2317 = vmul.f32 %v2044, %v2288
        %v2318 = vmul.f32 %v2046, %v2302
        %2319 = vmatpush.msra.mxu0 %v2318
        %2320 = vmatpush.msra.mxu0 %v2317
        %2321 = vmatpush.msra.mxu0 %v2316
        %2322 = vmatpush.msra.mxu0 %v2315
        %2323 = vmatpush.msra.mxu0 %v2314
        %2324 = vmatpush.msra.mxu0 %v2313
        %2325 = vmatpush.msra.mxu0 %v2312
        %2326 = vmatpush.msra.mxu0 %v2311
        %2327 = vmatpush.msra.mxu0 %v2310
        %2328 = vmatpush.msra.mxu0 %v2309
        %2329 = vmatpush.msra.mxu0 %v2308
        %2330 = vmatpush.msra.mxu0 %v2307
        %2331 = vmatpush.msra.mxu0 %v2306
        %2332 = vmatpush.msra.mxu0 %v2305
        %2333 = vmatpush.msra.mxu0 %v2304
        %2334 = vmatpush.msra.mxu0 %v2303
        %2335 = vmatmul.f32.gmra.mxu0 %v1811
        %v2336 = vpop.f32.mrf.mxu0
        %v2337 = vadd.f32 0.0, %v2336
        %2338 = vmatmul.f32.gmra.mxu0 %v1814
        %v2339 = vpop.f32.mrf.mxu0
        %v2340 = vadd.f32 0.0, %v2339
        %2341 = vmatmul.f32.gmra.mxu0 %v1817
        %v2342 = vpop.f32.mrf.mxu0
        %v2343 = vadd.f32 0.0, %v2342
        %2344 = vmatmul.f32.gmra.mxu0 %v1820
        %v2345 = vpop.f32.mrf.mxu0
        %v2346 = vadd.f32 0.0, %v2345
        %2347 = vdwg.mxu0
        %s2348 = scalar_lea.vmem %s5, 64
        %v2349 = vld [vmem:[%s2348] sm:$0xff]
        %v2350 = vld [vmem:[%s2348 + $0x8] sm:$0xff]
        %v2351 = vld [vmem:[%s2348 + $0x10] sm:$0xff]
        %v2352 = vld [vmem:[%s2348 + $0x18] sm:$0xff]
        %s2353 = scalar_lea.vmem %s6, 64
        %v2354 = vld [vmem:[%s2353] sm:$0xff]
        %v2355 = vld [vmem:[%s2353 + $0x8] sm:$0xff]
        %v2356 = vld [vmem:[%s2353 + $0x10] sm:$0xff]
        %v2357 = vld [vmem:[%s2353 + $0x18] sm:$0xff]
        %2359 = vset.pattern.permute.xlu0 0
        %2360 = vperm.xlu0 %2359, %v2354
        %v2361 = vpop.permute.xlu0 %2360
        %2364 = vset.pattern.permute.xlu0 0
        %2365 = vperm.xlu0 %2364, %v2355
        %v2366 = vpop.permute.xlu0 %2365
        %2369 = vset.pattern.permute.xlu0 0
        %2370 = vperm.xlu0 %2369, %v2356
        %v2371 = vpop.permute.xlu0 %2370
        %2374 = vset.pattern.permute.xlu0 0
        %2375 = vperm.xlu0 %2374, %v2357
        %v2376 = vpop.permute.xlu0 %2375
        %v2379 = vsel %vm309, %v2349, 0
        %v2382 = vsel %vm309, %v2350, 0
        %v2385 = vsel %vm309, %v2351, 0
        %v2388 = vsel %vm309, %v2352, 0
        %2390 = vmatpush.msra.mxu0 0.0
        %2391 = vmatpush.msra.mxu0 0.0
        %2392 = vmatpush.msra.mxu0 0.0
        %2393 = vmatpush.msra.mxu0 0.0
        %2394 = vmatpush.msra.mxu0 0.0
        %2395 = vmatpush.msra.mxu0 0.0
        %2396 = vmatpush.msra.mxu0 0.0
        %2397 = vmatpush.msra.mxu0 0.0
        %2398 = vmatpush.msra.mxu0 0.0
        %2399 = vmatpush.msra.mxu0 0.0
        %2400 = vmatpush.msra.mxu0 0.0
        %2401 = vmatpush.msra.mxu0 0.0
        %2402 = vmatpush.msra.mxu0 %v2346
        %2403 = vmatpush.msra.mxu0 %v2343
        %2404 = vmatpush.msra.mxu0 %v2340
        %2405 = vmatpush.msra.mxu0 %v2337
        %2406 = vmatmul.f32.gmra.mxu0 %v2379
        %v2407 = vpop.f32.mrf.mxu0
        %v2408 = vadd.f32 %v2361, %v2407
        %2409 = vmatmul.f32.gmra.mxu0 %v2382
        %v2410 = vpop.f32.mrf.mxu0
        %v2411 = vadd.f32 %v2366, %v2410
        %2412 = vmatmul.f32.gmra.mxu0 %v2385
        %v2413 = vpop.f32.mrf.mxu0
        %v2414 = vadd.f32 %v2371, %v2413
        %2415 = vmatmul.f32.gmra.mxu0 %v2388
        %v2416 = vpop.f32.mrf.mxu0
        %v2417 = vadd.f32 %v2376, %v2416
        %2418 = vdwg.mxu0
        %v2419 = vmax.f32 %v2408, 0.0
        %v2420 = vmax.f32 %v2411, 0.0
        %v2421 = vmax.f32 %v2414, 0.0
        %v2422 = vmax.f32 %v2417, 0.0
        %v2423 = vadd.f32 %v1730, %v2419
        %v2424 = vadd.f32 %v1731, %v2420
        %v2425 = vadd.f32 %v1732, %v2421
        %v2426 = vadd.f32 %v1733, %v2422
        %2427 = vst [vmem:[%s271 + $0x40] sm:$0xff] %v2423
        %2428 = vst [vmem:[%s271 + $0x48] sm:$0xff] %v2424
        %2429 = vst [vmem:[%s271 + $0x50] sm:$0xff] %v2425
        %2430 = vst [vmem:[%s271 + $0x58] sm:$0xff] %v2426
        %s2431 = scalar_lea.vmem %s3, 120
        %v2432 = vld [vmem:[%s2431] sm:$0xff]
        %v2433 = vld [vmem:[%s2431 + $0x8] sm:$0xff]
        %v2434 = vld [vmem:[%s2431 + $0x10] sm:$0xff]
        %v2435 = vld [vmem:[%s2431 + $0x18] sm:$0xff]
        %v2436 = vld [vmem:[%s2431 + $0x20] sm:$0xff]
        %s2437 = scalar_lea.vmem %s4, 120
        %v2438 = vld [vmem:[%s2437] sm:$0xff]
        %v2439 = vld [vmem:[%s2437 + $0x8] sm:$0xff]
        %v2440 = vld [vmem:[%s2437 + $0x10] sm:$0xff]
        %v2441 = vld [vmem:[%s2437 + $0x18] sm:$0xff]
        %v2442 = vld [vmem:[%s2437 + $0x20] sm:$0xff]
        %2444 = vset.pattern.permute.xlu0 0
        %2445 = vperm.xlu0 %2444, %v2438
        %v2446 = vpop.permute.xlu0 %2445
        %2449 = vset.pattern.permute.xlu0 0
        %2450 = vperm.xlu0 %2449, %v2439
        %v2451 = vpop.permute.xlu0 %2450
        %2454 = vset.pattern.permute.xlu0 0
        %2455 = vperm.xlu0 %2454, %v2440
        %v2456 = vpop.permute.xlu0 %2455
        %2459 = vset.pattern.permute.xlu0 0
        %2460 = vperm.xlu0 %2459, %v2441
        %v2461 = vpop.permute.xlu0 %2460
        %2464 = vset.pattern.permute.xlu0 0
        %2465 = vperm.xlu0 %2464, %v2442
        %v2466 = vpop.permute.xlu0 %2465
        %v2469 = vsel %vm309, %v2432, 0
        %v2472 = vsel %vm309, %v2433, 0
        %v2475 = vsel %vm309, %v2434, 0
        %v2478 = vsel %vm309, %v2435, 0
        %v2481 = vsel %vm309, %v2436, 0
        %2483 = vmatpush.msra.mxu0 0.0
        %2484 = vmatpush.msra.mxu0 0.0
        %2485 = vmatpush.msra.mxu0 0.0
        %2486 = vmatpush.msra.mxu0 0.0
        %2487 = vmatpush.msra.mxu0 0.0
        %2488 = vmatpush.msra.mxu0 0.0
        %2489 = vmatpush.msra.mxu0 0.0
        %2490 = vmatpush.msra.mxu0 0.0
        %2491 = vmatpush.msra.mxu0 0.0
        %2492 = vmatpush.msra.mxu0 0.0
        %2493 = vmatpush.msra.mxu0 0.0
        %2494 = vmatpush.msra.mxu0 0.0
        %2495 = vmatpush.msra.mxu0 %v2426
        %2496 = vmatpush.msra.mxu0 %v2425
        %2497 = vmatpush.msra.mxu0 %v2424
        %2498 = vmatpush.msra.mxu0 %v2423
        %2499 = vmatmul.f32.gmra.mxu0 %v2469
        %v2500 = vpop.f32.mrf.mxu0
        %v2501 = vadd.f32 %v2446, %v2500
        %2502 = vmatmul.f32.gmra.mxu0 %v2472
        %v2503 = vpop.f32.mrf.mxu0
        %v2504 = vadd.f32 %v2451, %v2503
        %2505 = vmatmul.f32.gmra.mxu0 %v2475
        %v2506 = vpop.f32.mrf.mxu0
        %v2507 = vadd.f32 %v2456, %v2506
        %2508 = vmatmul.f32.gmra.mxu0 %v2478
        %v2509 = vpop.f32.mrf.mxu0
        %v2510 = vadd.f32 %v2461, %v2509
        %2511 = vmatmul.f32.gmra.mxu0 %v2481
        %v2512 = vpop.f32.mrf.mxu0
        %v2513 = vadd.f32 %v2466, %v2512
        %2514 = vdwg.mxu0
        %2515 = vxpose.xlu0.b32.start [1/16] %v2501, 128
        %2516 = vxpose.xlu0.b32.cont [2/16] 0.0, 128
        %2517 = vxpose.xlu0.b32.cont [3/16] 0.0, 128
        %2518 = vxpose.xlu0.b32.cont [4/16] 0.0, 128
        %2519 = vxpose.xlu0.b32.cont [5/16] 0.0, 128
        %2520 = vxpose.xlu0.b32.cont [6/16] 0.0, 128
        %2521 = vxpose.xlu0.b32.cont [7/16] 0.0, 128
        %2522 = vxpose.xlu0.b32.cont [8/16] 0.0, 128
        %2523 = vxpose.xlu0.b32.cont [9/16] 0.0, 128
        %2524 = vxpose.xlu0.b32.cont [10/16] 0.0, 128
        %2525 = vxpose.xlu0.b32.cont [11/16] 0.0, 128
        %2526 = vxpose.xlu0.b32.cont [12/16] 0.0, 128
        %2527 = vxpose.xlu0.b32.cont [13/16] 0.0, 128
        %2528 = vxpose.xlu0.b32.cont [14/16] 0.0, 128
        %2529 = vxpose.xlu0.b32.cont [15/16] 0.0, 128
        %2530 = vxpose.xlu0.b32.end [16/16] 0.0, 128
        %v2531 = vpop.trf.xlu0
        %v2532 = vpop.trf.xlu0
        %v2533 = vpop.trf.xlu0
        %v2534 = vpop.trf.xlu0
        %v2535 = vpop.trf.xlu0
        %v2536 = vpop.trf.xlu0
        %v2537 = vpop.trf.xlu0
        %v2538 = vpop.trf.xlu0
        %v2539 = vpop.trf.xlu0
        %v2540 = vpop.trf.xlu0
        %v2541 = vpop.trf.xlu0
        %v2542 = vpop.trf.xlu0
        %v2543 = vpop.trf.xlu0
        %v2544 = vpop.trf.xlu0
        %v2545 = vpop.trf.xlu0
        %v2546 = vpop.trf.xlu0
        %v2548 = vsel %vm469, %v2531, 0
        %v2551 = vsel %vm469, %v2532, 0
        %v2554 = vsel %vm469, %v2533, 0
        %v2557 = vsel %vm469, %v2534, 0
        %v2560 = vsel %vm469, %v2535, 0
        %v2563 = vsel %vm469, %v2536, 0
        %v2566 = vsel %vm469, %v2537, 0
        %v2569 = vsel %vm469, %v2538, 0
        %v2572 = vsel %vm469, %v2539, 0
        %v2575 = vsel %vm469, %v2540, 0
        %v2578 = vsel %vm469, %v2541, 0
        %v2581 = vsel %vm469, %v2542, 0
        %v2584 = vsel %vm469, %v2543, 0
        %v2587 = vsel %vm469, %v2544, 0
        %v2590 = vsel %vm469, %v2545, 0
        %v2593 = vsel %vm469, %v2546, 0
        %2595 = vmatpush.msra.mxu0 0.0
        %2596 = vmatpush.msra.mxu0 0.0
        %2597 = vmatpush.msra.mxu0 0.0
        %2598 = vmatpush.msra.mxu0 0.0
        %2599 = vmatpush.msra.mxu0 0.0
        %2600 = vmatpush.msra.mxu0 0.0
        %2601 = vmatpush.msra.mxu0 0.0
        %2602 = vmatpush.msra.mxu0 0.0
        %2603 = vmatpush.msra.mxu0 0.0
        %2604 = vmatpush.msra.mxu0 0.0
        %2605 = vmatpush.msra.mxu0 0.0
        %2606 = vmatpush.msra.mxu0 0.0
        %2607 = vmatpush.msra.mxu0 0.0
        %2608 = vmatpush.msra.mxu0 0.0
        %2609 = vmatpush.msra.mxu0 0.0
        %2610 = vmatpush.msra.mxu0 %v2501
        %2611 = vmatmul.f32.gmra.mxu0 %v2548
        %v2612 = vpop.f32.mrf.mxu0
        %v2613 = vadd.f32 0.0, %v2612
        %2614 = vmatmul.f32.gmra.mxu0 %v2551
        %v2615 = vpop.f32.mrf.mxu0
        %v2616 = vadd.f32 0.0, %v2615
        %2617 = vmatmul.f32.gmra.mxu0 %v2554
        %v2618 = vpop.f32.mrf.mxu0
        %v2619 = vadd.f32 0.0, %v2618
        %2620 = vmatmul.f32.gmra.mxu0 %v2557
        %v2621 = vpop.f32.mrf.mxu0
        %v2622 = vadd.f32 0.0, %v2621
        %2623 = vmatmul.f32.gmra.mxu0 %v2560
        %v2624 = vpop.f32.mrf.mxu0
        %v2625 = vadd.f32 0.0, %v2624
        %2626 = vmatmul.f32.gmra.mxu0 %v2563
        %v2627 = vpop.f32.mrf.mxu0
        %v2628 = vadd.f32 0.0, %v2627
        %2629 = vmatmul.f32.gmra.mxu0 %v2566
        %v2630 = vpop.f32.mrf.mxu0
        %v2631 = vadd.f32 0.0, %v2630
        %2632 = vmatmul.f32.gmra.mxu0 %v2569
        %v2633 = vpop.f32.mrf.mxu0
        %v2634 = vadd.f32 0.0, %v2633
        %2635 = vmatmul.f32.gmra.mxu0 %v2572
        %v2636 = vpop.f32.mrf.mxu0
        %v2637 = vadd.f32 0.0, %v2636
        %2638 = vmatmul.f32.gmra.mxu0 %v2575
        %v2639 = vpop.f32.mrf.mxu0
        %v2640 = vadd.f32 0.0, %v2639
        %2641 = vmatmul.f32.gmra.mxu0 %v2578
        %v2642 = vpop.f32.mrf.mxu0
        %v2643 = vadd.f32 0.0, %v2642
        %2644 = vmatmul.f32.gmra.mxu0 %v2581
        %v2645 = vpop.f32.mrf.mxu0
        %v2646 = vadd.f32 0.0, %v2645
        %2647 = vmatmul.f32.gmra.mxu0 %v2584
        %v2648 = vpop.f32.mrf.mxu0
        %v2649 = vadd.f32 0.0, %v2648
        %2650 = vmatmul.f32.gmra.mxu0 %v2587
        %v2651 = vpop.f32.mrf.mxu0
        %v2652 = vadd.f32 0.0, %v2651
        %2653 = vmatmul.f32.gmra.mxu0 %v2590
        %v2654 = vpop.f32.mrf.mxu0
        %v2655 = vadd.f32 0.0, %v2654
        %2656 = vmatmul.f32.gmra.mxu0 %v2593
        %v2657 = vpop.f32.mrf.mxu0
        %v2658 = vadd.f32 0.0, %v2657
        %2659 = vdwg.mxu0
        %2660 = vmax.xlane.f32.xlu0 %v2613
        %v2661 = vpop.xlane.xlu0 %2660
        %2662 = vmax.xlane.f32.xlu0 %v2616
        %v2663 = vpop.xlane.xlu0 %2662
        %2664 = vmax.xlane.f32.xlu0 %v2619
        %v2665 = vpop.xlane.xlu0 %2664
        %2666 = vmax.xlane.f32.xlu0 %v2622
        %v2667 = vpop.xlane.xlu0 %2666
        %2668 = vmax.xlane.f32.xlu0 %v2625
        %v2669 = vpop.xlane.xlu0 %2668
        %2670 = vmax.xlane.f32.xlu0 %v2628
        %v2671 = vpop.xlane.xlu0 %2670
        %2672 = vmax.xlane.f32.xlu0 %v2631
        %v2673 = vpop.xlane.xlu0 %2672
        %2674 = vmax.xlane.f32.xlu0 %v2634
        %v2675 = vpop.xlane.xlu0 %2674
        %2676 = vmax.xlane.f32.xlu0 %v2637
        %v2677 = vpop.xlane.xlu0 %2676
        %2678 = vmax.xlane.f32.xlu0 %v2640
        %v2679 = vpop.xlane.xlu0 %2678
        %2680 = vmax.xlane.f32.xlu0 %v2643
        %v2681 = vpop.xlane.xlu0 %2680
        %2682 = vmax.xlane.f32.xlu0 %v2646
        %v2683 = vpop.xlane.xlu0 %2682
        %2684 = vmax.xlane.f32.xlu0 %v2649
        %v2685 = vpop.xlane.xlu0 %2684
        %2686 = vmax.xlane.f32.xlu0 %v2652
        %v2687 = vpop.xlane.xlu0 %2686
        %2688 = vmax.xlane.f32.xlu0 %v2655
        %v2689 = vpop.xlane.xlu0 %2688
        %2690 = vmax.xlane.f32.xlu0 %v2658
        %v2691 = vpop.xlane.xlu0 %2690
        %v2692 = vsub.f32 %v2613, %v2661
        %v2693 = vsub.f32 %v2616, %v2663
        %v2694 = vsub.f32 %v2619, %v2665
        %v2695 = vsub.f32 %v2622, %v2667
        %v2696 = vsub.f32 %v2625, %v2669
        %v2697 = vsub.f32 %v2628, %v2671
        %v2698 = vsub.f32 %v2631, %v2673
        %v2699 = vsub.f32 %v2634, %v2675
        %v2700 = vsub.f32 %v2637, %v2677
        %v2701 = vsub.f32 %v2640, %v2679
        %v2702 = vsub.f32 %v2643, %v2681
        %v2703 = vsub.f32 %v2646, %v2683
        %v2704 = vsub.f32 %v2649, %v2685
        %v2705 = vsub.f32 %v2652, %v2687
        %v2706 = vsub.f32 %v2655, %v2689
        %v2707 = vsub.f32 %v2658, %v2691
        %v2708 = vmul.f32 %v2692, 1.442695
        %v2709 = vpow.pop %v2708
        %v2710 = vmul.f32 %v2693, 1.442695
        %v2711 = vpow.pop %v2710
        %v2712 = vmul.f32 %v2694, 1.442695
        %v2713 = vpow.pop %v2712
        %v2714 = vmul.f32 %v2695, 1.442695
        %v2715 = vpow.pop %v2714
        %v2716 = vmul.f32 %v2696, 1.442695
        %v2717 = vpow.pop %v2716
        %v2718 = vmul.f32 %v2697, 1.442695
        %v2719 = vpow.pop %v2718
        %v2720 = vmul.f32 %v2698, 1.442695
        %v2721 = vpow.pop %v2720
        %v2722 = vmul.f32 %v2699, 1.442695
        %v2723 = vpow.pop %v2722
        %v2724 = vmul.f32 %v2700, 1.442695
        %v2725 = vpow.pop %v2724
        %v2726 = vmul.f32 %v2701, 1.442695
        %v2727 = vpow.pop %v2726
        %v2728 = vmul.f32 %v2702, 1.442695
        %v2729 = vpow.pop %v2728
        %v2730 = vmul.f32 %v2703, 1.442695
        %v2731 = vpow.pop %v2730
        %v2732 = vmul.f32 %v2704, 1.442695
        %v2733 = vpow.pop %v2732
        %v2734 = vmul.f32 %v2705, 1.442695
        %v2735 = vpow.pop %v2734
        %v2736 = vmul.f32 %v2706, 1.442695
        %v2737 = vpow.pop %v2736
        %v2738 = vmul.f32 %v2707, 1.442695
        %v2739 = vpow.pop %v2738
        %2740 = vadd.xlane.f32.xlu0 %v2709
        %v2741 = vpop.xlane.xlu0 %2740
        %2742 = vadd.xlane.f32.xlu0 %v2711
        %v2743 = vpop.xlane.xlu0 %2742
        %2744 = vadd.xlane.f32.xlu0 %v2713
        %v2745 = vpop.xlane.xlu0 %2744
        %2746 = vadd.xlane.f32.xlu0 %v2715
        %v2747 = vpop.xlane.xlu0 %2746
        %2748 = vadd.xlane.f32.xlu0 %v2717
        %v2749 = vpop.xlane.xlu0 %2748
        %2750 = vadd.xlane.f32.xlu0 %v2719
        %v2751 = vpop.xlane.xlu0 %2750
        %2752 = vadd.xlane.f32.xlu0 %v2721
        %v2753 = vpop.xlane.xlu0 %2752
        %2754 = vadd.xlane.f32.xlu0 %v2723
        %v2755 = vpop.xlane.xlu0 %2754
        %2756 = vadd.xlane.f32.xlu0 %v2725
        %v2757 = vpop.xlane.xlu0 %2756
        %2758 = vadd.xlane.f32.xlu0 %v2727
        %v2759 = vpop.xlane.xlu0 %2758
        %2760 = vadd.xlane.f32.xlu0 %v2729
        %v2761 = vpop.xlane.xlu0 %2760
        %2762 = vadd.xlane.f32.xlu0 %v2731
        %v2763 = vpop.xlane.xlu0 %2762
        %2764 = vadd.xlane.f32.xlu0 %v2733
        %v2765 = vpop.xlane.xlu0 %2764
        %2766 = vadd.xlane.f32.xlu0 %v2735
        %v2767 = vpop.xlane.xlu0 %2766
        %2768 = vadd.xlane.f32.xlu0 %v2737
        %v2769 = vpop.xlane.xlu0 %2768
        %2770 = vadd.xlane.f32.xlu0 %v2739
        %v2771 = vpop.xlane.xlu0 %2770
        %v2772 = vrcp.pop %v2741
        %v2773 = vmul.f32 %v2741, %v2772
        %v2774 = vsub.f32 1.0, %v2773
        %v2775 = vmul.f32 %v2772, %v2774
        %v2776 = vadd.f32 %v2772, %v2775
        %vm2777 = vweird.f32 %v2741
        %vm2778 = vweird.f32 %v2772
        %vm2779 = vmor %vm2777, %vm2778
        %v2780 = vsel %vm2779, %v2772, %v2776
        %v2781 = vand.u32 2147483647, %v2741
        %vm2782 = vcmp.eq.f32.partialorder %v2781, 8.507059e+37
        %v2783 = vand.u32 %v2741, 2147483648
        %v2784 = vor.u32 1.1754944e-38, %v2783
        %v2785 = vsel %vm2782, %v2784, %v2780
        %v2786 = vrcp.pop %v2743
        %v2787 = vmul.f32 %v2743, %v2786
        %v2788 = vsub.f32 1.0, %v2787
        %v2789 = vmul.f32 %v2786, %v2788
        %v2790 = vadd.f32 %v2786, %v2789
        %vm2791 = vweird.f32 %v2743
        %vm2792 = vweird.f32 %v2786
        %vm2793 = vmor %vm2791, %vm2792
        %v2794 = vsel %vm2793, %v2786, %v2790
        %v2795 = vand.u32 2147483647, %v2743
        %vm2796 = vcmp.eq.f32.partialorder %v2795, 8.507059e+37
        %v2797 = vand.u32 %v2743, 2147483648
        %v2798 = vor.u32 1.1754944e-38, %v2797
        %v2799 = vsel %vm2796, %v2798, %v2794
        %v2800 = vrcp.pop %v2745
        %v2801 = vmul.f32 %v2745, %v2800
        %v2802 = vsub.f32 1.0, %v2801
        %v2803 = vmul.f32 %v2800, %v2802
        %v2804 = vadd.f32 %v2800, %v2803
        %vm2805 = vweird.f32 %v2745
        %vm2806 = vweird.f32 %v2800
        %vm2807 = vmor %vm2805, %vm2806
        %v2808 = vsel %vm2807, %v2800, %v2804
        %v2809 = vand.u32 2147483647, %v2745
        %vm2810 = vcmp.eq.f32.partialorder %v2809, 8.507059e+37
        %v2811 = vand.u32 %v2745, 2147483648
        %v2812 = vor.u32 1.1754944e-38, %v2811
        %v2813 = vsel %vm2810, %v2812, %v2808
        %v2814 = vrcp.pop %v2747
        %v2815 = vmul.f32 %v2747, %v2814
        %v2816 = vsub.f32 1.0, %v2815
        %v2817 = vmul.f32 %v2814, %v2816
        %v2818 = vadd.f32 %v2814, %v2817
        %vm2819 = vweird.f32 %v2747
        %vm2820 = vweird.f32 %v2814
        %vm2821 = vmor %vm2819, %vm2820
        %v2822 = vsel %vm2821, %v2814, %v2818
        %v2823 = vand.u32 2147483647, %v2747
        %vm2824 = vcmp.eq.f32.partialorder %v2823, 8.507059e+37
        %v2825 = vand.u32 %v2747, 2147483648
        %v2826 = vor.u32 1.1754944e-38, %v2825
        %v2827 = vsel %vm2824, %v2826, %v2822
        %v2828 = vrcp.pop %v2749
        %v2829 = vmul.f32 %v2749, %v2828
        %v2830 = vsub.f32 1.0, %v2829
        %v2831 = vmul.f32 %v2828, %v2830
        %v2832 = vadd.f32 %v2828, %v2831
        %vm2833 = vweird.f32 %v2749
        %vm2834 = vweird.f32 %v2828
        %vm2835 = vmor %vm2833, %vm2834
        %v2836 = vsel %vm2835, %v2828, %v2832
        %v2837 = vand.u32 2147483647, %v2749
        %vm2838 = vcmp.eq.f32.partialorder %v2837, 8.507059e+37
        %v2839 = vand.u32 %v2749, 2147483648
        %v2840 = vor.u32 1.1754944e-38, %v2839
        %v2841 = vsel %vm2838, %v2840, %v2836
        %v2842 = vrcp.pop %v2751
        %v2843 = vmul.f32 %v2751, %v2842
        %v2844 = vsub.f32 1.0, %v2843
        %v2845 = vmul.f32 %v2842, %v2844
        %v2846 = vadd.f32 %v2842, %v2845
        %vm2847 = vweird.f32 %v2751
        %vm2848 = vweird.f32 %v2842
        %vm2849 = vmor %vm2847, %vm2848
        %v2850 = vsel %vm2849, %v2842, %v2846
        %v2851 = vand.u32 2147483647, %v2751
        %vm2852 = vcmp.eq.f32.partialorder %v2851, 8.507059e+37
        %v2853 = vand.u32 %v2751, 2147483648
        %v2854 = vor.u32 1.1754944e-38, %v2853
        %v2855 = vsel %vm2852, %v2854, %v2850
        %v2856 = vrcp.pop %v2753
        %v2857 = vmul.f32 %v2753, %v2856
        %v2858 = vsub.f32 1.0, %v2857
        %v2859 = vmul.f32 %v2856, %v2858
        %v2860 = vadd.f32 %v2856, %v2859
        %vm2861 = vweird.f32 %v2753
        %vm2862 = vweird.f32 %v2856
        %vm2863 = vmor %vm2861, %vm2862
        %v2864 = vsel %vm2863, %v2856, %v2860
        %v2865 = vand.u32 2147483647, %v2753
        %vm2866 = vcmp.eq.f32.partialorder %v2865, 8.507059e+37
        %v2867 = vand.u32 %v2753, 2147483648
        %v2868 = vor.u32 1.1754944e-38, %v2867
        %v2869 = vsel %vm2866, %v2868, %v2864
        %v2870 = vrcp.pop %v2755
        %v2871 = vmul.f32 %v2755, %v2870
        %v2872 = vsub.f32 1.0, %v2871
        %v2873 = vmul.f32 %v2870, %v2872
        %v2874 = vadd.f32 %v2870, %v2873
        %vm2875 = vweird.f32 %v2755
        %vm2876 = vweird.f32 %v2870
        %vm2877 = vmor %vm2875, %vm2876
        %v2878 = vsel %vm2877, %v2870, %v2874
        %v2879 = vand.u32 2147483647, %v2755
        %vm2880 = vcmp.eq.f32.partialorder %v2879, 8.507059e+37
        %v2881 = vand.u32 %v2755, 2147483648
        %v2882 = vor.u32 1.1754944e-38, %v2881
        %v2883 = vsel %vm2880, %v2882, %v2878
        %v2884 = vrcp.pop %v2757
        %v2885 = vmul.f32 %v2757, %v2884
        %v2886 = vsub.f32 1.0, %v2885
        %v2887 = vmul.f32 %v2884, %v2886
        %v2888 = vadd.f32 %v2884, %v2887
        %vm2889 = vweird.f32 %v2757
        %vm2890 = vweird.f32 %v2884
        %vm2891 = vmor %vm2889, %vm2890
        %v2892 = vsel %vm2891, %v2884, %v2888
        %v2893 = vand.u32 2147483647, %v2757
        %vm2894 = vcmp.eq.f32.partialorder %v2893, 8.507059e+37
        %v2895 = vand.u32 %v2757, 2147483648
        %v2896 = vor.u32 1.1754944e-38, %v2895
        %v2897 = vsel %vm2894, %v2896, %v2892
        %v2898 = vrcp.pop %v2759
        %v2899 = vmul.f32 %v2759, %v2898
        %v2900 = vsub.f32 1.0, %v2899
        %v2901 = vmul.f32 %v2898, %v2900
        %v2902 = vadd.f32 %v2898, %v2901
        %vm2903 = vweird.f32 %v2759
        %vm2904 = vweird.f32 %v2898
        %vm2905 = vmor %vm2903, %vm2904
        %v2906 = vsel %vm2905, %v2898, %v2902
        %v2907 = vand.u32 2147483647, %v2759
        %vm2908 = vcmp.eq.f32.partialorder %v2907, 8.507059e+37
        %v2909 = vand.u32 %v2759, 2147483648
        %v2910 = vor.u32 1.1754944e-38, %v2909
        %v2911 = vsel %vm2908, %v2910, %v2906
        %v2912 = vrcp.pop %v2761
        %v2913 = vmul.f32 %v2761, %v2912
        %v2914 = vsub.f32 1.0, %v2913
        %v2915 = vmul.f32 %v2912, %v2914
        %v2916 = vadd.f32 %v2912, %v2915
        %vm2917 = vweird.f32 %v2761
        %vm2918 = vweird.f32 %v2912
        %vm2919 = vmor %vm2917, %vm2918
        %v2920 = vsel %vm2919, %v2912, %v2916
        %v2921 = vand.u32 2147483647, %v2761
        %vm2922 = vcmp.eq.f32.partialorder %v2921, 8.507059e+37
        %v2923 = vand.u32 %v2761, 2147483648
        %v2924 = vor.u32 1.1754944e-38, %v2923
        %v2925 = vsel %vm2922, %v2924, %v2920
        %v2926 = vrcp.pop %v2763
        %v2927 = vmul.f32 %v2763, %v2926
        %v2928 = vsub.f32 1.0, %v2927
        %v2929 = vmul.f32 %v2926, %v2928
        %v2930 = vadd.f32 %v2926, %v2929
        %vm2931 = vweird.f32 %v2763
        %vm2932 = vweird.f32 %v2926
        %vm2933 = vmor %vm2931, %vm2932
        %v2934 = vsel %vm2933, %v2926, %v2930
        %v2935 = vand.u32 2147483647, %v2763
        %vm2936 = vcmp.eq.f32.partialorder %v2935, 8.507059e+37
        %v2937 = vand.u32 %v2763, 2147483648
        %v2938 = vor.u32 1.1754944e-38, %v2937
        %v2939 = vsel %vm2936, %v2938, %v2934
        %v2940 = vrcp.pop %v2765
        %v2941 = vmul.f32 %v2765, %v2940
        %v2942 = vsub.f32 1.0, %v2941
        %v2943 = vmul.f32 %v2940, %v2942
        %v2944 = vadd.f32 %v2940, %v2943
        %vm2945 = vweird.f32 %v2765
        %vm2946 = vweird.f32 %v2940
        %vm2947 = vmor %vm2945, %vm2946
        %v2948 = vsel %vm2947, %v2940, %v2944
        %v2949 = vand.u32 2147483647, %v2765
        %vm2950 = vcmp.eq.f32.partialorder %v2949, 8.507059e+37
        %v2951 = vand.u32 %v2765, 2147483648
        %v2952 = vor.u32 1.1754944e-38, %v2951
        %v2953 = vsel %vm2950, %v2952, %v2948
        %v2954 = vrcp.pop %v2767
        %v2955 = vmul.f32 %v2767, %v2954
        %v2956 = vsub.f32 1.0, %v2955
        %v2957 = vmul.f32 %v2954, %v2956
        %v2958 = vadd.f32 %v2954, %v2957
        %vm2959 = vweird.f32 %v2767
        %vm2960 = vweird.f32 %v2954
        %vm2961 = vmor %vm2959, %vm2960
        %v2962 = vsel %vm2961, %v2954, %v2958
        %v2963 = vand.u32 2147483647, %v2767
        %vm2964 = vcmp.eq.f32.partialorder %v2963, 8.507059e+37
        %v2965 = vand.u32 %v2767, 2147483648
        %v2966 = vor.u32 1.1754944e-38, %v2965
        %v2967 = vsel %vm2964, %v2966, %v2962
        %v2968 = vrcp.pop %v2769
        %v2969 = vmul.f32 %v2769, %v2968
        %v2970 = vsub.f32 1.0, %v2969
        %v2971 = vmul.f32 %v2968, %v2970
        %v2972 = vadd.f32 %v2968, %v2971
        %vm2973 = vweird.f32 %v2769
        %vm2974 = vweird.f32 %v2968
        %vm2975 = vmor %vm2973, %vm2974
        %v2976 = vsel %vm2975, %v2968, %v2972
        %v2977 = vand.u32 2147483647, %v2769
        %vm2978 = vcmp.eq.f32.partialorder %v2977, 8.507059e+37
        %v2979 = vand.u32 %v2769, 2147483648
        %v2980 = vor.u32 1.1754944e-38, %v2979
        %v2981 = vsel %vm2978, %v2980, %v2976
        %v2982 = vrcp.pop %v2771
        %v2983 = vmul.f32 %v2771, %v2982
        %v2984 = vsub.f32 1.0, %v2983
        %v2985 = vmul.f32 %v2982, %v2984
        %v2986 = vadd.f32 %v2982, %v2985
        %vm2987 = vweird.f32 %v2771
        %vm2988 = vweird.f32 %v2982
        %vm2989 = vmor %vm2987, %vm2988
        %v2990 = vsel %vm2989, %v2982, %v2986
        %v2991 = vand.u32 2147483647, %v2771
        %vm2992 = vcmp.eq.f32.partialorder %v2991, 8.507059e+37
        %v2993 = vand.u32 %v2771, 2147483648
        %v2994 = vor.u32 1.1754944e-38, %v2993
        %v2995 = vsel %vm2992, %v2994, %v2990
        %v2996 = vmul.f32 %v2709, %v2785
        %v2997 = vmul.f32 %v2711, %v2799
        %v2998 = vmul.f32 %v2713, %v2813
        %v2999 = vmul.f32 %v2715, %v2827
        %v3000 = vmul.f32 %v2717, %v2841
        %v3001 = vmul.f32 %v2719, %v2855
        %v3002 = vmul.f32 %v2721, %v2869
        %v3003 = vmul.f32 %v2723, %v2883
        %v3004 = vmul.f32 %v2725, %v2897
        %v3005 = vmul.f32 %v2727, %v2911
        %v3006 = vmul.f32 %v2729, %v2925
        %v3007 = vmul.f32 %v2731, %v2939
        %v3008 = vmul.f32 %v2733, %v2953
        %v3009 = vmul.f32 %v2735, %v2967
        %v3010 = vmul.f32 %v2737, %v2981
        %v3011 = vmul.f32 %v2739, %v2995
        %3012 = vmatpush.msra.mxu0 %v3011
        %3013 = vmatpush.msra.mxu0 %v3010
        %3014 = vmatpush.msra.mxu0 %v3009
        %3015 = vmatpush.msra.mxu0 %v3008
        %3016 = vmatpush.msra.mxu0 %v3007
        %3017 = vmatpush.msra.mxu0 %v3006
        %3018 = vmatpush.msra.mxu0 %v3005
        %3019 = vmatpush.msra.mxu0 %v3004
        %3020 = vmatpush.msra.mxu0 %v3003
        %3021 = vmatpush.msra.mxu0 %v3002
        %3022 = vmatpush.msra.mxu0 %v3001
        %3023 = vmatpush.msra.mxu0 %v3000
        %3024 = vmatpush.msra.mxu0 %v2999
        %3025 = vmatpush.msra.mxu0 %v2998
        %3026 = vmatpush.msra.mxu0 %v2997
        %3027 = vmatpush.msra.mxu0 %v2996
        %3028 = vmatmul.f32.gmra.mxu0 %v2504
        %v3029 = vpop.f32.mrf.mxu0
        %v3030 = vadd.f32 0.0, %v3029
        %3031 = vmatmul.f32.gmra.mxu0 %v2507
        %v3032 = vpop.f32.mrf.mxu0
        %v3033 = vadd.f32 0.0, %v3032
        %3034 = vmatmul.f32.gmra.mxu0 %v2510
        %v3035 = vpop.f32.mrf.mxu0
        %v3036 = vadd.f32 0.0, %v3035
        %3037 = vmatmul.f32.gmra.mxu0 %v2513
        %v3038 = vpop.f32.mrf.mxu0
        %v3039 = vadd.f32 0.0, %v3038
        %3040 = vdwg.mxu0
        %s3041 = scalar_lea.vmem %s5, 96
        %v3042 = vld [vmem:[%s3041] sm:$0xff]
        %v3043 = vld [vmem:[%s3041 + $0x8] sm:$0xff]
        %v3044 = vld [vmem:[%s3041 + $0x10] sm:$0xff]
        %v3045 = vld [vmem:[%s3041 + $0x18] sm:$0xff]
        %s3046 = scalar_lea.vmem %s6, 96
        %v3047 = vld [vmem:[%s3046] sm:$0xff]
        %v3048 = vld [vmem:[%s3046 + $0x8] sm:$0xff]
        %v3049 = vld [vmem:[%s3046 + $0x10] sm:$0xff]
        %v3050 = vld [vmem:[%s3046 + $0x18] sm:$0xff]
        %3052 = vset.pattern.permute.xlu0 0
        %3053 = vperm.xlu0 %3052, %v3047
        %v3054 = vpop.permute.xlu0 %3053
        %3057 = vset.pattern.permute.xlu0 0
        %3058 = vperm.xlu0 %3057, %v3048
        %v3059 = vpop.permute.xlu0 %3058
        %3062 = vset.pattern.permute.xlu0 0
        %3063 = vperm.xlu0 %3062, %v3049
        %v3064 = vpop.permute.xlu0 %3063
        %3067 = vset.pattern.permute.xlu0 0
        %3068 = vperm.xlu0 %3067, %v3050
        %v3069 = vpop.permute.xlu0 %3068
        %v3072 = vsel %vm309, %v3042, 0
        %v3075 = vsel %vm309, %v3043, 0
        %v3078 = vsel %vm309, %v3044, 0
        %v3081 = vsel %vm309, %v3045, 0
        %3083 = vmatpush.msra.mxu0 0.0
        %3084 = vmatpush.msra.mxu0 0.0
        %3085 = vmatpush.msra.mxu0 0.0
        %3086 = vmatpush.msra.mxu0 0.0
        %3087 = vmatpush.msra.mxu0 0.0
        %3088 = vmatpush.msra.mxu0 0.0
        %3089 = vmatpush.msra.mxu0 0.0
        %3090 = vmatpush.msra.mxu0 0.0
        %3091 = vmatpush.msra.mxu0 0.0
        %3092 = vmatpush.msra.mxu0 0.0
        %3093 = vmatpush.msra.mxu0 0.0
        %3094 = vmatpush.msra.mxu0 0.0
        %3095 = vmatpush.msra.mxu0 %v3039
        %3096 = vmatpush.msra.mxu0 %v3036
        %3097 = vmatpush.msra.mxu0 %v3033
        %3098 = vmatpush.msra.mxu0 %v3030
        %3099 = vmatmul.f32.gmra.mxu0 %v3072
        %v3100 = vpop.f32.mrf.mxu0
        %v3101 = vadd.f32 %v3054, %v3100
        %3102 = vmatmul.f32.gmra.mxu0 %v3075
        %v3103 = vpop.f32.mrf.mxu0
        %v3104 = vadd.f32 %v3059, %v3103
        %3105 = vmatmul.f32.gmra.mxu0 %v3078
        %v3106 = vpop.f32.mrf.mxu0
        %v3107 = vadd.f32 %v3064, %v3106
        %3108 = vmatmul.f32.gmra.mxu0 %v3081
        %v3109 = vpop.f32.mrf.mxu0
        %v3110 = vadd.f32 %v3069, %v3109
        %3111 = vdwg.mxu0
        %v3112 = vmax.f32 %v3101, 0.0
        %v3113 = vmax.f32 %v3104, 0.0
        %v3114 = vmax.f32 %v3107, 0.0
        %v3115 = vmax.f32 %v3110, 0.0
        %v3116 = vadd.f32 %v2423, %v3112
        %v3117 = vadd.f32 %v2424, %v3113
        %v3118 = vadd.f32 %v2425, %v3114
        %v3119 = vadd.f32 %v2426, %v3115
        %3120 = vst [vmem:[%s271 + $0x60] sm:$0xff] %v3116
        %3121 = vst [vmem:[%s271 + $0x68] sm:$0xff] %v3117
        %3122 = vst [vmem:[%s271 + $0x70] sm:$0xff] %v3118
        %3123 = vst [vmem:[%s271 + $0x78] sm:$0xff] %v3119
        %s3124 = sand.u32 %s181, 1
        %s3125 = scalar_lea.sflag [#allocation3], %s3124
        %s3126 = sand.u32 %s181, 1
        %s3127 = smul.addr %s3126, 128
        %s3128 = scalar_lea.vmem [#allocation2], %s3127
        // Predicated region
        $region49: #{tpu_custom_call.1} parent=47 // pred_check
          %p3129 = pneg %p191
        $region50: #{tpu_custom_call.1} parent=47 // pred_check_branch
          %3131 = sbr.rel (%p3129) target = $region52
        $region51: #{tpu_custom_call.1} parent=47 // pred_region
          %3133 = vsyncadd %s3125, 0
          %s3134 = smul.addr %s21, 16
          %s3135 = smul.addr %s3134, 8
          %s3136 = scalar_lea.hbm %s7, %s3135
          %s3137 = sshll.u32 %s3128, 4
          %s3138 = int_to_ptr.vmem [resolvable:$true] %s3137
          %s3139 = sshll.u32 %s3136, 4
          %s3140 = int_to_ptr.hbm [resolvable:$true] %s3139
          %3145 = dma.vmem_to_hbm [thread:$0]  %s3138, 2048, %s3140, %s3125, 128, 128, 8
        $region52: #{tpu_custom_call.1} parent=47 // pred_fallthru
          _
      $region48: #{tpu_custom_call.1} parent=5 // pred_fallthru
        _
      %p3146 = scmp.le.s32.totalorder 2, %s16
      // Predicated region
      $region53: #{tpu_custom_call.1} parent=5 // pred_check
        %p3147 = pneg %p3146
      $region54: #{tpu_custom_call.1} parent=5 // pred_check_branch
        %3149 = sbr.rel (%p3147) target = $region56
      $region55: #{tpu_custom_call.1} parent=5 // pred_region
        %s3150 = ssub.s32 %s16, 2
        // Predicated region
        $region57: #{tpu_custom_call.1} parent=55 // pred_check
          %p3151 = pneg %p197
        $region58: #{tpu_custom_call.1} parent=55 // pred_check_branch
          %3153 = sbr.rel (%p3151) target = $region60
        $region59: #{tpu_custom_call.1} parent=55 // pred_region
          %s3154 = sand.u32 %s182, 1
          %s3155 = scalar_lea.sflag [#allocation3], %s3154
          %s3156 = sand.u32 %s182, 1
          %s3157 = smul.addr %s3156, 128
          %s3158 = scalar_lea.vmem [#allocation2], %s3157
          %3160 = dma.done %s3155, 2048
        $region60: #{tpu_custom_call.1} parent=55 // pred_fallthru
          _
      $region56: #{tpu_custom_call.1} parent=5 // pred_fallthru
        _
    $region6: #{tpu_custom_call.1} parent=1 // loop_footer
      %s20 = sadd.s32 1, %s16
    $region7: #{tpu_custom_call.1} parent=1 // loop_footer_branch
      %15 = sbr.rel target = $region3
    $region8: #{tpu_custom_call.1} parent=1 // loop_exit
      _
    %3161 = vsyncpa [#allocation3], 1
    %s3162 = scalar_lea.sflag [#allocation3], 1
    %3163 = vsyncpa %s3162, 1

</llo_original>
